<compile_context>
chip_gen: v6e
topology: v6e:2x2x1
jax: 0.10.0
libtpu: 0.0.40
codegen_flags: <defaults>
</compile_context>

<pallas_src>
import math

import numpy as np
import jax
import jax.numpy as jnp
from jax.experimental import pallas as pl
from jax.experimental.pallas import tpu as pltpu


# --------------------------------------------------------------------------- weights
def _interp_matrix_np(out_size: int, in_size: int) -> np.ndarray:
    """1-D linear interpolation matrix, align_corners=True. Shape (out, in), f64."""
    A = np.zeros((out_size, in_size), np.float64)
    if out_size == 1 or in_size == 1:
        A[:, 0] = 1.0
        return A
    src = np.arange(out_size, dtype=np.float64) * (in_size - 1) / (out_size - 1)
    low = np.clip(np.floor(src), 0, in_size - 1).astype(np.int64)
    high = np.clip(low + 1, 0, in_size - 1)
    w_hi = src - low
    rows = np.arange(out_size)
    A[rows, low] += 1.0 - w_hi
    A[rows, high] += w_hi
    return A


# --------------------------------------------------------------------------- helpers
def _cdiv(a, b):
    return -(-a // b)


def _ceil_to(v, m):
    return _cdiv(v, m) * m


def _vbytes(sub, lane, itemsize):
    """VMEM bytes of a (sub, lane) slab including (sublane, 128)-tile padding."""
    sub_tile = max(1, 32 // itemsize)           # 8 rows for f32, 16 for bf16
    return _ceil_to(max(sub, 1), sub_tile) * _ceil_to(max(lane, 1), 128) * itemsize


def _tpu_vmem_and_mxu():
    """Generation-aware VMEM capacity and MXU width (safe fallbacks)."""
    vmem, mxu = 64 << 20, 256                    # conservative defaults (v7x-like)
    try:
        info = pltpu.get_tpu_info()
        vmem = int(getattr(info, "vmem_capacity_bytes", vmem)) or vmem
        for name in ("mxu_column_count", "mxu_contracting_size", "mxu_size"):
            v = getattr(info, name, None)
            if v:
                mxu = int(v)
                break
    except Exception:
        pass
    return vmem, mxu


def _choose_tile(BC, vmem_of_t, budget):
    """Pick (tile, padded_BC): grid >= 4 steps when BC >= 8 (>= 2 when BC >= 2),
    largest tile that fits the VMEM budget, padding BC only if no decent divisor."""
    if BC >= 8:
        cap = max(1, BC // 4)
    elif BC >= 2:
        cap = max(1, BC // 2)
    else:
        cap = 1
    cap = min(cap, 512)
    t = cap
    while t > 1 and vmem_of_t(t) > budget:
        t -= 1
    best_div = 1
    for d in range(1, t + 1):                    # largest divisor of BC <= t
        if BC % d == 0:
            best_div = d
    if best_div * 4 >= t * 3:                    # within 75% of the cap: no padding
        return best_div, BC
    return t, _ceil_to(BC, t)


# --------------------------------------------------------------------------- kernels
def _make_kron_kernel(precision, compute_dtype):
    def kernel(x_ref, m_ref, o_ref):
        # x_ref: (1, T, H*W)   m_ref: (H*W, Ho*Wo)   o_ref: (1, T, Ho*Wo)
        x = x_ref[0].astype(compute_dtype)
        y = jax.lax.dot_general(
            x, m_ref[...],
            dimension_numbers=(((1,), (0,)), ((), ())),
            preferred_element_type=jnp.float32,
            precision=precision)                                   # (T, Ho*Wo) f32
        o_ref[0] = y.astype(o_ref.dtype)
    return kernel


def _make_sep_kernel(precision, compute_dtype, flat_out):
    def kernel(x_ref, aht_ref, awt_ref, o_ref):
        # x_ref: (1, T, H, W)   aht_ref: (H, Ho)   awt_ref: (W, Wo)
        x = x_ref[0].astype(compute_dtype)                         # (T, H, W)
        T, H, W = x.shape
        Wo = awt_ref.shape[1]
        Ho = aht_ref.shape[1]
        # width pass: one flattened 2-D MXU matmul, A_w^T stationary (pushed once)
        u = jax.lax.dot_general(
            x.reshape(T * H, W), awt_ref[...],
            dimension_numbers=(((1,), (0,)), ((), ())),
            preferred_element_type=jnp.float32,
            precision=precision)                                   # (T*H, Wo) f32
        u = u.astype(compute_dtype).reshape(T, H, Wo)
        u = jnp.swapaxes(u, 1, 2).reshape(T * Wo, H)               # XLU minor transpose
        # height pass: flattened 2-D matmul with the shared A_h^T (pushed once)
        y = jax.lax.dot_general(
            u, aht_ref[...],
            dimension_numbers=(((1,), (0,)), ((), ())),
            preferred_element_type=jnp.float32,
            precision=precision)                                   # (T*Wo, Ho) f32
        y = jnp.swapaxes(y.reshape(T, Wo, Ho), 1, 2)               # (T, Ho, Wo)
        if flat_out:
            o_ref[0] = y.reshape(T, Ho * Wo).astype(o_ref.dtype)   # lane-dense store
        else:
            o_ref[0] = y.astype(o_ref.dtype)
    return kernel


# --------------------------------------------------------------------------- wrapper
def resize_transform(x: jnp.ndarray, vel_resize: float, ndims: int = 2) -> jnp.ndarray:
    """Pallas implementation of ResizeTransform.forward for ndims=2 (bilinear)."""
    assert ndims == 2, "this kernel implements the 2-D (bilinear) case"
    factor = 1.0 / vel_resize
    if factor == 1.0:                            # module takes neither branch
        return x

    B, C, H, W = x.shape
    Ho = int(math.floor(H * factor))
    Wo = int(math.floor(W * factor))
    BC, HW, HoWo = B * C, H * W, Ho * Wo

    # Explicit precision policy (review): bf16 stays bf16 on the MXU (f32 accum);
    # f32 (or anything else) computes in f32 with Precision.HIGHEST.
    if x.dtype == jnp.bfloat16:
        compute_dtype, precision = jnp.bfloat16, None
    else:
        compute_dtype, precision = jnp.float32, jax.lax.Precision.HIGHEST
    xb = x.dtype.itemsize
    cb = np.dtype(compute_dtype).itemsize

    # Interpolation weights; fold the scalar rescale into the height matrix.
    ah_np = factor * _interp_matrix_np(Ho, H)    # (Ho, H)
    aw_np = _interp_matrix_np(Wo, W)             # (Wo, W)

    # Generation-aware VMEM / MXU numbers.
    vmem_cap, mxu = _tpu_vmem_and_mxu()
    vmem_limit = int(vmem_cap * 3 // 4)          # 48 MiB on v7x, 96 MiB on v5e/v6e
    budget = max(vmem_limit - (8 << 20), vmem_limit // 2)

    # Path selection by MXU-tile-padded push cost (nominal 8 slices), not raw flops.
    cost_kron = 8 * _cdiv(HW, mxu) * _cdiv(HoWo, mxu)
    cost_sep = (_ceil_to(8 * H, 8) * _cdiv(W, mxu) * _cdiv(Wo, mxu)
                + _ceil_to(8 * Wo, 8) * _cdiv(H, mxu) * _cdiv(Ho, mxu))
    kron_m_bytes = 2 * _vbytes(HW, HoWo, cb)     # resident weight (count 2 buffers)
    use_kron = (kron_m_bytes <= budget // 3) and (cost_kron <= cost_sep * 1.25)

    flat_out = (Wo % 128 != 0)                   # lane-dense flattened output view

    def kron_vmem(t):
        return (2 * _vbytes(t, HW, xb) + 2 * _vbytes(t, HoWo, xb)
                + _vbytes(t, HoWo, 4) + kron_m_bytes
                + (_vbytes(t, HW, cb) if cb != xb else 0))

    def sep_vmem(t):
        out_blk = _vbytes(t, HoWo, xb) if flat_out else t * _vbytes(Ho, Wo, xb)
        return (2 * t * _vbytes(H, W, xb) + 2 * out_blk
                + t * (_vbytes(H, Wo, 4) + _vbytes(H, Wo, cb) + _vbytes(Wo, H, cb)
                       + _vbytes(Wo, Ho, 4) + _vbytes(Ho, Wo, 4))
                + (t * _vbytes(H, W, cb) if cb != xb else 0)
                + 2 * (_vbytes(H, Ho, cb) + _vbytes(W, Wo, cb)))

    tile, BC_pad = _choose_tile(BC, kron_vmem if use_kron else sep_vmem, budget)
    G = BC_pad // tile

    x_flat = x.reshape(BC, H, W)
    if BC_pad != BC:
        x_flat = jnp.concatenate(
            [x_flat, jnp.zeros((BC_pad - BC, H, W), x.dtype)], axis=0)

    cparams = pltpu.CompilerParams(
        dimension_semantics=("parallel",),       # megacore / v7x cross-TC sharding
        vmem_limit_bytes=vmem_limit)

    if use_kron:
        # M[h*W+w, o*Wo+q] = factor * A_h[o,h] * A_w[q,w]
        m = jnp.asarray(np.kron(ah_np, aw_np).T, compute_dtype)     # (HW, HoWo)
        out = pl.pallas_call(
            _make_kron_kernel(precision, compute_dtype),
            out_shape=jax.ShapeDtypeStruct((G, tile, HoWo), x.dtype),
            grid_spec=pltpu.PrefetchScalarGridSpec(
                num_scalar_prefetch=0,
                grid=(G,),
                in_specs=[pl.BlockSpec((1, tile, HW), lambda i: (i, 0, 0)),
                          pl.BlockSpec((HW, HoWo), lambda i: (0, 0))],
                out_specs=pl.BlockSpec((1, tile, HoWo), lambda i: (i, 0, 0))),
            compiler_params=cparams,
        )(x_flat.reshape(G, tile, HW), m)
    else:
        aht = jnp.asarray(ah_np.T, compute_dtype)                    # (H, Ho)
        awt = jnp.asarray(aw_np.T, compute_dtype)                    # (W, Wo)
        if flat_out:
            out_shape = jax.ShapeDtypeStruct((G, tile, HoWo), x.dtype)
            out_spec = pl.BlockSpec((1, tile, HoWo), lambda i: (i, 0, 0))
        else:
            out_shape = jax.ShapeDtypeStruct((G, tile, Ho, Wo), x.dtype)
            out_spec = pl.BlockSpec((1, tile, Ho, Wo), lambda i: (i, 0, 0, 0))
        out = pl.pallas_call(
            _make_sep_kernel(precision, compute_dtype, flat_out),
            out_shape=out_shape,
            grid_spec=pltpu.PrefetchScalarGridSpec(
                num_scalar_prefetch=0,
                grid=(G,),
                in_specs=[pl.BlockSpec((1, tile, H, W), lambda i: (i, 0, 0, 0)),
                          pl.BlockSpec((H, Ho), lambda i: (0, 0)),
                          pl.BlockSpec((W, Wo), lambda i: (0, 0))],
                out_specs=out_spec),
            compiler_params=cparams,
        )(x_flat.reshape(G, tile, H, W), aht, awt)

    return out.reshape(BC_pad, Ho, Wo)[:BC].reshape(B, C, Ho, Wo)


# --------------------------------------------------------------------------- reference
def _reference_np(x64: np.ndarray, vel_resize: float) -> np.ndarray:
    """float64 numpy reference: align_corners=True bilinear + scalar rescale."""
    factor = 1.0 / vel_resize
    if factor == 1.0:
        return x64
    B, C, H, W = x64.shape
    Ho, Wo = int(math.floor(H * factor)), int(math.floor(W * factor))
    ah = _interp_matrix_np(Ho, H)
    aw = _interp_matrix_np(Wo, W)
    return factor * np.einsum('oh,bchw,qw->bcoq', ah, x64, aw)


if __name__ == "__main__":
    key = jax.random.PRNGKey(0)
    vel_resize = 0.5                      # factor = 2.0 -> scale then upsample 16 -> 32
    x = jax.random.normal(key, (2, 4, 16, 16), dtype=jnp.float32)

    y = jax.block_until_ready(resize_transform(x, vel_resize, ndims=2))
    assert y.shape == (2, 4, 32, 32), y.shape

    y_ref = _reference_np(np.asarray(x, dtype=np.float64), vel_resize)
    err = float(np.max(np.abs(np.asarray(y, dtype=np.float64) - y_ref)))
    # With Precision.HIGHEST the observed error is ~1e-6; the loose bound below only
    # guards against genuine layout/weight bugs (which would be O(0.1) or larger).
    assert err < 2e-2, err

    print("KERNEL_OK")
</pallas_src>

<mosaic_0001>
module attributes {stable_mosaic.version = 11 : i64} {
  func.func @kernel(%arg0: i32, %arg1: memref<1x2x256xf32, #tpu.memory_space<vmem>>, %arg2: memref<256x1024xf32, #tpu.memory_space<vmem>>, %arg3: memref<1x2x1024xf32, #tpu.memory_space<vmem>>) attributes {dimension_semantics = [#tpu.dimension_semantics<parallel>], iteration_bounds = array<i64: 4>, scalar_prefetch = 0 : i64, scratch_operands = 0 : i64, tpu.core_type = #tpu.core_type<tc>, window_params = [{transform_indices = @transform_0, window_bounds = array<i64: 1, 2, 256>}, {pipeline_mode = #tpu.pipeline_mode<synchronous>, transform_indices = @transform_1, window_bounds = array<i64: 256, 1024>}, {transform_indices = @transform_2, window_bounds = array<i64: 1, 2, 1024>}]} {
    %c0 = arith.constant 0 : index
    %c0_0 = arith.constant 0 : index
    %c0_1 = arith.constant 0 : index
    %0 = vector.load %arg1[%c0, %c0_0, %c0_1] : memref<1x2x256xf32, #tpu.memory_space<vmem>>, vector<1x2x256xf32>
    %1 = vector.shape_cast %0 : vector<1x2x256xf32> to vector<2x256xf32>
    %c0_2 = arith.constant 0 : index
    %c0_3 = arith.constant 0 : index
    %2 = vector.load %arg2[%c0_2, %c0_3] : memref<256x1024xf32, #tpu.memory_space<vmem>>, vector<256x1024xf32>
    %cst = arith.constant dense<0.000000e+00> : vector<2x1024xf32>
    %3 = tpu.matmul %1, %2, %cst {dimension_numbers = #tpu.dot_dimension_numbers<[1], [0], [0], [1], [0, 0, 1, 1], [], []>, precision = #tpu.contract_precision<fp32>} : vector<2x256xf32>, vector<256x1024xf32>, vector<2x1024xf32> -> vector<2x1024xf32>
    %c0_4 = arith.constant 0 : index
    %c0_5 = arith.constant 0 : index
    %c0_6 = arith.constant 0 : index
    %4 = vector.load %arg3[%c0_4, %c0_5, %c0_6] : memref<1x2x1024xf32, #tpu.memory_space<vmem>>, vector<1x2x1024xf32>
    %5 = vector.shape_cast %4 : vector<1x2x1024xf32> to vector<2x1024xf32>
    %6 = vector.shape_cast %3 : vector<2x1024xf32> to vector<1x2x1024xf32>
    tpu.vector_store %arg3[%c0_4, %c0_5, %c0_6], %6 {strides = array<i32>} : memref<1x2x1024xf32, #tpu.memory_space<vmem>>, vector<1x2x1024xf32>,
    return
  }
  func.func @transform_0(%arg0: i32) -> (i32, i32, i32) {
    %c0_i32 = arith.constant 0 : i32
    %c0_i32_0 = arith.constant 0 : i32
    %c0_i32_1 = arith.constant 0 : i32
    return %arg0, %c0_i32, %c0_i32_0 : i32, i32, i32
  }
  func.func @transform_1(%arg0: i32) -> (i32, i32) {
    %c0_i32 = arith.constant 0 : i32
    %c0_i32_0 = arith.constant 0 : i32
    %c0_i32_1 = arith.constant 0 : i32
    return %c0_i32, %c0_i32_0 : i32, i32
  }
  func.func @transform_2(%arg0: i32) -> (i32, i32, i32) {
    %c0_i32 = arith.constant 0 : i32
    %c0_i32_0 = arith.constant 0 : i32
    %c0_i32_1 = arith.constant 0 : i32
    return %arg0, %c0_i32, %c0_i32_0 : i32, i32, i32
  }
}

</mosaic_0001>

<llo_original>
// kernel: tpu_custom_call.1
$region0: #{tpu_custom_call.1}
  #allocation0 [shape = 'u32[]', space=smem, size = 0x4, offset = 0x4, fixed_abs, tag = 'smem constant byte address 0x4 - core index']
  #allocation1 [shape = 'u32[144,128]{1,0:T(1,128)}', space=vmem, size = 0x12000, scoped, tag = 'internal scratch']
  %s0 = inlined_call_operand.hbm [shape: f32[4,2,256], index: 0, kind: input, shape index: {}]
  %s1 = inlined_call_operand.hbm [shape: f32[256,1024], index: 1, kind: input, shape index: {}]
  %s2 = inlined_call_operand.hbm [shape: f32[4,2,1024], index: 2, kind: output, shape index: {}]
  %s3 = sld [smem:[#allocation0]]
  $region49: #{tpu_custom_call.1} parent=0
    _
  %s5 = ssub.s32 1, %s3
  %s6 = scalar_select 0, %s5, %s3
  $region1: #{tpu_custom_call.1} parent=0
    #allocation2 [shape = 'u8[4096]{0}', space=vmem, size = 0x1000, scoped, tag = 'input window, operand 0']
    #allocation3 [shape = 's32[2]{0}', space=sflag, size = 0x8, scoped, tag = 'scoped memory for tpu_custom_call.1']
    #allocation4 [shape = 's32[2]{0}', space=sflag, size = 0x8, scoped, tag = 'scoped memory for tpu_custom_call.1']
    #allocation5 [shape = 'u8[1048576]{0}', space=vmem, size = 0x100000, scoped, tag = 'input window, operand 1, single buffered']
    #allocation6 [shape = 's32[1]{0}', space=sflag, size = 0x4, scoped, tag = 'scoped memory for tpu_custom_call.1']
    #allocation7 [shape = 'u8[16384]{0}', space=vmem, size = 0x4000, scoped, tag = 'output window, operand 0']
    %7 = vsyncpa [#allocation3], 0
    %s8 = scalar_lea.sflag [#allocation3], 1
    %9 = vsyncpa %s8, 0
    %10 = vsyncpa [#allocation6], 0
    %11 = vsyncpa [#allocation4], 0
    %s12 = scalar_lea.sflag [#allocation4], 1
    %13 = vsyncpa %s12, 0
    loop: start=0, step=1, limit=6
    $region2: #{tpu_custom_call.1} parent=1 // loop_pre_header
      _
    $region3: #{tpu_custom_call.1} parent=1 // loop_header
      %s15 = sphi 0, %s19
      %p16 = scmp.ge.s32.totalorder %s15, 6
      %s25 = sphi 0, %s27
      %s28 = sphi 0, %s25
      %s29 = sphi 0, %s28
      %s45 = sphi 0, %s29
      %s49 = sphi 0, %s49
      %s51 = sphi 0, %s49
      %s52 = sphi 0, %s51
      %s66 = sphi 0, %s52
      %s72 = sphi 0, %s74
      %s75 = sphi 0, %s72
      %s76 = sphi 0, %s75
      %s92 = sphi 0, %s76
    $region4: #{tpu_custom_call.1} parent=1 // loop_header_branch
      %18 = sbr.rel (%p16) target = $region8
    $region5: #{tpu_custom_call.1} parent=1 // loop_body
      %s20 = ssub.s32 %s15, 1
      %s21 = ssub.s32 %s15, 2
      %s22 = sadd.s32 %s15, 1
      %s23 = ssub.s32 %s15, %s22
      %p24 = scmp.eq.s32.totalorder %s23, 0
      %s26 = sadd.s32 %s25, 1
      %s27 = scalar_select %p24, %s25, %s26
      %p30 = pneg %p24
      %p31 = scmp.eq.s32.totalorder %s15, 3
      %p32 = por %p30, %p31
      %p33 = scmp.ne.s32.totalorder %s25, %s28
      %p34 = scmp.eq.s32.totalorder %s15, 0
      %p35 = por %p33, %p34
      %p36 = scmp.ne.s32.totalorder %s25, %s28
      %p37 = scmp.eq.s32.totalorder %s20, 3
      %p38 = por %p36, %p37
      %p39 = scmp.ne.s32.totalorder %s28, %s29
      %p40 = scmp.eq.s32.totalorder %s20, 0
      %p41 = por %p39, %p40
      %p42 = scmp.ne.s32.totalorder %s28, %s29
      %p43 = scmp.eq.s32.totalorder %s21, 3
      %p44 = por %p42, %p43
      %p46 = scmp.ne.s32.totalorder %s29, %s45
      %p47 = scmp.eq.s32.totalorder %s21, 0
      %p48 = por %p46, %p47
      %s50 = sadd.s32 %s49, 1
      %p53 = scmp.eq.s32.totalorder %s15, 3
      %p54 = scmp.ne.s32.totalorder %s49, %s51
      %p55 = scmp.eq.s32.totalorder %s15, 0
      %p56 = por %p54, %p55
      %p57 = scmp.ne.s32.totalorder %s49, %s51
      %p58 = scmp.eq.s32.totalorder %s20, 3
      %p59 = por %p57, %p58
      %p60 = scmp.ne.s32.totalorder %s51, %s52
      %p61 = scmp.eq.s32.totalorder %s20, 0
      %p62 = por %p60, %p61
      %p63 = scmp.ne.s32.totalorder %s51, %s52
      %p64 = scmp.eq.s32.totalorder %s21, 3
      %p65 = por %p63, %p64
      %p67 = scmp.ne.s32.totalorder %s52, %s66
      %p68 = scmp.eq.s32.totalorder %s21, 0
      %p69 = por %p67, %p68
      %s70 = ssub.s32 %s15, %s22
      %p71 = scmp.eq.s32.totalorder %s70, 0
      %s73 = sadd.s32 %s72, 1
      %s74 = scalar_select %p71, %s72, %s73
      %p77 = pneg %p71
      %p78 = scmp.eq.s32.totalorder %s15, 3
      %p79 = por %p77, %p78
      %p80 = scmp.ne.s32.totalorder %s72, %s75
      %p81 = scmp.eq.s32.totalorder %s15, 0
      %p82 = por %p80, %p81
      %p83 = scmp.ne.s32.totalorder %s72, %s75
      %p84 = scmp.eq.s32.totalorder %s20, 3
      %p85 = por %p83, %p84
      %p86 = scmp.ne.s32.totalorder %s75, %s76
      %p87 = scmp.eq.s32.totalorder %s20, 0
      %p88 = por %p86, %p87
      %p89 = scmp.ne.s32.totalorder %s75, %s76
      %p90 = scmp.eq.s32.totalorder %s21, 3
      %p91 = por %p89, %p90
      %p93 = scmp.ne.s32.totalorder %s76, %s92
      %p94 = scmp.eq.s32.totalorder %s21, 0
      %p95 = por %p93, %p94
      %p96 = scmp.le.s32.totalorder 1, %s15
      %p97 = scmp.lt.s32.totalorder %s15, 5
      %p98 = pnand %p96, %p97
      %p99 = pneg %p98
      // Predicated region
      $region9: #{tpu_custom_call.1} parent=5 // pred_check
        _
      $region10: #{tpu_custom_call.1} parent=5 // pred_check_branch
        %101 = sbr.rel (%p98) target = $region12
      $region11: #{tpu_custom_call.1} parent=5 // pred_region
        %s102 = ssub.s32 %s15, 1
        // Predicated region
        $region13: #{tpu_custom_call.1} parent=11 // pred_check
          %p103 = pneg %p62
        $region14: #{tpu_custom_call.1} parent=11 // pred_check_branch
          %105 = sbr.rel (%p103) target = $region16
        $region15: #{tpu_custom_call.1} parent=11 // pred_region
          %s107 = ssub.s32 32768, 32768
          %108 = vsyncadd [#allocation6], %s107
          %s109 = sshll.u32 [#allocation5], 4
          %s110 = int_to_ptr.vmem [resolvable:$true] %s109
          %115 = dma.hbm_to_vmem [thread:$0]  %s1, 32768, %s110, [#allocation6], 1024, 1024, 64
        $region16: #{tpu_custom_call.1} parent=11 // pred_fallthru
          _
      $region12: #{tpu_custom_call.1} parent=5 // pred_fallthru
        _
      %p116 = scmp.lt.s32.totalorder %s15, 4
      // Predicated region
      $region17: #{tpu_custom_call.1} parent=5 // pred_check
        %p117 = pneg %p116
      $region18: #{tpu_custom_call.1} parent=5 // pred_check_branch
        %119 = sbr.rel (%p117) target = $region20
      $region19: #{tpu_custom_call.1} parent=5 // pred_region
        // Predicated region
        $region21: #{tpu_custom_call.1} parent=19 // pred_check
          %p120 = pneg %p35
        $region22: #{tpu_custom_call.1} parent=19 // pred_check_branch
          %122 = sbr.rel (%p120) target = $region24
        $region23: #{tpu_custom_call.1} parent=19 // pred_region
          %s123 = sand.u32 %s25, 1
          %s124 = scalar_lea.sflag [#allocation3], %s123
          %s125 = sand.u32 %s25, 1
          %s126 = smul.addr %s125, 4
          %s127 = scalar_lea.vmem [#allocation2], %s126
          %s129 = ssub.s32 64, 64
          %130 = vsyncadd %s124, %s129
          %s131 = smul.addr %s15, 2
          %s132 = smul.addr %s131, 32
          %s133 = scalar_lea.hbm %s0, %s132
          %s135 = sshll.u32 %s127, 4
          %s136 = int_to_ptr.vmem [resolvable:$true] %s135
          %138 = dma.hbm_to_vmem [thread:$0]  %s133, 64, %s136, %s124
        $region24: #{tpu_custom_call.1} parent=19 // pred_fallthru
          _
      $region20: #{tpu_custom_call.1} parent=5 // pred_fallthru
        _
      %p139 = scmp.le.s32.totalorder 1, %s15
      %p140 = scmp.lt.s32.totalorder %s15, 5
      %p141 = pnand %p139, %p140
      %p142 = pneg %p141
      // Predicated region
      $region25: #{tpu_custom_call.1} parent=5 // pred_check
        _
      $region26: #{tpu_custom_call.1} parent=5 // pred_check_branch
        %144 = sbr.rel (%p141) target = $region28
      $region27: #{tpu_custom_call.1} parent=5 // pred_region
        %s145 = ssub.s32 %s15, 1
        %s146 = sand.u32 %s28, 1
        %s147 = scalar_lea.sflag [#allocation3], %s146
        %s148 = sand.u32 %s28, 1
        %s149 = smul.addr %s148, 4
        %s150 = scalar_lea.vmem [#allocation2], %s149
        // Predicated region
        $region29: #{tpu_custom_call.1} parent=27 // pred_check
          %p151 = pneg %p41
        $region30: #{tpu_custom_call.1} parent=27 // pred_check_branch
          %153 = sbr.rel (%p151) target = $region32
        $region31: #{tpu_custom_call.1} parent=27 // pred_region
          %154 = dma.done %s147, 64
        $region32: #{tpu_custom_call.1} parent=27 // pred_fallthru
          _
        // Predicated region
        $region33: #{tpu_custom_call.1} parent=27 // pred_check
          %p155 = pneg %p62
        $region34: #{tpu_custom_call.1} parent=27 // pred_check_branch
          %157 = sbr.rel (%p155) target = $region36
        $region35: #{tpu_custom_call.1} parent=27 // pred_region
          %158 = dma.done [#allocation6], 32768
        $region36: #{tpu_custom_call.1} parent=27 // pred_fallthru
          _
        %s159 = sand.u32 %s28, 1
        %s160 = scalar_lea.sflag [#allocation3], %s159
        %s161 = sand.u32 %s28, 1
        %s162 = smul.addr %s161, 4
        %s163 = scalar_lea.vmem [#allocation2], %s162
        %p164 = pneg %p41
        %p165 = pneg %p38
        %p166 = pneg %p62
        %p167 = pneg %p59
        %p168 = pneg %p88
        %p169 = pneg %p85
        %s170 = sand.u32 %s75, 1
        %s171 = scalar_lea.sflag [#allocation4], %s170
        %s172 = sand.u32 %s75, 1
        %s173 = smul.addr %s172, 16
        %s174 = scalar_lea.vmem [#allocation7], %s173
        %v175 = vld [vmem:[%s150] sm:$0xf]
        %v176 = vld [vmem:[#allocation5] sm:$0xff]
        %v177 = vld [vmem:[#allocation5 + $0x8] sm:$0xff]
        %v178 = vld [vmem:[#allocation5 + $0x10] sm:$0xff]
        %v179 = vld [vmem:[#allocation5 + $0x18] sm:$0xff]
        %v180 = vld [vmem:[#allocation5 + $0x20] sm:$0xff]
        %v181 = vld [vmem:[#allocation5 + $0x28] sm:$0xff]
        %v182 = vld [vmem:[#allocation5 + $0x30] sm:$0xff]
        %v183 = vld [vmem:[#allocation5 + $0x38] sm:$0xff]
        %v184 = vld [vmem:[#allocation5 + $0x40] sm:$0xff]
        %v185 = vld [vmem:[#allocation5 + $0x48] sm:$0xff]
        %v186 = vld [vmem:[#allocation5 + $0x50] sm:$0xff]
        %v187 = vld [vmem:[#allocation5 + $0x58] sm:$0xff]
        %v188 = vld [vmem:[#allocation5 + $0x60] sm:$0xff]
        %v189 = vld [vmem:[#allocation5 + $0x68] sm:$0xff]
        %v190 = vld [vmem:[#allocation5 + $0x70] sm:$0xff]
        %v191 = vld [vmem:[#allocation5 + $0x78] sm:$0xff]
        %v192 = vld [vmem:[#allocation5 + $0x80] sm:$0xff]
        %v193 = vld [vmem:[#allocation5 + $0x88] sm:$0xff]
        %v194 = vld [vmem:[#allocation5 + $0x90] sm:$0xff]
        %v195 = vld [vmem:[#allocation5 + $0x98] sm:$0xff]
        %v196 = vld [vmem:[#allocation5 + $0xa0] sm:$0xff]
        %v197 = vld [vmem:[#allocation5 + $0xa8] sm:$0xff]
        %v198 = vld [vmem:[#allocation5 + $0xb0] sm:$0xff]
        %v199 = vld [vmem:[#allocation5 + $0xb8] sm:$0xff]
        %v200 = vld [vmem:[#allocation5 + $0xc0] sm:$0xff]
        %v201 = vld [vmem:[#allocation5 + $0xc8] sm:$0xff]
        %v202 = vld [vmem:[#allocation5 + $0xd0] sm:$0xff]
        %v203 = vld [vmem:[#allocation5 + $0xd8] sm:$0xff]
        %v204 = vld [vmem:[#allocation5 + $0xe0] sm:$0xff]
        %v205 = vld [vmem:[#allocation5 + $0xe8] sm:$0xff]
        %v206 = vld [vmem:[#allocation5 + $0xf0] sm:$0xff]
        %v207 = vld [vmem:[#allocation5 + $0xf8] sm:$0xff]
        %v208 = vld [vmem:[#allocation5 + $0x100] sm:$0xff]
        %v209 = vld [vmem:[#allocation5 + $0x108] sm:$0xff]
        %v210 = vld [vmem:[#allocation5 + $0x110] sm:$0xff]
        %v211 = vld [vmem:[#allocation5 + $0x118] sm:$0xff]
        %v212 = vld [vmem:[#allocation5 + $0x120] sm:$0xff]
        %v213 = vld [vmem:[#allocation5 + $0x128] sm:$0xff]
        %v214 = vld [vmem:[#allocation5 + $0x130] sm:$0xff]
        %v215 = vld [vmem:[#allocation5 + $0x138] sm:$0xff]
        %v216 = vld [vmem:[#allocation5 + $0x140] sm:$0xff]
        %v217 = vld [vmem:[#allocation5 + $0x148] sm:$0xff]
        %v218 = vld [vmem:[#allocation5 + $0x150] sm:$0xff]
        %v219 = vld [vmem:[#allocation5 + $0x158] sm:$0xff]
        %v220 = vld [vmem:[#allocation5 + $0x160] sm:$0xff]
        %v221 = vld [vmem:[#allocation5 + $0x168] sm:$0xff]
        %v222 = vld [vmem:[#allocation5 + $0x170] sm:$0xff]
        %v223 = vld [vmem:[#allocation5 + $0x178] sm:$0xff]
        %v224 = vld [vmem:[#allocation5 + $0x180] sm:$0xff]
        %v225 = vld [vmem:[#allocation5 + $0x188] sm:$0xff]
        %v226 = vld [vmem:[#allocation5 + $0x190] sm:$0xff]
        %v227 = vld [vmem:[#allocation5 + $0x198] sm:$0xff]
        %v228 = vld [vmem:[#allocation5 + $0x1a0] sm:$0xff]
        %v229 = vld [vmem:[#allocation5 + $0x1a8] sm:$0xff]
        %v230 = vld [vmem:[#allocation5 + $0x1b0] sm:$0xff]
        %v231 = vld [vmem:[#allocation5 + $0x1b8] sm:$0xff]
        %v232 = vld [vmem:[#allocation5 + $0x1c0] sm:$0xff]
        %v233 = vld [vmem:[#allocation5 + $0x1c8] sm:$0xff]
        %v234 = vld [vmem:[#allocation5 + $0x1d0] sm:$0xff]
        %v235 = vld [vmem:[#allocation5 + $0x1d8] sm:$0xff]
        %v236 = vld [vmem:[#allocation5 + $0x1e0] sm:$0xff]
        %v237 = vld [vmem:[#allocation5 + $0x1e8] sm:$0xff]
        %v238 = vld [vmem:[#allocation5 + $0x1f0] sm:$0xff]
        %v239 = vld [vmem:[#allocation5 + $0x1f8] sm:$0xff]
        %v240 = vld [vmem:[#allocation5 + $0x200] sm:$0xff]
        %v241 = vld [vmem:[#allocation5 + $0x208] sm:$0xff]
        %v242 = vld [vmem:[#allocation5 + $0x210] sm:$0xff]
        %v243 = vld [vmem:[#allocation5 + $0x218] sm:$0xff]
        %v244 = vld [vmem:[#allocation5 + $0x220] sm:$0xff]
        %v245 = vld [vmem:[#allocation5 + $0x228] sm:$0xff]
        %v246 = vld [vmem:[#allocation5 + $0x230] sm:$0xff]
        %v247 = vld [vmem:[#allocation5 + $0x238] sm:$0xff]
        %v248 = vld [vmem:[#allocation5 + $0x240] sm:$0xff]
        %v249 = vld [vmem:[#allocation5 + $0x248] sm:$0xff]
        %v250 = vld [vmem:[#allocation5 + $0x250] sm:$0xff]
        %v251 = vld [vmem:[#allocation5 + $0x258] sm:$0xff]
        %v252 = vld [vmem:[#allocation5 + $0x260] sm:$0xff]
        %v253 = vld [vmem:[#allocation5 + $0x268] sm:$0xff]
        %v254 = vld [vmem:[#allocation5 + $0x270] sm:$0xff]
        %v255 = vld [vmem:[#allocation5 + $0x278] sm:$0xff]
        %v256 = vld [vmem:[#allocation5 + $0x280] sm:$0xff]
        %v257 = vld [vmem:[#allocation5 + $0x288] sm:$0xff]
        %v258 = vld [vmem:[#allocation5 + $0x290] sm:$0xff]
        %v259 = vld [vmem:[#allocation5 + $0x298] sm:$0xff]
        %v260 = vld [vmem:[#allocation5 + $0x2a0] sm:$0xff]
        %v261 = vld [vmem:[#allocation5 + $0x2a8] sm:$0xff]
        %v262 = vld [vmem:[#allocation5 + $0x2b0] sm:$0xff]
        %v263 = vld [vmem:[#allocation5 + $0x2b8] sm:$0xff]
        %v264 = vld [vmem:[#allocation5 + $0x2c0] sm:$0xff]
        %v265 = vld [vmem:[#allocation5 + $0x2c8] sm:$0xff]
        %v266 = vld [vmem:[#allocation5 + $0x2d0] sm:$0xff]
        %v267 = vld [vmem:[#allocation5 + $0x2d8] sm:$0xff]
        %v268 = vld [vmem:[#allocation5 + $0x2e0] sm:$0xff]
        %v269 = vld [vmem:[#allocation5 + $0x2e8] sm:$0xff]
        %v270 = vld [vmem:[#allocation5 + $0x2f0] sm:$0xff]
        %v271 = vld [vmem:[#allocation5 + $0x2f8] sm:$0xff]
        %v272 = vld [vmem:[#allocation5 + $0x300] sm:$0xff]
        %v273 = vld [vmem:[#allocation5 + $0x308] sm:$0xff]
        %v274 = vld [vmem:[#allocation5 + $0x310] sm:$0xff]
        %v275 = vld [vmem:[#allocation5 + $0x318] sm:$0xff]
        %v276 = vld [vmem:[#allocation5 + $0x320] sm:$0xff]
        %v277 = vld [vmem:[#allocation5 + $0x328] sm:$0xff]
        %v278 = vld [vmem:[#allocation5 + $0x330] sm:$0xff]
        %v279 = vld [vmem:[#allocation5 + $0x338] sm:$0xff]
        %v280 = vld [vmem:[#allocation5 + $0x340] sm:$0xff]
        %v281 = vld [vmem:[#allocation5 + $0x348] sm:$0xff]
        %v282 = vld [vmem:[#allocation5 + $0x350] sm:$0xff]
        %v283 = vld [vmem:[#allocation5 + $0x358] sm:$0xff]
        %v284 = vld [vmem:[#allocation5 + $0x360] sm:$0xff]
        %v285 = vld [vmem:[#allocation5 + $0x368] sm:$0xff]
        %v286 = vld [vmem:[#allocation5 + $0x370] sm:$0xff]
        %v287 = vld [vmem:[#allocation5 + $0x378] sm:$0xff]
        %v288 = vld [vmem:[#allocation5 + $0x380] sm:$0xff]
        %v289 = vld [vmem:[#allocation5 + $0x388] sm:$0xff]
        %v290 = vld [vmem:[#allocation5 + $0x390] sm:$0xff]
        %v291 = vld [vmem:[#allocation5 + $0x398] sm:$0xff]
        %v292 = vld [vmem:[#allocation5 + $0x3a0] sm:$0xff]
        %v293 = vld [vmem:[#allocation5 + $0x3a8] sm:$0xff]
        %v294 = vld [vmem:[#allocation5 + $0x3b0] sm:$0xff]
        %v295 = vld [vmem:[#allocation5 + $0x3b8] sm:$0xff]
        %v296 = vld [vmem:[#allocation5 + $0x3c0] sm:$0xff]
        %v297 = vld [vmem:[#allocation5 + $0x3c8] sm:$0xff]
        %v298 = vld [vmem:[#allocation5 + $0x3d0] sm:$0xff]
        %v299 = vld [vmem:[#allocation5 + $0x3d8] sm:$0xff]
        %v300 = vld [vmem:[#allocation5 + $0x3e0] sm:$0xff]
        %v301 = vld [vmem:[#allocation5 + $0x3e8] sm:$0xff]
        %v302 = vld [vmem:[#allocation5 + $0x3f0] sm:$0xff]
        %v303 = vld [vmem:[#allocation5 + $0x3f8] sm:$0xff]
        %v304 = vld [vmem:[#allocation5 + $0x400] sm:$0xff]
        %v305 = vld [vmem:[#allocation5 + $0x408] sm:$0xff]
        %v306 = vld [vmem:[#allocation5 + $0x410] sm:$0xff]
        %v307 = vld [vmem:[#allocation5 + $0x418] sm:$0xff]
        %v308 = vld [vmem:[#allocation5 + $0x420] sm:$0xff]
        %v309 = vld [vmem:[#allocation5 + $0x428] sm:$0xff]
        %v310 = vld [vmem:[#allocation5 + $0x430] sm:$0xff]
        %v311 = vld [vmem:[#allocation5 + $0x438] sm:$0xff]
        %v312 = vld [vmem:[#allocation5 + $0x440] sm:$0xff]
        %v313 = vld [vmem:[#allocation5 + $0x448] sm:$0xff]
        %v314 = vld [vmem:[#allocation5 + $0x450] sm:$0xff]
        %v315 = vld [vmem:[#allocation5 + $0x458] sm:$0xff]
        %v316 = vld [vmem:[#allocation5 + $0x460] sm:$0xff]
        %v317 = vld [vmem:[#allocation5 + $0x468] sm:$0xff]
        %v318 = vld [vmem:[#allocation5 + $0x470] sm:$0xff]
        %v319 = vld [vmem:[#allocation5 + $0x478] sm:$0xff]
        %v320 = vld [vmem:[#allocation5 + $0x480] sm:$0xff]
        %v321 = vld [vmem:[#allocation5 + $0x488] sm:$0xff]
        %v322 = vld [vmem:[#allocation5 + $0x490] sm:$0xff]
        %v323 = vld [vmem:[#allocation5 + $0x498] sm:$0xff]
        %v324 = vld [vmem:[#allocation5 + $0x4a0] sm:$0xff]
        %v325 = vld [vmem:[#allocation5 + $0x4a8] sm:$0xff]
        %v326 = vld [vmem:[#allocation5 + $0x4b0] sm:$0xff]
        %v327 = vld [vmem:[#allocation5 + $0x4b8] sm:$0xff]
        %v328 = vld [vmem:[#allocation5 + $0x4c0] sm:$0xff]
        %v329 = vld [vmem:[#allocation5 + $0x4c8] sm:$0xff]
        %v330 = vld [vmem:[#allocation5 + $0x4d0] sm:$0xff]
        %v331 = vld [vmem:[#allocation5 + $0x4d8] sm:$0xff]
        %v332 = vld [vmem:[#allocation5 + $0x4e0] sm:$0xff]
        %v333 = vld [vmem:[#allocation5 + $0x4e8] sm:$0xff]
        %v334 = vld [vmem:[#allocation5 + $0x4f0] sm:$0xff]
        %v335 = vld [vmem:[#allocation5 + $0x4f8] sm:$0xff]
        %v336 = vld [vmem:[#allocation5 + $0x500] sm:$0xff]
        %v337 = vld [vmem:[#allocation5 + $0x508] sm:$0xff]
        %v338 = vld [vmem:[#allocation5 + $0x510] sm:$0xff]
        %v339 = vld [vmem:[#allocation5 + $0x518] sm:$0xff]
        %v340 = vld [vmem:[#allocation5 + $0x520] sm:$0xff]
        %v341 = vld [vmem:[#allocation5 + $0x528] sm:$0xff]
        %v342 = vld [vmem:[#allocation5 + $0x530] sm:$0xff]
        %v343 = vld [vmem:[#allocation5 + $0x538] sm:$0xff]
        %v344 = vld [vmem:[#allocation5 + $0x540] sm:$0xff]
        %v345 = vld [vmem:[#allocation5 + $0x548] sm:$0xff]
        %v346 = vld [vmem:[#allocation5 + $0x550] sm:$0xff]
        %v347 = vld [vmem:[#allocation5 + $0x558] sm:$0xff]
        %v348 = vld [vmem:[#allocation5 + $0x560] sm:$0xff]
        %v349 = vld [vmem:[#allocation5 + $0x568] sm:$0xff]
        %v350 = vld [vmem:[#allocation5 + $0x570] sm:$0xff]
        %v351 = vld [vmem:[#allocation5 + $0x578] sm:$0xff]
        %v352 = vld [vmem:[#allocation5 + $0x580] sm:$0xff]
        %v353 = vld [vmem:[#allocation5 + $0x588] sm:$0xff]
        %v354 = vld [vmem:[#allocation5 + $0x590] sm:$0xff]
        %v355 = vld [vmem:[#allocation5 + $0x598] sm:$0xff]
        %v356 = vld [vmem:[#allocation5 + $0x5a0] sm:$0xff]
        %v357 = vld [vmem:[#allocation5 + $0x5a8] sm:$0xff]
        %v358 = vld [vmem:[#allocation5 + $0x5b0] sm:$0xff]
        %v359 = vld [vmem:[#allocation5 + $0x5b8] sm:$0xff]
        %v360 = vld [vmem:[#allocation5 + $0x5c0] sm:$0xff]
        %v361 = vld [vmem:[#allocation5 + $0x5c8] sm:$0xff]
        %v362 = vld [vmem:[#allocation5 + $0x5d0] sm:$0xff]
        %v363 = vld [vmem:[#allocation5 + $0x5d8] sm:$0xff]
        %v364 = vld [vmem:[#allocation5 + $0x5e0] sm:$0xff]
        %v365 = vld [vmem:[#allocation5 + $0x5e8] sm:$0xff]
        %v366 = vld [vmem:[#allocation5 + $0x5f0] sm:$0xff]
        %v367 = vld [vmem:[#allocation5 + $0x5f8] sm:$0xff]
        %v368 = vld [vmem:[#allocation5 + $0x600] sm:$0xff]
        %v369 = vld [vmem:[#allocation5 + $0x608] sm:$0xff]
        %v370 = vld [vmem:[#allocation5 + $0x610] sm:$0xff]
        %v371 = vld [vmem:[#allocation5 + $0x618] sm:$0xff]
        %v372 = vld [vmem:[#allocation5 + $0x620] sm:$0xff]
        %v373 = vld [vmem:[#allocation5 + $0x628] sm:$0xff]
        %v374 = vld [vmem:[#allocation5 + $0x630] sm:$0xff]
        %v375 = vld [vmem:[#allocation5 + $0x638] sm:$0xff]
        %v376 = vld [vmem:[#allocation5 + $0x640] sm:$0xff]
        %v377 = vld [vmem:[#allocation5 + $0x648] sm:$0xff]
        %v378 = vld [vmem:[#allocation5 + $0x650] sm:$0xff]
        %v379 = vld [vmem:[#allocation5 + $0x658] sm:$0xff]
        %v380 = vld [vmem:[#allocation5 + $0x660] sm:$0xff]
        %v381 = vld [vmem:[#allocation5 + $0x668] sm:$0xff]
        %v382 = vld [vmem:[#allocation5 + $0x670] sm:$0xff]
        %v383 = vld [vmem:[#allocation5 + $0x678] sm:$0xff]
        %v384 = vld [vmem:[#allocation5 + $0x680] sm:$0xff]
        %v385 = vld [vmem:[#allocation5 + $0x688] sm:$0xff]
        %v386 = vld [vmem:[#allocation5 + $0x690] sm:$0xff]
        %v387 = vld [vmem:[#allocation5 + $0x698] sm:$0xff]
        %v388 = vld [vmem:[#allocation5 + $0x6a0] sm:$0xff]
        %v389 = vld [vmem:[#allocation5 + $0x6a8] sm:$0xff]
        %v390 = vld [vmem:[#allocation5 + $0x6b0] sm:$0xff]
        %v391 = vld [vmem:[#allocation5 + $0x6b8] sm:$0xff]
        %v392 = vld [vmem:[#allocation5 + $0x6c0] sm:$0xff]
        %v393 = vld [vmem:[#allocation5 + $0x6c8] sm:$0xff]
        %v394 = vld [vmem:[#allocation5 + $0x6d0] sm:$0xff]
        %v395 = vld [vmem:[#allocation5 + $0x6d8] sm:$0xff]
        %v396 = vld [vmem:[#allocation5 + $0x6e0] sm:$0xff]
        %v397 = vld [vmem:[#allocation5 + $0x6e8] sm:$0xff]
        %v398 = vld [vmem:[#allocation5 + $0x6f0] sm:$0xff]
        %v399 = vld [vmem:[#allocation5 + $0x6f8] sm:$0xff]
        %v400 = vld [vmem:[#allocation5 + $0x700] sm:$0xff]
        %v401 = vld [vmem:[#allocation5 + $0x708] sm:$0xff]
        %v402 = vld [vmem:[#allocation5 + $0x710] sm:$0xff]
        %v403 = vld [vmem:[#allocation5 + $0x718] sm:$0xff]
        %v404 = vld [vmem:[#allocation5 + $0x720] sm:$0xff]
        %v405 = vld [vmem:[#allocation5 + $0x728] sm:$0xff]
        %v406 = vld [vmem:[#allocation5 + $0x730] sm:$0xff]
        %v407 = vld [vmem:[#allocation5 + $0x738] sm:$0xff]
        %v408 = vld [vmem:[#allocation5 + $0x740] sm:$0xff]
        %v409 = vld [vmem:[#allocation5 + $0x748] sm:$0xff]
        %v410 = vld [vmem:[#allocation5 + $0x750] sm:$0xff]
        %v411 = vld [vmem:[#allocation5 + $0x758] sm:$0xff]
        %v412 = vld [vmem:[#allocation5 + $0x760] sm:$0xff]
        %v413 = vld [vmem:[#allocation5 + $0x768] sm:$0xff]
        %v414 = vld [vmem:[#allocation5 + $0x770] sm:$0xff]
        %v415 = vld [vmem:[#allocation5 + $0x778] sm:$0xff]
        %v416 = vld [vmem:[#allocation5 + $0x780] sm:$0xff]
        %v417 = vld [vmem:[#allocation5 + $0x788] sm:$0xff]
        %v418 = vld [vmem:[#allocation5 + $0x790] sm:$0xff]
        %v419 = vld [vmem:[#allocation5 + $0x798] sm:$0xff]
        %v420 = vld [vmem:[#allocation5 + $0x7a0] sm:$0xff]
        %v421 = vld [vmem:[#allocation5 + $0x7a8] sm:$0xff]
        %v422 = vld [vmem:[#allocation5 + $0x7b0] sm:$0xff]
        %v423 = vld [vmem:[#allocation5 + $0x7b8] sm:$0xff]
        %v424 = vld [vmem:[#allocation5 + $0x7c0] sm:$0xff]
        %v425 = vld [vmem:[#allocation5 + $0x7c8] sm:$0xff]
        %v426 = vld [vmem:[#allocation5 + $0x7d0] sm:$0xff]
        %v427 = vld [vmem:[#allocation5 + $0x7d8] sm:$0xff]
        %v428 = vld [vmem:[#allocation5 + $0x7e0] sm:$0xff]
        %v429 = vld [vmem:[#allocation5 + $0x7e8] sm:$0xff]
        %v430 = vld [vmem:[#allocation5 + $0x7f0] sm:$0xff]
        %v431 = vld [vmem:[#allocation5 + $0x7f8] sm:$0xff]
        %v434 = vunpack.c.l.s4 1983009808
        %v435 = vunpack.c.0.s8 %v434
        %v436 = vlaneseq
        %v437 = vshrl.u32 %v436, 7
        %v438 = vsub.s32 %v435, %v437
        %v439 = vrot.slane %v175, %v438
        %v440 = vcombine.high %v439, %v439
        %v443 = vand.u32 %v297, 4294901760
        %444 = vmatprep.subr.mxu0 %v443
        %v445 = vand.u32 %v296, 4294901760
        %446 = vmatpush1.msra.mxu0 %v445
        %v447 = vand.u32 %v289, 4294901760
        %448 = vmatprep.subr.mxu0 %v447
        %v449 = vand.u32 %v288, 4294901760
        %450 = vmatpush1.msra.mxu0 %v449
        %v451 = vand.u32 %v281, 4294901760
        %452 = vmatprep.subr.mxu0 %v451
        %v453 = vand.u32 %v280, 4294901760
        %454 = vmatpush1.msra.mxu0 %v453
        %v455 = vand.u32 %v273, 4294901760
        %456 = vmatprep.subr.mxu0 %v455
        %v457 = vand.u32 %v272, 4294901760
        %458 = vmatpush1.msra.mxu0 %v457
        %v459 = vand.u32 %v265, 4294901760
        %460 = vmatprep.subr.mxu0 %v459
        %v461 = vand.u32 %v264, 4294901760
        %462 = vmatpush1.msra.mxu0 %v461
        %v463 = vand.u32 %v257, 4294901760
        %464 = vmatprep.subr.mxu0 %v463
        %v465 = vand.u32 %v256, 4294901760
        %466 = vmatpush1.msra.mxu0 %v465
        %v467 = vand.u32 %v249, 4294901760
        %468 = vmatprep.subr.mxu0 %v467
        %v469 = vand.u32 %v248, 4294901760
        %470 = vmatpush1.msra.mxu0 %v469
        %v471 = vand.u32 %v241, 4294901760
        %472 = vmatprep.subr.mxu0 %v471
        %v473 = vand.u32 %v240, 4294901760
        %474 = vmatpush1.msra.mxu0 %v473
        %v475 = vand.u32 %v233, 4294901760
        %476 = vmatprep.subr.mxu0 %v475
        %v477 = vand.u32 %v232, 4294901760
        %478 = vmatpush1.msra.mxu0 %v477
        %v479 = vand.u32 %v225, 4294901760
        %480 = vmatprep.subr.mxu0 %v479
        %v481 = vand.u32 %v224, 4294901760
        %482 = vmatpush1.msra.mxu0 %v481
        %v483 = vand.u32 %v217, 4294901760
        %484 = vmatprep.subr.mxu0 %v483
        %v485 = vand.u32 %v216, 4294901760
        %486 = vmatpush1.msra.mxu0 %v485
        %v487 = vand.u32 %v209, 4294901760
        %488 = vmatprep.subr.mxu0 %v487
        %v489 = vand.u32 %v208, 4294901760
        %490 = vmatpush1.msra.mxu0 %v489
        %v491 = vand.u32 %v201, 4294901760
        %492 = vmatprep.subr.mxu0 %v491
        %v493 = vand.u32 %v200, 4294901760
        %494 = vmatpush1.msra.mxu0 %v493
        %v495 = vand.u32 %v193, 4294901760
        %496 = vmatprep.subr.mxu0 %v495
        %v497 = vand.u32 %v192, 4294901760
        %498 = vmatpush1.msra.mxu0 %v497
        %v499 = vand.u32 %v185, 4294901760
        %500 = vmatprep.subr.mxu0 %v499
        %v501 = vand.u32 %v184, 4294901760
        %502 = vmatpush1.msra.mxu0 %v501
        %v503 = vand.u32 %v177, 4294901760
        %504 = vmatprep.subr.mxu0 %v503
        %v505 = vand.u32 %v176, 4294901760
        %506 = vmatpush1.msra.mxu0 %v505
        %v507 = vand.u32 %v425, 4294901760
        %508 = vmatprep.subr.mxu0 %v507
        %v509 = vand.u32 %v424, 4294901760
        %510 = vmatpush2.msra.mxu0 %v509
        %v511 = vand.u32 %v417, 4294901760
        %512 = vmatprep.subr.mxu0 %v511
        %v513 = vand.u32 %v416, 4294901760
        %514 = vmatpush2.msra.mxu0 %v513
        %v515 = vand.u32 %v409, 4294901760
        %516 = vmatprep.subr.mxu0 %v515
        %v517 = vand.u32 %v408, 4294901760
        %518 = vmatpush2.msra.mxu0 %v517
        %v519 = vand.u32 %v401, 4294901760
        %520 = vmatprep.subr.mxu0 %v519
        %v521 = vand.u32 %v400, 4294901760
        %522 = vmatpush2.msra.mxu0 %v521
        %v523 = vand.u32 %v393, 4294901760
        %524 = vmatprep.subr.mxu0 %v523
        %v525 = vand.u32 %v392, 4294901760
        %526 = vmatpush2.msra.mxu0 %v525
        %v527 = vand.u32 %v385, 4294901760
        %528 = vmatprep.subr.mxu0 %v527
        %v529 = vand.u32 %v384, 4294901760
        %530 = vmatpush2.msra.mxu0 %v529
        %v531 = vand.u32 %v377, 4294901760
        %532 = vmatprep.subr.mxu0 %v531
        %v533 = vand.u32 %v376, 4294901760
        %534 = vmatpush2.msra.mxu0 %v533
        %v535 = vand.u32 %v369, 4294901760
        %536 = vmatprep.subr.mxu0 %v535
        %v537 = vand.u32 %v368, 4294901760
        %538 = vmatpush2.msra.mxu0 %v537
        %v539 = vand.u32 %v361, 4294901760
        %540 = vmatprep.subr.mxu0 %v539
        %v541 = vand.u32 %v360, 4294901760
        %542 = vmatpush2.msra.mxu0 %v541
        %v543 = vand.u32 %v353, 4294901760
        %544 = vmatprep.subr.mxu0 %v543
        %v545 = vand.u32 %v352, 4294901760
        %546 = vmatpush2.msra.mxu0 %v545
        %v547 = vand.u32 %v345, 4294901760
        %548 = vmatprep.subr.mxu0 %v547
        %v549 = vand.u32 %v344, 4294901760
        %550 = vmatpush2.msra.mxu0 %v549
        %v551 = vand.u32 %v337, 4294901760
        %552 = vmatprep.subr.mxu0 %v551
        %v553 = vand.u32 %v336, 4294901760
        %554 = vmatpush2.msra.mxu0 %v553
        %v555 = vand.u32 %v329, 4294901760
        %556 = vmatprep.subr.mxu0 %v555
        %v557 = vand.u32 %v328, 4294901760
        %558 = vmatpush2.msra.mxu0 %v557
        %v559 = vand.u32 %v321, 4294901760
        %560 = vmatprep.subr.mxu0 %v559
        %v561 = vand.u32 %v320, 4294901760
        %562 = vmatpush2.msra.mxu0 %v561
        %v563 = vand.u32 %v313, 4294901760
        %564 = vmatprep.subr.mxu0 %v563
        %v565 = vand.u32 %v312, 4294901760
        %566 = vmatpush2.msra.mxu0 %v565
        %v567 = vand.u32 %v305, 4294901760
        %568 = vmatprep.subr.mxu0 %v567
        %v569 = vand.u32 %v304, 4294901760
        %570 = vmatpush2.msra.mxu0 %v569
        %v571 = vand.u32 %v440, 4294901760
        %v572 = vsub.f32 %v440, %v571
        %v573 = vand.u32 %v572, 4294901760
        %v574 = vsub.f32 %v572, %v573
        %v575 = vand.u32 %v574, 4294901760
        %576 = vmatprep.mubr.f32.mxu0 %v575
        %v577 = vand.u32 %v439, 4294901760
        %v578 = vsub.f32 %v439, %v577
        %v579 = vand.u32 %v578, 4294901760
        %v580 = vsub.f32 %v578, %v579
        %v581 = vand.u32 %v580, 4294901760
        %582 = vmatmul.mubr.f32.gmra.mxu0 %v581
        %v583 = vpop.f32.mrf.mxu0
        %v584 = vadd.f32 0.0, %v583
        %v585 = vpop.f32.mrf.mxu0
        %v586 = vadd.f32 0.0, %v585
        %587 = vdwg.mxu0
        %v588 = vand.u32 %v297, 4294901760
        %v589 = vsub.f32 %v297, %v588
        %v590 = vand.u32 %v589, 4294901760
        %v591 = vsub.f32 %v589, %v590
        %v592 = vand.u32 %v591, 4294901760
        %593 = vmatprep.subr.mxu0 %v592
        %v594 = vand.u32 %v296, 4294901760
        %v595 = vsub.f32 %v296, %v594
        %v596 = vand.u32 %v595, 4294901760
        %v597 = vsub.f32 %v595, %v596
        %v598 = vand.u32 %v597, 4294901760
        %599 = vmatpush1.msra.mxu0 %v598
        %v600 = vand.u32 %v289, 4294901760
        %v601 = vsub.f32 %v289, %v600
        %v602 = vand.u32 %v601, 4294901760
        %v603 = vsub.f32 %v601, %v602
        %v604 = vand.u32 %v603, 4294901760
        %605 = vmatprep.subr.mxu0 %v604
        %v606 = vand.u32 %v288, 4294901760
        %v607 = vsub.f32 %v288, %v606
        %v608 = vand.u32 %v607, 4294901760
        %v609 = vsub.f32 %v607, %v608
        %v610 = vand.u32 %v609, 4294901760
        %611 = vmatpush1.msra.mxu0 %v610
        %v612 = vand.u32 %v281, 4294901760
        %v613 = vsub.f32 %v281, %v612
        %v614 = vand.u32 %v613, 4294901760
        %v615 = vsub.f32 %v613, %v614
        %v616 = vand.u32 %v615, 4294901760
        %617 = vmatprep.subr.mxu0 %v616
        %v618 = vand.u32 %v280, 4294901760
        %v619 = vsub.f32 %v280, %v618
        %v620 = vand.u32 %v619, 4294901760
        %v621 = vsub.f32 %v619, %v620
        %v622 = vand.u32 %v621, 4294901760
        %623 = vmatpush1.msra.mxu0 %v622
        %v624 = vand.u32 %v273, 4294901760
        %v625 = vsub.f32 %v273, %v624
        %v626 = vand.u32 %v625, 4294901760
        %v627 = vsub.f32 %v625, %v626
        %v628 = vand.u32 %v627, 4294901760
        %629 = vmatprep.subr.mxu0 %v628
        %v630 = vand.u32 %v272, 4294901760
        %v631 = vsub.f32 %v272, %v630
        %v632 = vand.u32 %v631, 4294901760
        %v633 = vsub.f32 %v631, %v632
        %v634 = vand.u32 %v633, 4294901760
        %635 = vmatpush1.msra.mxu0 %v634
        %v636 = vand.u32 %v265, 4294901760
        %v637 = vsub.f32 %v265, %v636
        %v638 = vand.u32 %v637, 4294901760
        %v639 = vsub.f32 %v637, %v638
        %v640 = vand.u32 %v639, 4294901760
        %641 = vmatprep.subr.mxu0 %v640
        %v642 = vand.u32 %v264, 4294901760
        %v643 = vsub.f32 %v264, %v642
        %v644 = vand.u32 %v643, 4294901760
        %v645 = vsub.f32 %v643, %v644
        %v646 = vand.u32 %v645, 4294901760
        %647 = vmatpush1.msra.mxu0 %v646
        %v648 = vand.u32 %v257, 4294901760
        %v649 = vsub.f32 %v257, %v648
        %v650 = vand.u32 %v649, 4294901760
        %v651 = vsub.f32 %v649, %v650
        %v652 = vand.u32 %v651, 4294901760
        %653 = vmatprep.subr.mxu0 %v652
        %v654 = vand.u32 %v256, 4294901760
        %v655 = vsub.f32 %v256, %v654
        %v656 = vand.u32 %v655, 4294901760
        %v657 = vsub.f32 %v655, %v656
        %v658 = vand.u32 %v657, 4294901760
        %659 = vmatpush1.msra.mxu0 %v658
        %v660 = vand.u32 %v249, 4294901760
        %v661 = vsub.f32 %v249, %v660
        %v662 = vand.u32 %v661, 4294901760
        %v663 = vsub.f32 %v661, %v662
        %v664 = vand.u32 %v663, 4294901760
        %665 = vmatprep.subr.mxu0 %v664
        %v666 = vand.u32 %v248, 4294901760
        %v667 = vsub.f32 %v248, %v666
        %v668 = vand.u32 %v667, 4294901760
        %v669 = vsub.f32 %v667, %v668
        %v670 = vand.u32 %v669, 4294901760
        %671 = vmatpush1.msra.mxu0 %v670
        %v672 = vand.u32 %v241, 4294901760
        %v673 = vsub.f32 %v241, %v672
        %v674 = vand.u32 %v673, 4294901760
        %v675 = vsub.f32 %v673, %v674
        %v676 = vand.u32 %v675, 4294901760
        %677 = vmatprep.subr.mxu0 %v676
        %v678 = vand.u32 %v240, 4294901760
        %v679 = vsub.f32 %v240, %v678
        %v680 = vand.u32 %v679, 4294901760
        %v681 = vsub.f32 %v679, %v680
        %v682 = vand.u32 %v681, 4294901760
        %683 = vmatpush1.msra.mxu0 %v682
        %v684 = vand.u32 %v233, 4294901760
        %v685 = vsub.f32 %v233, %v684
        %v686 = vand.u32 %v685, 4294901760
        %v687 = vsub.f32 %v685, %v686
        %v688 = vand.u32 %v687, 4294901760
        %689 = vmatprep.subr.mxu0 %v688
        %v690 = vand.u32 %v232, 4294901760
        %v691 = vsub.f32 %v232, %v690
        %v692 = vand.u32 %v691, 4294901760
        %v693 = vsub.f32 %v691, %v692
        %v694 = vand.u32 %v693, 4294901760
        %695 = vmatpush1.msra.mxu0 %v694
        %v696 = vand.u32 %v225, 4294901760
        %v697 = vsub.f32 %v225, %v696
        %v698 = vand.u32 %v697, 4294901760
        %v699 = vsub.f32 %v697, %v698
        %v700 = vand.u32 %v699, 4294901760
        %701 = vmatprep.subr.mxu0 %v700
        %v702 = vand.u32 %v224, 4294901760
        %v703 = vsub.f32 %v224, %v702
        %v704 = vand.u32 %v703, 4294901760
        %v705 = vsub.f32 %v703, %v704
        %v706 = vand.u32 %v705, 4294901760
        %707 = vmatpush1.msra.mxu0 %v706
        %v708 = vand.u32 %v217, 4294901760
        %v709 = vsub.f32 %v217, %v708
        %v710 = vand.u32 %v709, 4294901760
        %v711 = vsub.f32 %v709, %v710
        %v712 = vand.u32 %v711, 4294901760
        %713 = vmatprep.subr.mxu0 %v712
        %v714 = vand.u32 %v216, 4294901760
        %v715 = vsub.f32 %v216, %v714
        %v716 = vand.u32 %v715, 4294901760
        %v717 = vsub.f32 %v715, %v716
        %v718 = vand.u32 %v717, 4294901760
        %719 = vmatpush1.msra.mxu0 %v718
        %v720 = vand.u32 %v209, 4294901760
        %v721 = vsub.f32 %v209, %v720
        %v722 = vand.u32 %v721, 4294901760
        %v723 = vsub.f32 %v721, %v722
        %v724 = vand.u32 %v723, 4294901760
        %725 = vmatprep.subr.mxu0 %v724
        %v726 = vand.u32 %v208, 4294901760
        %v727 = vsub.f32 %v208, %v726
        %v728 = vand.u32 %v727, 4294901760
        %v729 = vsub.f32 %v727, %v728
        %v730 = vand.u32 %v729, 4294901760
        %731 = vmatpush1.msra.mxu0 %v730
        %v732 = vand.u32 %v201, 4294901760
        %v733 = vsub.f32 %v201, %v732
        %v734 = vand.u32 %v733, 4294901760
        %v735 = vsub.f32 %v733, %v734
        %v736 = vand.u32 %v735, 4294901760
        %737 = vmatprep.subr.mxu0 %v736
        %v738 = vand.u32 %v200, 4294901760
        %v739 = vsub.f32 %v200, %v738
        %v740 = vand.u32 %v739, 4294901760
        %v741 = vsub.f32 %v739, %v740
        %v742 = vand.u32 %v741, 4294901760
        %743 = vmatpush1.msra.mxu0 %v742
        %v744 = vand.u32 %v193, 4294901760
        %v745 = vsub.f32 %v193, %v744
        %v746 = vand.u32 %v745, 4294901760
        %v747 = vsub.f32 %v745, %v746
        %v748 = vand.u32 %v747, 4294901760
        %749 = vmatprep.subr.mxu0 %v748
        %v750 = vand.u32 %v192, 4294901760
        %v751 = vsub.f32 %v192, %v750
        %v752 = vand.u32 %v751, 4294901760
        %v753 = vsub.f32 %v751, %v752
        %v754 = vand.u32 %v753, 4294901760
        %755 = vmatpush1.msra.mxu0 %v754
        %v756 = vand.u32 %v185, 4294901760
        %v757 = vsub.f32 %v185, %v756
        %v758 = vand.u32 %v757, 4294901760
        %v759 = vsub.f32 %v757, %v758
        %v760 = vand.u32 %v759, 4294901760
        %761 = vmatprep.subr.mxu0 %v760
        %v762 = vand.u32 %v184, 4294901760
        %v763 = vsub.f32 %v184, %v762
        %v764 = vand.u32 %v763, 4294901760
        %v765 = vsub.f32 %v763, %v764
        %v766 = vand.u32 %v765, 4294901760
        %767 = vmatpush1.msra.mxu0 %v766
        %v768 = vand.u32 %v177, 4294901760
        %v769 = vsub.f32 %v177, %v768
        %v770 = vand.u32 %v769, 4294901760
        %v771 = vsub.f32 %v769, %v770
        %v772 = vand.u32 %v771, 4294901760
        %773 = vmatprep.subr.mxu0 %v772
        %v774 = vand.u32 %v176, 4294901760
        %v775 = vsub.f32 %v176, %v774
        %v776 = vand.u32 %v775, 4294901760
        %v777 = vsub.f32 %v775, %v776
        %v778 = vand.u32 %v777, 4294901760
        %779 = vmatpush1.msra.mxu0 %v778
        %v780 = vand.u32 %v425, 4294901760
        %v781 = vsub.f32 %v425, %v780
        %v782 = vand.u32 %v781, 4294901760
        %v783 = vsub.f32 %v781, %v782
        %v784 = vand.u32 %v783, 4294901760
        %785 = vmatprep.subr.mxu0 %v784
        %v786 = vand.u32 %v424, 4294901760
        %v787 = vsub.f32 %v424, %v786
        %v788 = vand.u32 %v787, 4294901760
        %v789 = vsub.f32 %v787, %v788
        %v790 = vand.u32 %v789, 4294901760
        %791 = vmatpush2.msra.mxu0 %v790
        %v792 = vand.u32 %v417, 4294901760
        %v793 = vsub.f32 %v417, %v792
        %v794 = vand.u32 %v793, 4294901760
        %v795 = vsub.f32 %v793, %v794
        %v796 = vand.u32 %v795, 4294901760
        %797 = vmatprep.subr.mxu0 %v796
        %v798 = vand.u32 %v416, 4294901760
        %v799 = vsub.f32 %v416, %v798
        %v800 = vand.u32 %v799, 4294901760
        %v801 = vsub.f32 %v799, %v800
        %v802 = vand.u32 %v801, 4294901760
        %803 = vmatpush2.msra.mxu0 %v802
        %v804 = vand.u32 %v409, 4294901760
        %v805 = vsub.f32 %v409, %v804
        %v806 = vand.u32 %v805, 4294901760
        %v807 = vsub.f32 %v805, %v806
        %v808 = vand.u32 %v807, 4294901760
        %809 = vmatprep.subr.mxu0 %v808
        %v810 = vand.u32 %v408, 4294901760
        %v811 = vsub.f32 %v408, %v810
        %v812 = vand.u32 %v811, 4294901760
        %v813 = vsub.f32 %v811, %v812
        %v814 = vand.u32 %v813, 4294901760
        %815 = vmatpush2.msra.mxu0 %v814
        %v816 = vand.u32 %v401, 4294901760
        %v817 = vsub.f32 %v401, %v816
        %v818 = vand.u32 %v817, 4294901760
        %v819 = vsub.f32 %v817, %v818
        %v820 = vand.u32 %v819, 4294901760
        %821 = vmatprep.subr.mxu0 %v820
        %v822 = vand.u32 %v400, 4294901760
        %v823 = vsub.f32 %v400, %v822
        %v824 = vand.u32 %v823, 4294901760
        %v825 = vsub.f32 %v823, %v824
        %v826 = vand.u32 %v825, 4294901760
        %827 = vmatpush2.msra.mxu0 %v826
        %v828 = vand.u32 %v393, 4294901760
        %v829 = vsub.f32 %v393, %v828
        %v830 = vand.u32 %v829, 4294901760
        %v831 = vsub.f32 %v829, %v830
        %v832 = vand.u32 %v831, 4294901760
        %833 = vmatprep.subr.mxu0 %v832
        %v834 = vand.u32 %v392, 4294901760
        %v835 = vsub.f32 %v392, %v834
        %v836 = vand.u32 %v835, 4294901760
        %v837 = vsub.f32 %v835, %v836
        %v838 = vand.u32 %v837, 4294901760
        %839 = vmatpush2.msra.mxu0 %v838
        %v840 = vand.u32 %v385, 4294901760
        %v841 = vsub.f32 %v385, %v840
        %v842 = vand.u32 %v841, 4294901760
        %v843 = vsub.f32 %v841, %v842
        %v844 = vand.u32 %v843, 4294901760
        %845 = vmatprep.subr.mxu0 %v844
        %v846 = vand.u32 %v384, 4294901760
        %v847 = vsub.f32 %v384, %v846
        %v848 = vand.u32 %v847, 4294901760
        %v849 = vsub.f32 %v847, %v848
        %v850 = vand.u32 %v849, 4294901760
        %851 = vmatpush2.msra.mxu0 %v850
        %v852 = vand.u32 %v377, 4294901760
        %v853 = vsub.f32 %v377, %v852
        %v854 = vand.u32 %v853, 4294901760
        %v855 = vsub.f32 %v853, %v854
        %v856 = vand.u32 %v855, 4294901760
        %857 = vmatprep.subr.mxu0 %v856
        %v858 = vand.u32 %v376, 4294901760
        %v859 = vsub.f32 %v376, %v858
        %v860 = vand.u32 %v859, 4294901760
        %v861 = vsub.f32 %v859, %v860
        %v862 = vand.u32 %v861, 4294901760
        %863 = vmatpush2.msra.mxu0 %v862
        %v864 = vand.u32 %v369, 4294901760
        %v865 = vsub.f32 %v369, %v864
        %v866 = vand.u32 %v865, 4294901760
        %v867 = vsub.f32 %v865, %v866
        %v868 = vand.u32 %v867, 4294901760
        %869 = vmatprep.subr.mxu0 %v868
        %v870 = vand.u32 %v368, 4294901760
        %v871 = vsub.f32 %v368, %v870
        %v872 = vand.u32 %v871, 4294901760
        %v873 = vsub.f32 %v871, %v872
        %v874 = vand.u32 %v873, 4294901760
        %875 = vmatpush2.msra.mxu0 %v874
        %v876 = vand.u32 %v361, 4294901760
        %v877 = vsub.f32 %v361, %v876
        %v878 = vand.u32 %v877, 4294901760
        %v879 = vsub.f32 %v877, %v878
        %v880 = vand.u32 %v879, 4294901760
        %881 = vmatprep.subr.mxu0 %v880
        %v882 = vand.u32 %v360, 4294901760
        %v883 = vsub.f32 %v360, %v882
        %v884 = vand.u32 %v883, 4294901760
        %v885 = vsub.f32 %v883, %v884
        %v886 = vand.u32 %v885, 4294901760
        %887 = vmatpush2.msra.mxu0 %v886
        %v888 = vand.u32 %v353, 4294901760
        %v889 = vsub.f32 %v353, %v888
        %v890 = vand.u32 %v889, 4294901760
        %v891 = vsub.f32 %v889, %v890
        %v892 = vand.u32 %v891, 4294901760
        %893 = vmatprep.subr.mxu0 %v892
        %v894 = vand.u32 %v352, 4294901760
        %v895 = vsub.f32 %v352, %v894
        %v896 = vand.u32 %v895, 4294901760
        %v897 = vsub.f32 %v895, %v896
        %v898 = vand.u32 %v897, 4294901760
        %899 = vmatpush2.msra.mxu0 %v898
        %v900 = vand.u32 %v345, 4294901760
        %v901 = vsub.f32 %v345, %v900
        %v902 = vand.u32 %v901, 4294901760
        %v903 = vsub.f32 %v901, %v902
        %v904 = vand.u32 %v903, 4294901760
        %905 = vmatprep.subr.mxu0 %v904
        %v906 = vand.u32 %v344, 4294901760
        %v907 = vsub.f32 %v344, %v906
        %v908 = vand.u32 %v907, 4294901760
        %v909 = vsub.f32 %v907, %v908
        %v910 = vand.u32 %v909, 4294901760
        %911 = vmatpush2.msra.mxu0 %v910
        %v912 = vand.u32 %v337, 4294901760
        %v913 = vsub.f32 %v337, %v912
        %v914 = vand.u32 %v913, 4294901760
        %v915 = vsub.f32 %v913, %v914
        %v916 = vand.u32 %v915, 4294901760
        %917 = vmatprep.subr.mxu0 %v916
        %v918 = vand.u32 %v336, 4294901760
        %v919 = vsub.f32 %v336, %v918
        %v920 = vand.u32 %v919, 4294901760
        %v921 = vsub.f32 %v919, %v920
        %v922 = vand.u32 %v921, 4294901760
        %923 = vmatpush2.msra.mxu0 %v922
        %v924 = vand.u32 %v329, 4294901760
        %v925 = vsub.f32 %v329, %v924
        %v926 = vand.u32 %v925, 4294901760
        %v927 = vsub.f32 %v925, %v926
        %v928 = vand.u32 %v927, 4294901760
        %929 = vmatprep.subr.mxu0 %v928
        %v930 = vand.u32 %v328, 4294901760
        %v931 = vsub.f32 %v328, %v930
        %v932 = vand.u32 %v931, 4294901760
        %v933 = vsub.f32 %v931, %v932
        %v934 = vand.u32 %v933, 4294901760
        %935 = vmatpush2.msra.mxu0 %v934
        %v936 = vand.u32 %v321, 4294901760
        %v937 = vsub.f32 %v321, %v936
        %v938 = vand.u32 %v937, 4294901760
        %v939 = vsub.f32 %v937, %v938
        %v940 = vand.u32 %v939, 4294901760
        %941 = vmatprep.subr.mxu0 %v940
        %v942 = vand.u32 %v320, 4294901760
        %v943 = vsub.f32 %v320, %v942
        %v944 = vand.u32 %v943, 4294901760
        %v945 = vsub.f32 %v943, %v944
        %v946 = vand.u32 %v945, 4294901760
        %947 = vmatpush2.msra.mxu0 %v946
        %v948 = vand.u32 %v313, 4294901760
        %v949 = vsub.f32 %v313, %v948
        %v950 = vand.u32 %v949, 4294901760
        %v951 = vsub.f32 %v949, %v950
        %v952 = vand.u32 %v951, 4294901760
        %953 = vmatprep.subr.mxu0 %v952
        %v954 = vand.u32 %v312, 4294901760
        %v955 = vsub.f32 %v312, %v954
        %v956 = vand.u32 %v955, 4294901760
        %v957 = vsub.f32 %v955, %v956
        %v958 = vand.u32 %v957, 4294901760
        %959 = vmatpush2.msra.mxu0 %v958
        %v960 = vand.u32 %v305, 4294901760
        %v961 = vsub.f32 %v305, %v960
        %v962 = vand.u32 %v961, 4294901760
        %v963 = vsub.f32 %v961, %v962
        %v964 = vand.u32 %v963, 4294901760
        %965 = vmatprep.subr.mxu0 %v964
        %v966 = vand.u32 %v304, 4294901760
        %v967 = vsub.f32 %v304, %v966
        %v968 = vand.u32 %v967, 4294901760
        %v969 = vsub.f32 %v967, %v968
        %v970 = vand.u32 %v969, 4294901760
        %971 = vmatpush2.msra.mxu0 %v970
        %v972 = vand.u32 %v440, 4294901760
        %973 = vmatprep.mubr.f32.mxu0 %v972
        %v974 = vand.u32 %v439, 4294901760
        %975 = vmatmul.mubr.f32.gmra.mxu0 %v974
        %v976 = vpop.f32.mrf.mxu0
        %v977 = vadd.f32 %v584, %v976
        %v978 = vpop.f32.mrf.mxu0
        %v979 = vadd.f32 %v586, %v978
        %980 = vdwg.mxu0
        %v981 = vand.u32 %v297, 4294901760
        %v982 = vsub.f32 %v297, %v981
        %983 = vmatprep.subr.mxu0 %v982
        %v984 = vand.u32 %v296, 4294901760
        %v985 = vsub.f32 %v296, %v984
        %986 = vmatpush1.msra.mxu0 %v985
        %v987 = vand.u32 %v289, 4294901760
        %v988 = vsub.f32 %v289, %v987
        %989 = vmatprep.subr.mxu0 %v988
        %v990 = vand.u32 %v288, 4294901760
        %v991 = vsub.f32 %v288, %v990
        %992 = vmatpush1.msra.mxu0 %v991
        %v993 = vand.u32 %v281, 4294901760
        %v994 = vsub.f32 %v281, %v993
        %995 = vmatprep.subr.mxu0 %v994
        %v996 = vand.u32 %v280, 4294901760
        %v997 = vsub.f32 %v280, %v996
        %998 = vmatpush1.msra.mxu0 %v997
        %v999 = vand.u32 %v273, 4294901760
        %v1000 = vsub.f32 %v273, %v999
        %1001 = vmatprep.subr.mxu0 %v1000
        %v1002 = vand.u32 %v272, 4294901760
        %v1003 = vsub.f32 %v272, %v1002
        %1004 = vmatpush1.msra.mxu0 %v1003
        %v1005 = vand.u32 %v265, 4294901760
        %v1006 = vsub.f32 %v265, %v1005
        %1007 = vmatprep.subr.mxu0 %v1006
        %v1008 = vand.u32 %v264, 4294901760
        %v1009 = vsub.f32 %v264, %v1008
        %1010 = vmatpush1.msra.mxu0 %v1009
        %v1011 = vand.u32 %v257, 4294901760
        %v1012 = vsub.f32 %v257, %v1011
        %1013 = vmatprep.subr.mxu0 %v1012
        %v1014 = vand.u32 %v256, 4294901760
        %v1015 = vsub.f32 %v256, %v1014
        %1016 = vmatpush1.msra.mxu0 %v1015
        %v1017 = vand.u32 %v249, 4294901760
        %v1018 = vsub.f32 %v249, %v1017
        %1019 = vmatprep.subr.mxu0 %v1018
        %v1020 = vand.u32 %v248, 4294901760
        %v1021 = vsub.f32 %v248, %v1020
        %1022 = vmatpush1.msra.mxu0 %v1021
        %v1023 = vand.u32 %v241, 4294901760
        %v1024 = vsub.f32 %v241, %v1023
        %1025 = vmatprep.subr.mxu0 %v1024
        %v1026 = vand.u32 %v240, 4294901760
        %v1027 = vsub.f32 %v240, %v1026
        %1028 = vmatpush1.msra.mxu0 %v1027
        %v1029 = vand.u32 %v233, 4294901760
        %v1030 = vsub.f32 %v233, %v1029
        %1031 = vmatprep.subr.mxu0 %v1030
        %v1032 = vand.u32 %v232, 4294901760
        %v1033 = vsub.f32 %v232, %v1032
        %1034 = vmatpush1.msra.mxu0 %v1033
        %v1035 = vand.u32 %v225, 4294901760
        %v1036 = vsub.f32 %v225, %v1035
        %1037 = vmatprep.subr.mxu0 %v1036
        %v1038 = vand.u32 %v224, 4294901760
        %v1039 = vsub.f32 %v224, %v1038
        %1040 = vmatpush1.msra.mxu0 %v1039
        %v1041 = vand.u32 %v217, 4294901760
        %v1042 = vsub.f32 %v217, %v1041
        %1043 = vmatprep.subr.mxu0 %v1042
        %v1044 = vand.u32 %v216, 4294901760
        %v1045 = vsub.f32 %v216, %v1044
        %1046 = vmatpush1.msra.mxu0 %v1045
        %v1047 = vand.u32 %v209, 4294901760
        %v1048 = vsub.f32 %v209, %v1047
        %1049 = vmatprep.subr.mxu0 %v1048
        %v1050 = vand.u32 %v208, 4294901760
        %v1051 = vsub.f32 %v208, %v1050
        %1052 = vmatpush1.msra.mxu0 %v1051
        %v1053 = vand.u32 %v201, 4294901760
        %v1054 = vsub.f32 %v201, %v1053
        %1055 = vmatprep.subr.mxu0 %v1054
        %v1056 = vand.u32 %v200, 4294901760
        %v1057 = vsub.f32 %v200, %v1056
        %1058 = vmatpush1.msra.mxu0 %v1057
        %v1059 = vand.u32 %v193, 4294901760
        %v1060 = vsub.f32 %v193, %v1059
        %1061 = vmatprep.subr.mxu0 %v1060
        %v1062 = vand.u32 %v192, 4294901760
        %v1063 = vsub.f32 %v192, %v1062
        %1064 = vmatpush1.msra.mxu0 %v1063
        %v1065 = vand.u32 %v185, 4294901760
        %v1066 = vsub.f32 %v185, %v1065
        %1067 = vmatprep.subr.mxu0 %v1066
        %v1068 = vand.u32 %v184, 4294901760
        %v1069 = vsub.f32 %v184, %v1068
        %1070 = vmatpush1.msra.mxu0 %v1069
        %v1071 = vand.u32 %v177, 4294901760
        %v1072 = vsub.f32 %v177, %v1071
        %1073 = vmatprep.subr.mxu0 %v1072
        %v1074 = vand.u32 %v176, 4294901760
        %v1075 = vsub.f32 %v176, %v1074
        %1076 = vmatpush1.msra.mxu0 %v1075
        %v1077 = vand.u32 %v425, 4294901760
        %v1078 = vsub.f32 %v425, %v1077
        %1079 = vmatprep.subr.mxu0 %v1078
        %v1080 = vand.u32 %v424, 4294901760
        %v1081 = vsub.f32 %v424, %v1080
        %1082 = vmatpush2.msra.mxu0 %v1081
        %v1083 = vand.u32 %v417, 4294901760
        %v1084 = vsub.f32 %v417, %v1083
        %1085 = vmatprep.subr.mxu0 %v1084
        %v1086 = vand.u32 %v416, 4294901760
        %v1087 = vsub.f32 %v416, %v1086
        %1088 = vmatpush2.msra.mxu0 %v1087
        %v1089 = vand.u32 %v409, 4294901760
        %v1090 = vsub.f32 %v409, %v1089
        %1091 = vmatprep.subr.mxu0 %v1090
        %v1092 = vand.u32 %v408, 4294901760
        %v1093 = vsub.f32 %v408, %v1092
        %1094 = vmatpush2.msra.mxu0 %v1093
        %v1095 = vand.u32 %v401, 4294901760
        %v1096 = vsub.f32 %v401, %v1095
        %1097 = vmatprep.subr.mxu0 %v1096
        %v1098 = vand.u32 %v400, 4294901760
        %v1099 = vsub.f32 %v400, %v1098
        %1100 = vmatpush2.msra.mxu0 %v1099
        %v1101 = vand.u32 %v393, 4294901760
        %v1102 = vsub.f32 %v393, %v1101
        %1103 = vmatprep.subr.mxu0 %v1102
        %v1104 = vand.u32 %v392, 4294901760
        %v1105 = vsub.f32 %v392, %v1104
        %1106 = vmatpush2.msra.mxu0 %v1105
        %v1107 = vand.u32 %v385, 4294901760
        %v1108 = vsub.f32 %v385, %v1107
        %1109 = vmatprep.subr.mxu0 %v1108
        %v1110 = vand.u32 %v384, 4294901760
        %v1111 = vsub.f32 %v384, %v1110
        %1112 = vmatpush2.msra.mxu0 %v1111
        %v1113 = vand.u32 %v377, 4294901760
        %v1114 = vsub.f32 %v377, %v1113
        %1115 = vmatprep.subr.mxu0 %v1114
        %v1116 = vand.u32 %v376, 4294901760
        %v1117 = vsub.f32 %v376, %v1116
        %1118 = vmatpush2.msra.mxu0 %v1117
        %v1119 = vand.u32 %v369, 4294901760
        %v1120 = vsub.f32 %v369, %v1119
        %1121 = vmatprep.subr.mxu0 %v1120
        %v1122 = vand.u32 %v368, 4294901760
        %v1123 = vsub.f32 %v368, %v1122
        %1124 = vmatpush2.msra.mxu0 %v1123
        %v1125 = vand.u32 %v361, 4294901760
        %v1126 = vsub.f32 %v361, %v1125
        %1127 = vmatprep.subr.mxu0 %v1126
        %v1128 = vand.u32 %v360, 4294901760
        %v1129 = vsub.f32 %v360, %v1128
        %1130 = vmatpush2.msra.mxu0 %v1129
        %v1131 = vand.u32 %v353, 4294901760
        %v1132 = vsub.f32 %v353, %v1131
        %1133 = vmatprep.subr.mxu0 %v1132
        %v1134 = vand.u32 %v352, 4294901760
        %v1135 = vsub.f32 %v352, %v1134
        %1136 = vmatpush2.msra.mxu0 %v1135
        %v1137 = vand.u32 %v345, 4294901760
        %v1138 = vsub.f32 %v345, %v1137
        %1139 = vmatprep.subr.mxu0 %v1138
        %v1140 = vand.u32 %v344, 4294901760
        %v1141 = vsub.f32 %v344, %v1140
        %1142 = vmatpush2.msra.mxu0 %v1141
        %v1143 = vand.u32 %v337, 4294901760
        %v1144 = vsub.f32 %v337, %v1143
        %1145 = vmatprep.subr.mxu0 %v1144
        %v1146 = vand.u32 %v336, 4294901760
        %v1147 = vsub.f32 %v336, %v1146
        %1148 = vmatpush2.msra.mxu0 %v1147
        %v1149 = vand.u32 %v329, 4294901760
        %v1150 = vsub.f32 %v329, %v1149
        %1151 = vmatprep.subr.mxu0 %v1150
        %v1152 = vand.u32 %v328, 4294901760
        %v1153 = vsub.f32 %v328, %v1152
        %1154 = vmatpush2.msra.mxu0 %v1153
        %v1155 = vand.u32 %v321, 4294901760
        %v1156 = vsub.f32 %v321, %v1155
        %1157 = vmatprep.subr.mxu0 %v1156
        %v1158 = vand.u32 %v320, 4294901760
        %v1159 = vsub.f32 %v320, %v1158
        %1160 = vmatpush2.msra.mxu0 %v1159
        %v1161 = vand.u32 %v313, 4294901760
        %v1162 = vsub.f32 %v313, %v1161
        %1163 = vmatprep.subr.mxu0 %v1162
        %v1164 = vand.u32 %v312, 4294901760
        %v1165 = vsub.f32 %v312, %v1164
        %1166 = vmatpush2.msra.mxu0 %v1165
        %v1167 = vand.u32 %v305, 4294901760
        %v1168 = vsub.f32 %v305, %v1167
        %1169 = vmatprep.subr.mxu0 %v1168
        %v1170 = vand.u32 %v304, 4294901760
        %v1171 = vsub.f32 %v304, %v1170
        %1172 = vmatpush2.msra.mxu0 %v1171
        %v1173 = vand.u32 %v440, 4294901760
        %v1174 = vsub.f32 %v440, %v1173
        %1175 = vmatprep.mubr.f32.mxu0 %v1174
        %v1176 = vand.u32 %v439, 4294901760
        %v1177 = vsub.f32 %v439, %v1176
        %1178 = vmatmul.mubr.f32.gmra.mxu0 %v1177
        %v1179 = vpop.f32.mrf.mxu0
        %v1180 = vadd.f32 %v977, %v1179
        %v1181 = vpop.f32.mrf.mxu0
        %v1182 = vadd.f32 %v979, %v1181
        %1183 = vdwg.mxu0
        %v1184 = vand.u32 %v297, 4294901760
        %1185 = vmatprep.subr.mxu0 %v1184
        %v1186 = vand.u32 %v296, 4294901760
        %1187 = vmatpush1.msra.mxu0 %v1186
        %v1188 = vand.u32 %v289, 4294901760
        %1189 = vmatprep.subr.mxu0 %v1188
        %v1190 = vand.u32 %v288, 4294901760
        %1191 = vmatpush1.msra.mxu0 %v1190
        %v1192 = vand.u32 %v281, 4294901760
        %1193 = vmatprep.subr.mxu0 %v1192
        %v1194 = vand.u32 %v280, 4294901760
        %1195 = vmatpush1.msra.mxu0 %v1194
        %v1196 = vand.u32 %v273, 4294901760
        %1197 = vmatprep.subr.mxu0 %v1196
        %v1198 = vand.u32 %v272, 4294901760
        %1199 = vmatpush1.msra.mxu0 %v1198
        %v1200 = vand.u32 %v265, 4294901760
        %1201 = vmatprep.subr.mxu0 %v1200
        %v1202 = vand.u32 %v264, 4294901760
        %1203 = vmatpush1.msra.mxu0 %v1202
        %v1204 = vand.u32 %v257, 4294901760
        %1205 = vmatprep.subr.mxu0 %v1204
        %v1206 = vand.u32 %v256, 4294901760
        %1207 = vmatpush1.msra.mxu0 %v1206
        %v1208 = vand.u32 %v249, 4294901760
        %1209 = vmatprep.subr.mxu0 %v1208
        %v1210 = vand.u32 %v248, 4294901760
        %1211 = vmatpush1.msra.mxu0 %v1210
        %v1212 = vand.u32 %v241, 4294901760
        %1213 = vmatprep.subr.mxu0 %v1212
        %v1214 = vand.u32 %v240, 4294901760
        %1215 = vmatpush1.msra.mxu0 %v1214
        %v1216 = vand.u32 %v233, 4294901760
        %1217 = vmatprep.subr.mxu0 %v1216
        %v1218 = vand.u32 %v232, 4294901760
        %1219 = vmatpush1.msra.mxu0 %v1218
        %v1220 = vand.u32 %v225, 4294901760
        %1221 = vmatprep.subr.mxu0 %v1220
        %v1222 = vand.u32 %v224, 4294901760
        %1223 = vmatpush1.msra.mxu0 %v1222
        %v1224 = vand.u32 %v217, 4294901760
        %1225 = vmatprep.subr.mxu0 %v1224
        %v1226 = vand.u32 %v216, 4294901760
        %1227 = vmatpush1.msra.mxu0 %v1226
        %v1228 = vand.u32 %v209, 4294901760
        %1229 = vmatprep.subr.mxu0 %v1228
        %v1230 = vand.u32 %v208, 4294901760
        %1231 = vmatpush1.msra.mxu0 %v1230
        %v1232 = vand.u32 %v201, 4294901760
        %1233 = vmatprep.subr.mxu0 %v1232
        %v1234 = vand.u32 %v200, 4294901760
        %1235 = vmatpush1.msra.mxu0 %v1234
        %v1236 = vand.u32 %v193, 4294901760
        %1237 = vmatprep.subr.mxu0 %v1236
        %v1238 = vand.u32 %v192, 4294901760
        %1239 = vmatpush1.msra.mxu0 %v1238
        %v1240 = vand.u32 %v185, 4294901760
        %1241 = vmatprep.subr.mxu0 %v1240
        %v1242 = vand.u32 %v184, 4294901760
        %1243 = vmatpush1.msra.mxu0 %v1242
        %v1244 = vand.u32 %v177, 4294901760
        %1245 = vmatprep.subr.mxu0 %v1244
        %v1246 = vand.u32 %v176, 4294901760
        %1247 = vmatpush1.msra.mxu0 %v1246
        %v1248 = vand.u32 %v425, 4294901760
        %1249 = vmatprep.subr.mxu0 %v1248
        %v1250 = vand.u32 %v424, 4294901760
        %1251 = vmatpush2.msra.mxu0 %v1250
        %v1252 = vand.u32 %v417, 4294901760
        %1253 = vmatprep.subr.mxu0 %v1252
        %v1254 = vand.u32 %v416, 4294901760
        %1255 = vmatpush2.msra.mxu0 %v1254
        %v1256 = vand.u32 %v409, 4294901760
        %1257 = vmatprep.subr.mxu0 %v1256
        %v1258 = vand.u32 %v408, 4294901760
        %1259 = vmatpush2.msra.mxu0 %v1258
        %v1260 = vand.u32 %v401, 4294901760
        %1261 = vmatprep.subr.mxu0 %v1260
        %v1262 = vand.u32 %v400, 4294901760
        %1263 = vmatpush2.msra.mxu0 %v1262
        %v1264 = vand.u32 %v393, 4294901760
        %1265 = vmatprep.subr.mxu0 %v1264
        %v1266 = vand.u32 %v392, 4294901760
        %1267 = vmatpush2.msra.mxu0 %v1266
        %v1268 = vand.u32 %v385, 4294901760
        %1269 = vmatprep.subr.mxu0 %v1268
        %v1270 = vand.u32 %v384, 4294901760
        %1271 = vmatpush2.msra.mxu0 %v1270
        %v1272 = vand.u32 %v377, 4294901760
        %1273 = vmatprep.subr.mxu0 %v1272
        %v1274 = vand.u32 %v376, 4294901760
        %1275 = vmatpush2.msra.mxu0 %v1274
        %v1276 = vand.u32 %v369, 4294901760
        %1277 = vmatprep.subr.mxu0 %v1276
        %v1278 = vand.u32 %v368, 4294901760
        %1279 = vmatpush2.msra.mxu0 %v1278
        %v1280 = vand.u32 %v361, 4294901760
        %1281 = vmatprep.subr.mxu0 %v1280
        %v1282 = vand.u32 %v360, 4294901760
        %1283 = vmatpush2.msra.mxu0 %v1282
        %v1284 = vand.u32 %v353, 4294901760
        %1285 = vmatprep.subr.mxu0 %v1284
        %v1286 = vand.u32 %v352, 4294901760
        %1287 = vmatpush2.msra.mxu0 %v1286
        %v1288 = vand.u32 %v345, 4294901760
        %1289 = vmatprep.subr.mxu0 %v1288
        %v1290 = vand.u32 %v344, 4294901760
        %1291 = vmatpush2.msra.mxu0 %v1290
        %v1292 = vand.u32 %v337, 4294901760
        %1293 = vmatprep.subr.mxu0 %v1292
        %v1294 = vand.u32 %v336, 4294901760
        %1295 = vmatpush2.msra.mxu0 %v1294
        %v1296 = vand.u32 %v329, 4294901760
        %1297 = vmatprep.subr.mxu0 %v1296
        %v1298 = vand.u32 %v328, 4294901760
        %1299 = vmatpush2.msra.mxu0 %v1298
        %v1300 = vand.u32 %v321, 4294901760
        %1301 = vmatprep.subr.mxu0 %v1300
        %v1302 = vand.u32 %v320, 4294901760
        %1303 = vmatpush2.msra.mxu0 %v1302
        %v1304 = vand.u32 %v313, 4294901760
        %1305 = vmatprep.subr.mxu0 %v1304
        %v1306 = vand.u32 %v312, 4294901760
        %1307 = vmatpush2.msra.mxu0 %v1306
        %v1308 = vand.u32 %v305, 4294901760
        %1309 = vmatprep.subr.mxu0 %v1308
        %v1310 = vand.u32 %v304, 4294901760
        %1311 = vmatpush2.msra.mxu0 %v1310
        %v1312 = vand.u32 %v440, 4294901760
        %v1313 = vsub.f32 %v440, %v1312
        %v1314 = vand.u32 %v1313, 4294901760
        %1315 = vmatprep.mubr.f32.mxu0 %v1314
        %v1316 = vand.u32 %v439, 4294901760
        %v1317 = vsub.f32 %v439, %v1316
        %v1318 = vand.u32 %v1317, 4294901760
        %1319 = vmatmul.mubr.f32.gmra.mxu0 %v1318
        %v1320 = vpop.f32.mrf.mxu0
        %v1321 = vadd.f32 %v1180, %v1320
        %v1322 = vpop.f32.mrf.mxu0
        %v1323 = vadd.f32 %v1182, %v1322
        %1324 = vdwg.mxu0
        %v1325 = vand.u32 %v297, 4294901760
        %v1326 = vsub.f32 %v297, %v1325
        %v1327 = vand.u32 %v1326, 4294901760
        %1328 = vmatprep.subr.mxu0 %v1327
        %v1329 = vand.u32 %v296, 4294901760
        %v1330 = vsub.f32 %v296, %v1329
        %v1331 = vand.u32 %v1330, 4294901760
        %1332 = vmatpush1.msra.mxu0 %v1331
        %v1333 = vand.u32 %v289, 4294901760
        %v1334 = vsub.f32 %v289, %v1333
        %v1335 = vand.u32 %v1334, 4294901760
        %1336 = vmatprep.subr.mxu0 %v1335
        %v1337 = vand.u32 %v288, 4294901760
        %v1338 = vsub.f32 %v288, %v1337
        %v1339 = vand.u32 %v1338, 4294901760
        %1340 = vmatpush1.msra.mxu0 %v1339
        %v1341 = vand.u32 %v281, 4294901760
        %v1342 = vsub.f32 %v281, %v1341
        %v1343 = vand.u32 %v1342, 4294901760
        %1344 = vmatprep.subr.mxu0 %v1343
        %v1345 = vand.u32 %v280, 4294901760
        %v1346 = vsub.f32 %v280, %v1345
        %v1347 = vand.u32 %v1346, 4294901760
        %1348 = vmatpush1.msra.mxu0 %v1347
        %v1349 = vand.u32 %v273, 4294901760
        %v1350 = vsub.f32 %v273, %v1349
        %v1351 = vand.u32 %v1350, 4294901760
        %1352 = vmatprep.subr.mxu0 %v1351
        %v1353 = vand.u32 %v272, 4294901760
        %v1354 = vsub.f32 %v272, %v1353
        %v1355 = vand.u32 %v1354, 4294901760
        %1356 = vmatpush1.msra.mxu0 %v1355
        %v1357 = vand.u32 %v265, 4294901760
        %v1358 = vsub.f32 %v265, %v1357
        %v1359 = vand.u32 %v1358, 4294901760
        %1360 = vmatprep.subr.mxu0 %v1359
        %v1361 = vand.u32 %v264, 4294901760
        %v1362 = vsub.f32 %v264, %v1361
        %v1363 = vand.u32 %v1362, 4294901760
        %1364 = vmatpush1.msra.mxu0 %v1363
        %v1365 = vand.u32 %v257, 4294901760
        %v1366 = vsub.f32 %v257, %v1365
        %v1367 = vand.u32 %v1366, 4294901760
        %1368 = vmatprep.subr.mxu0 %v1367
        %v1369 = vand.u32 %v256, 4294901760
        %v1370 = vsub.f32 %v256, %v1369
        %v1371 = vand.u32 %v1370, 4294901760
        %1372 = vmatpush1.msra.mxu0 %v1371
        %v1373 = vand.u32 %v249, 4294901760
        %v1374 = vsub.f32 %v249, %v1373
        %v1375 = vand.u32 %v1374, 4294901760
        %1376 = vmatprep.subr.mxu0 %v1375
        %v1377 = vand.u32 %v248, 4294901760
        %v1378 = vsub.f32 %v248, %v1377
        %v1379 = vand.u32 %v1378, 4294901760
        %1380 = vmatpush1.msra.mxu0 %v1379
        %v1381 = vand.u32 %v241, 4294901760
        %v1382 = vsub.f32 %v241, %v1381
        %v1383 = vand.u32 %v1382, 4294901760
        %1384 = vmatprep.subr.mxu0 %v1383
        %v1385 = vand.u32 %v240, 4294901760
        %v1386 = vsub.f32 %v240, %v1385
        %v1387 = vand.u32 %v1386, 4294901760
        %1388 = vmatpush1.msra.mxu0 %v1387
        %v1389 = vand.u32 %v233, 4294901760
        %v1390 = vsub.f32 %v233, %v1389
        %v1391 = vand.u32 %v1390, 4294901760
        %1392 = vmatprep.subr.mxu0 %v1391
        %v1393 = vand.u32 %v232, 4294901760
        %v1394 = vsub.f32 %v232, %v1393
        %v1395 = vand.u32 %v1394, 4294901760
        %1396 = vmatpush1.msra.mxu0 %v1395
        %v1397 = vand.u32 %v225, 4294901760
        %v1398 = vsub.f32 %v225, %v1397
        %v1399 = vand.u32 %v1398, 4294901760
        %1400 = vmatprep.subr.mxu0 %v1399
        %v1401 = vand.u32 %v224, 4294901760
        %v1402 = vsub.f32 %v224, %v1401
        %v1403 = vand.u32 %v1402, 4294901760
        %1404 = vmatpush1.msra.mxu0 %v1403
        %v1405 = vand.u32 %v217, 4294901760
        %v1406 = vsub.f32 %v217, %v1405
        %v1407 = vand.u32 %v1406, 4294901760
        %1408 = vmatprep.subr.mxu0 %v1407
        %v1409 = vand.u32 %v216, 4294901760
        %v1410 = vsub.f32 %v216, %v1409
        %v1411 = vand.u32 %v1410, 4294901760
        %1412 = vmatpush1.msra.mxu0 %v1411
        %v1413 = vand.u32 %v209, 4294901760
        %v1414 = vsub.f32 %v209, %v1413
        %v1415 = vand.u32 %v1414, 4294901760
        %1416 = vmatprep.subr.mxu0 %v1415
        %v1417 = vand.u32 %v208, 4294901760
        %v1418 = vsub.f32 %v208, %v1417
        %v1419 = vand.u32 %v1418, 4294901760
        %1420 = vmatpush1.msra.mxu0 %v1419
        %v1421 = vand.u32 %v201, 4294901760
        %v1422 = vsub.f32 %v201, %v1421
        %v1423 = vand.u32 %v1422, 4294901760
        %1424 = vmatprep.subr.mxu0 %v1423
        %v1425 = vand.u32 %v200, 4294901760
        %v1426 = vsub.f32 %v200, %v1425
        %v1427 = vand.u32 %v1426, 4294901760
        %1428 = vmatpush1.msra.mxu0 %v1427
        %v1429 = vand.u32 %v193, 4294901760
        %v1430 = vsub.f32 %v193, %v1429
        %v1431 = vand.u32 %v1430, 4294901760
        %1432 = vmatprep.subr.mxu0 %v1431
        %v1433 = vand.u32 %v192, 4294901760
        %v1434 = vsub.f32 %v192, %v1433
        %v1435 = vand.u32 %v1434, 4294901760
        %1436 = vmatpush1.msra.mxu0 %v1435
        %v1437 = vand.u32 %v185, 4294901760
        %v1438 = vsub.f32 %v185, %v1437
        %v1439 = vand.u32 %v1438, 4294901760
        %1440 = vmatprep.subr.mxu0 %v1439
        %v1441 = vand.u32 %v184, 4294901760
        %v1442 = vsub.f32 %v184, %v1441
        %v1443 = vand.u32 %v1442, 4294901760
        %1444 = vmatpush1.msra.mxu0 %v1443
        %v1445 = vand.u32 %v177, 4294901760
        %v1446 = vsub.f32 %v177, %v1445
        %v1447 = vand.u32 %v1446, 4294901760
        %1448 = vmatprep.subr.mxu0 %v1447
        %v1449 = vand.u32 %v176, 4294901760
        %v1450 = vsub.f32 %v176, %v1449
        %v1451 = vand.u32 %v1450, 4294901760
        %1452 = vmatpush1.msra.mxu0 %v1451
        %v1453 = vand.u32 %v425, 4294901760
        %v1454 = vsub.f32 %v425, %v1453
        %v1455 = vand.u32 %v1454, 4294901760
        %1456 = vmatprep.subr.mxu0 %v1455
        %v1457 = vand.u32 %v424, 4294901760
        %v1458 = vsub.f32 %v424, %v1457
        %v1459 = vand.u32 %v1458, 4294901760
        %1460 = vmatpush2.msra.mxu0 %v1459
        %v1461 = vand.u32 %v417, 4294901760
        %v1462 = vsub.f32 %v417, %v1461
        %v1463 = vand.u32 %v1462, 4294901760
        %1464 = vmatprep.subr.mxu0 %v1463
        %v1465 = vand.u32 %v416, 4294901760
        %v1466 = vsub.f32 %v416, %v1465
        %v1467 = vand.u32 %v1466, 4294901760
        %1468 = vmatpush2.msra.mxu0 %v1467
        %v1469 = vand.u32 %v409, 4294901760
        %v1470 = vsub.f32 %v409, %v1469
        %v1471 = vand.u32 %v1470, 4294901760
        %1472 = vmatprep.subr.mxu0 %v1471
        %v1473 = vand.u32 %v408, 4294901760
        %v1474 = vsub.f32 %v408, %v1473
        %v1475 = vand.u32 %v1474, 4294901760
        %1476 = vmatpush2.msra.mxu0 %v1475
        %v1477 = vand.u32 %v401, 4294901760
        %v1478 = vsub.f32 %v401, %v1477
        %v1479 = vand.u32 %v1478, 4294901760
        %1480 = vmatprep.subr.mxu0 %v1479
        %v1481 = vand.u32 %v400, 4294901760
        %v1482 = vsub.f32 %v400, %v1481
        %v1483 = vand.u32 %v1482, 4294901760
        %1484 = vmatpush2.msra.mxu0 %v1483
        %v1485 = vand.u32 %v393, 4294901760
        %v1486 = vsub.f32 %v393, %v1485
        %v1487 = vand.u32 %v1486, 4294901760
        %1488 = vmatprep.subr.mxu0 %v1487
        %v1489 = vand.u32 %v392, 4294901760
        %v1490 = vsub.f32 %v392, %v1489
        %v1491 = vand.u32 %v1490, 4294901760
        %1492 = vmatpush2.msra.mxu0 %v1491
        %v1493 = vand.u32 %v385, 4294901760
        %v1494 = vsub.f32 %v385, %v1493
        %v1495 = vand.u32 %v1494, 4294901760
        %1496 = vmatprep.subr.mxu0 %v1495
        %v1497 = vand.u32 %v384, 4294901760
        %v1498 = vsub.f32 %v384, %v1497
        %v1499 = vand.u32 %v1498, 4294901760
        %1500 = vmatpush2.msra.mxu0 %v1499
        %v1501 = vand.u32 %v377, 4294901760
        %v1502 = vsub.f32 %v377, %v1501
        %v1503 = vand.u32 %v1502, 4294901760
        %1504 = vmatprep.subr.mxu0 %v1503
        %v1505 = vand.u32 %v376, 4294901760
        %v1506 = vsub.f32 %v376, %v1505
        %v1507 = vand.u32 %v1506, 4294901760
        %1508 = vmatpush2.msra.mxu0 %v1507
        %v1509 = vand.u32 %v369, 4294901760
        %v1510 = vsub.f32 %v369, %v1509
        %v1511 = vand.u32 %v1510, 4294901760
        %1512 = vmatprep.subr.mxu0 %v1511
        %v1513 = vand.u32 %v368, 4294901760
        %v1514 = vsub.f32 %v368, %v1513
        %v1515 = vand.u32 %v1514, 4294901760
        %1516 = vmatpush2.msra.mxu0 %v1515
        %v1517 = vand.u32 %v361, 4294901760
        %v1518 = vsub.f32 %v361, %v1517
        %v1519 = vand.u32 %v1518, 4294901760
        %1520 = vmatprep.subr.mxu0 %v1519
        %v1521 = vand.u32 %v360, 4294901760
        %v1522 = vsub.f32 %v360, %v1521
        %v1523 = vand.u32 %v1522, 4294901760
        %1524 = vmatpush2.msra.mxu0 %v1523
        %v1525 = vand.u32 %v353, 4294901760
        %v1526 = vsub.f32 %v353, %v1525
        %v1527 = vand.u32 %v1526, 4294901760
        %1528 = vmatprep.subr.mxu0 %v1527
        %v1529 = vand.u32 %v352, 4294901760
        %v1530 = vsub.f32 %v352, %v1529
        %v1531 = vand.u32 %v1530, 4294901760
        %1532 = vmatpush2.msra.mxu0 %v1531
        %v1533 = vand.u32 %v345, 4294901760
        %v1534 = vsub.f32 %v345, %v1533
        %v1535 = vand.u32 %v1534, 4294901760
        %1536 = vmatprep.subr.mxu0 %v1535
        %v1537 = vand.u32 %v344, 4294901760
        %v1538 = vsub.f32 %v344, %v1537
        %v1539 = vand.u32 %v1538, 4294901760
        %1540 = vmatpush2.msra.mxu0 %v1539
        %v1541 = vand.u32 %v337, 4294901760
        %v1542 = vsub.f32 %v337, %v1541
        %v1543 = vand.u32 %v1542, 4294901760
        %1544 = vmatprep.subr.mxu0 %v1543
        %v1545 = vand.u32 %v336, 4294901760
        %v1546 = vsub.f32 %v336, %v1545
        %v1547 = vand.u32 %v1546, 4294901760
        %1548 = vmatpush2.msra.mxu0 %v1547
        %v1549 = vand.u32 %v329, 4294901760
        %v1550 = vsub.f32 %v329, %v1549
        %v1551 = vand.u32 %v1550, 4294901760
        %1552 = vmatprep.subr.mxu0 %v1551
        %v1553 = vand.u32 %v328, 4294901760
        %v1554 = vsub.f32 %v328, %v1553
        %v1555 = vand.u32 %v1554, 4294901760
        %1556 = vmatpush2.msra.mxu0 %v1555
        %v1557 = vand.u32 %v321, 4294901760
        %v1558 = vsub.f32 %v321, %v1557
        %v1559 = vand.u32 %v1558, 4294901760
        %1560 = vmatprep.subr.mxu0 %v1559
        %v1561 = vand.u32 %v320, 4294901760
        %v1562 = vsub.f32 %v320, %v1561
        %v1563 = vand.u32 %v1562, 4294901760
        %1564 = vmatpush2.msra.mxu0 %v1563
        %v1565 = vand.u32 %v313, 4294901760
        %v1566 = vsub.f32 %v313, %v1565
        %v1567 = vand.u32 %v1566, 4294901760
        %1568 = vmatprep.subr.mxu0 %v1567
        %v1569 = vand.u32 %v312, 4294901760
        %v1570 = vsub.f32 %v312, %v1569
        %v1571 = vand.u32 %v1570, 4294901760
        %1572 = vmatpush2.msra.mxu0 %v1571
        %v1573 = vand.u32 %v305, 4294901760
        %v1574 = vsub.f32 %v305, %v1573
        %v1575 = vand.u32 %v1574, 4294901760
        %1576 = vmatprep.subr.mxu0 %v1575
        %v1577 = vand.u32 %v304, 4294901760
        %v1578 = vsub.f32 %v304, %v1577
        %v1579 = vand.u32 %v1578, 4294901760
        %1580 = vmatpush2.msra.mxu0 %v1579
        %v1581 = vand.u32 %v440, 4294901760
        %1582 = vmatprep.mubr.f32.mxu0 %v1581
        %v1583 = vand.u32 %v439, 4294901760
        %1584 = vmatmul.mubr.f32.gmra.mxu0 %v1583
        %v1585 = vpop.f32.mrf.mxu0
        %v1586 = vadd.f32 %v1321, %v1585
        %v1587 = vpop.f32.mrf.mxu0
        %v1588 = vadd.f32 %v1323, %v1587
        %1589 = vdwg.mxu0
        %v1590 = vand.u32 %v297, 4294901760
        %1591 = vmatprep.subr.mxu0 %v1590
        %v1592 = vand.u32 %v296, 4294901760
        %1593 = vmatpush1.msra.mxu0 %v1592
        %v1594 = vand.u32 %v289, 4294901760
        %1595 = vmatprep.subr.mxu0 %v1594
        %v1596 = vand.u32 %v288, 4294901760
        %1597 = vmatpush1.msra.mxu0 %v1596
        %v1598 = vand.u32 %v281, 4294901760
        %1599 = vmatprep.subr.mxu0 %v1598
        %v1600 = vand.u32 %v280, 4294901760
        %1601 = vmatpush1.msra.mxu0 %v1600
        %v1602 = vand.u32 %v273, 4294901760
        %1603 = vmatprep.subr.mxu0 %v1602
        %v1604 = vand.u32 %v272, 4294901760
        %1605 = vmatpush1.msra.mxu0 %v1604
        %v1606 = vand.u32 %v265, 4294901760
        %1607 = vmatprep.subr.mxu0 %v1606
        %v1608 = vand.u32 %v264, 4294901760
        %1609 = vmatpush1.msra.mxu0 %v1608
        %v1610 = vand.u32 %v257, 4294901760
        %1611 = vmatprep.subr.mxu0 %v1610
        %v1612 = vand.u32 %v256, 4294901760
        %1613 = vmatpush1.msra.mxu0 %v1612
        %v1614 = vand.u32 %v249, 4294901760
        %1615 = vmatprep.subr.mxu0 %v1614
        %v1616 = vand.u32 %v248, 4294901760
        %1617 = vmatpush1.msra.mxu0 %v1616
        %v1618 = vand.u32 %v241, 4294901760
        %1619 = vmatprep.subr.mxu0 %v1618
        %v1620 = vand.u32 %v240, 4294901760
        %1621 = vmatpush1.msra.mxu0 %v1620
        %v1622 = vand.u32 %v233, 4294901760
        %1623 = vmatprep.subr.mxu0 %v1622
        %v1624 = vand.u32 %v232, 4294901760
        %1625 = vmatpush1.msra.mxu0 %v1624
        %v1626 = vand.u32 %v225, 4294901760
        %1627 = vmatprep.subr.mxu0 %v1626
        %v1628 = vand.u32 %v224, 4294901760
        %1629 = vmatpush1.msra.mxu0 %v1628
        %v1630 = vand.u32 %v217, 4294901760
        %1631 = vmatprep.subr.mxu0 %v1630
        %v1632 = vand.u32 %v216, 4294901760
        %1633 = vmatpush1.msra.mxu0 %v1632
        %v1634 = vand.u32 %v209, 4294901760
        %1635 = vmatprep.subr.mxu0 %v1634
        %v1636 = vand.u32 %v208, 4294901760
        %1637 = vmatpush1.msra.mxu0 %v1636
        %v1638 = vand.u32 %v201, 4294901760
        %1639 = vmatprep.subr.mxu0 %v1638
        %v1640 = vand.u32 %v200, 4294901760
        %1641 = vmatpush1.msra.mxu0 %v1640
        %v1642 = vand.u32 %v193, 4294901760
        %1643 = vmatprep.subr.mxu0 %v1642
        %v1644 = vand.u32 %v192, 4294901760
        %1645 = vmatpush1.msra.mxu0 %v1644
        %v1646 = vand.u32 %v185, 4294901760
        %1647 = vmatprep.subr.mxu0 %v1646
        %v1648 = vand.u32 %v184, 4294901760
        %1649 = vmatpush1.msra.mxu0 %v1648
        %v1650 = vand.u32 %v177, 4294901760
        %1651 = vmatprep.subr.mxu0 %v1650
        %v1652 = vand.u32 %v176, 4294901760
        %1653 = vmatpush1.msra.mxu0 %v1652
        %v1654 = vand.u32 %v425, 4294901760
        %1655 = vmatprep.subr.mxu0 %v1654
        %v1656 = vand.u32 %v424, 4294901760
        %1657 = vmatpush2.msra.mxu0 %v1656
        %v1658 = vand.u32 %v417, 4294901760
        %1659 = vmatprep.subr.mxu0 %v1658
        %v1660 = vand.u32 %v416, 4294901760
        %1661 = vmatpush2.msra.mxu0 %v1660
        %v1662 = vand.u32 %v409, 4294901760
        %1663 = vmatprep.subr.mxu0 %v1662
        %v1664 = vand.u32 %v408, 4294901760
        %1665 = vmatpush2.msra.mxu0 %v1664
        %v1666 = vand.u32 %v401, 4294901760
        %1667 = vmatprep.subr.mxu0 %v1666
        %v1668 = vand.u32 %v400, 4294901760
        %1669 = vmatpush2.msra.mxu0 %v1668
        %v1670 = vand.u32 %v393, 4294901760
        %1671 = vmatprep.subr.mxu0 %v1670
        %v1672 = vand.u32 %v392, 4294901760
        %1673 = vmatpush2.msra.mxu0 %v1672
        %v1674 = vand.u32 %v385, 4294901760
        %1675 = vmatprep.subr.mxu0 %v1674
        %v1676 = vand.u32 %v384, 4294901760
        %1677 = vmatpush2.msra.mxu0 %v1676
        %v1678 = vand.u32 %v377, 4294901760
        %1679 = vmatprep.subr.mxu0 %v1678
        %v1680 = vand.u32 %v376, 4294901760
        %1681 = vmatpush2.msra.mxu0 %v1680
        %v1682 = vand.u32 %v369, 4294901760
        %1683 = vmatprep.subr.mxu0 %v1682
        %v1684 = vand.u32 %v368, 4294901760
        %1685 = vmatpush2.msra.mxu0 %v1684
        %v1686 = vand.u32 %v361, 4294901760
        %1687 = vmatprep.subr.mxu0 %v1686
        %v1688 = vand.u32 %v360, 4294901760
        %1689 = vmatpush2.msra.mxu0 %v1688
        %v1690 = vand.u32 %v353, 4294901760
        %1691 = vmatprep.subr.mxu0 %v1690
        %v1692 = vand.u32 %v352, 4294901760
        %1693 = vmatpush2.msra.mxu0 %v1692
        %v1694 = vand.u32 %v345, 4294901760
        %1695 = vmatprep.subr.mxu0 %v1694
        %v1696 = vand.u32 %v344, 4294901760
        %1697 = vmatpush2.msra.mxu0 %v1696
        %v1698 = vand.u32 %v337, 4294901760
        %1699 = vmatprep.subr.mxu0 %v1698
        %v1700 = vand.u32 %v336, 4294901760
        %1701 = vmatpush2.msra.mxu0 %v1700
        %v1702 = vand.u32 %v329, 4294901760
        %1703 = vmatprep.subr.mxu0 %v1702
        %v1704 = vand.u32 %v328, 4294901760
        %1705 = vmatpush2.msra.mxu0 %v1704
        %v1706 = vand.u32 %v321, 4294901760
        %1707 = vmatprep.subr.mxu0 %v1706
        %v1708 = vand.u32 %v320, 4294901760
        %1709 = vmatpush2.msra.mxu0 %v1708
        %v1710 = vand.u32 %v313, 4294901760
        %1711 = vmatprep.subr.mxu0 %v1710
        %v1712 = vand.u32 %v312, 4294901760
        %1713 = vmatpush2.msra.mxu0 %v1712
        %v1714 = vand.u32 %v305, 4294901760
        %1715 = vmatprep.subr.mxu0 %v1714
        %v1716 = vand.u32 %v304, 4294901760
        %1717 = vmatpush2.msra.mxu0 %v1716
        %v1718 = vand.u32 %v440, 4294901760
        %1719 = vmatprep.mubr.f32.mxu0 %v1718
        %v1720 = vand.u32 %v439, 4294901760
        %1721 = vmatmul.mubr.f32.gmra.mxu0 %v1720
        %v1722 = vpop.f32.mrf.mxu0
        %v1723 = vadd.f32 %v1586, %v1722
        %v1724 = vpop.f32.mrf.mxu0
        %v1725 = vadd.f32 %v1588, %v1724
        %1726 = vdwg.mxu0
        %v1727 = vand.u32 %v299, 4294901760
        %1728 = vmatprep.subr.mxu0 %v1727
        %v1729 = vand.u32 %v298, 4294901760
        %1730 = vmatpush1.msra.mxu0 %v1729
        %v1731 = vand.u32 %v291, 4294901760
        %1732 = vmatprep.subr.mxu0 %v1731
        %v1733 = vand.u32 %v290, 4294901760
        %1734 = vmatpush1.msra.mxu0 %v1733
        %v1735 = vand.u32 %v283, 4294901760
        %1736 = vmatprep.subr.mxu0 %v1735
        %v1737 = vand.u32 %v282, 4294901760
        %1738 = vmatpush1.msra.mxu0 %v1737
        %v1739 = vand.u32 %v275, 4294901760
        %1740 = vmatprep.subr.mxu0 %v1739
        %v1741 = vand.u32 %v274, 4294901760
        %1742 = vmatpush1.msra.mxu0 %v1741
        %v1743 = vand.u32 %v267, 4294901760
        %1744 = vmatprep.subr.mxu0 %v1743
        %v1745 = vand.u32 %v266, 4294901760
        %1746 = vmatpush1.msra.mxu0 %v1745
        %v1747 = vand.u32 %v259, 4294901760
        %1748 = vmatprep.subr.mxu0 %v1747
        %v1749 = vand.u32 %v258, 4294901760
        %1750 = vmatpush1.msra.mxu0 %v1749
        %v1751 = vand.u32 %v251, 4294901760
        %1752 = vmatprep.subr.mxu0 %v1751
        %v1753 = vand.u32 %v250, 4294901760
        %1754 = vmatpush1.msra.mxu0 %v1753
        %v1755 = vand.u32 %v243, 4294901760
        %1756 = vmatprep.subr.mxu0 %v1755
        %v1757 = vand.u32 %v242, 4294901760
        %1758 = vmatpush1.msra.mxu0 %v1757
        %v1759 = vand.u32 %v235, 4294901760
        %1760 = vmatprep.subr.mxu0 %v1759
        %v1761 = vand.u32 %v234, 4294901760
        %1762 = vmatpush1.msra.mxu0 %v1761
        %v1763 = vand.u32 %v227, 4294901760
        %1764 = vmatprep.subr.mxu0 %v1763
        %v1765 = vand.u32 %v226, 4294901760
        %1766 = vmatpush1.msra.mxu0 %v1765
        %v1767 = vand.u32 %v219, 4294901760
        %1768 = vmatprep.subr.mxu0 %v1767
        %v1769 = vand.u32 %v218, 4294901760
        %1770 = vmatpush1.msra.mxu0 %v1769
        %v1771 = vand.u32 %v211, 4294901760
        %1772 = vmatprep.subr.mxu0 %v1771
        %v1773 = vand.u32 %v210, 4294901760
        %1774 = vmatpush1.msra.mxu0 %v1773
        %v1775 = vand.u32 %v203, 4294901760
        %1776 = vmatprep.subr.mxu0 %v1775
        %v1777 = vand.u32 %v202, 4294901760
        %1778 = vmatpush1.msra.mxu0 %v1777
        %v1779 = vand.u32 %v195, 4294901760
        %1780 = vmatprep.subr.mxu0 %v1779
        %v1781 = vand.u32 %v194, 4294901760
        %1782 = vmatpush1.msra.mxu0 %v1781
        %v1783 = vand.u32 %v187, 4294901760
        %1784 = vmatprep.subr.mxu0 %v1783
        %v1785 = vand.u32 %v186, 4294901760
        %1786 = vmatpush1.msra.mxu0 %v1785
        %v1787 = vand.u32 %v179, 4294901760
        %1788 = vmatprep.subr.mxu0 %v1787
        %v1789 = vand.u32 %v178, 4294901760
        %1790 = vmatpush1.msra.mxu0 %v1789
        %v1791 = vand.u32 %v427, 4294901760
        %1792 = vmatprep.subr.mxu0 %v1791
        %v1793 = vand.u32 %v426, 4294901760
        %1794 = vmatpush2.msra.mxu0 %v1793
        %v1795 = vand.u32 %v419, 4294901760
        %1796 = vmatprep.subr.mxu0 %v1795
        %v1797 = vand.u32 %v418, 4294901760
        %1798 = vmatpush2.msra.mxu0 %v1797
        %v1799 = vand.u32 %v411, 4294901760
        %1800 = vmatprep.subr.mxu0 %v1799
        %v1801 = vand.u32 %v410, 4294901760
        %1802 = vmatpush2.msra.mxu0 %v1801
        %v1803 = vand.u32 %v403, 4294901760
        %1804 = vmatprep.subr.mxu0 %v1803
        %v1805 = vand.u32 %v402, 4294901760
        %1806 = vmatpush2.msra.mxu0 %v1805
        %v1807 = vand.u32 %v395, 4294901760
        %1808 = vmatprep.subr.mxu0 %v1807
        %v1809 = vand.u32 %v394, 4294901760
        %1810 = vmatpush2.msra.mxu0 %v1809
        %v1811 = vand.u32 %v387, 4294901760
        %1812 = vmatprep.subr.mxu0 %v1811
        %v1813 = vand.u32 %v386, 4294901760
        %1814 = vmatpush2.msra.mxu0 %v1813
        %v1815 = vand.u32 %v379, 4294901760
        %1816 = vmatprep.subr.mxu0 %v1815
        %v1817 = vand.u32 %v378, 4294901760
        %1818 = vmatpush2.msra.mxu0 %v1817
        %v1819 = vand.u32 %v371, 4294901760
        %1820 = vmatprep.subr.mxu0 %v1819
        %v1821 = vand.u32 %v370, 4294901760
        %1822 = vmatpush2.msra.mxu0 %v1821
        %v1823 = vand.u32 %v363, 4294901760
        %1824 = vmatprep.subr.mxu0 %v1823
        %v1825 = vand.u32 %v362, 4294901760
        %1826 = vmatpush2.msra.mxu0 %v1825
        %v1827 = vand.u32 %v355, 4294901760
        %1828 = vmatprep.subr.mxu0 %v1827
        %v1829 = vand.u32 %v354, 4294901760
        %1830 = vmatpush2.msra.mxu0 %v1829
        %v1831 = vand.u32 %v347, 4294901760
        %1832 = vmatprep.subr.mxu0 %v1831
        %v1833 = vand.u32 %v346, 4294901760
        %1834 = vmatpush2.msra.mxu0 %v1833
        %v1835 = vand.u32 %v339, 4294901760
        %1836 = vmatprep.subr.mxu0 %v1835
        %v1837 = vand.u32 %v338, 4294901760
        %1838 = vmatpush2.msra.mxu0 %v1837
        %v1839 = vand.u32 %v331, 4294901760
        %1840 = vmatprep.subr.mxu0 %v1839
        %v1841 = vand.u32 %v330, 4294901760
        %1842 = vmatpush2.msra.mxu0 %v1841
        %v1843 = vand.u32 %v323, 4294901760
        %1844 = vmatprep.subr.mxu0 %v1843
        %v1845 = vand.u32 %v322, 4294901760
        %1846 = vmatpush2.msra.mxu0 %v1845
        %v1847 = vand.u32 %v315, 4294901760
        %1848 = vmatprep.subr.mxu0 %v1847
        %v1849 = vand.u32 %v314, 4294901760
        %1850 = vmatpush2.msra.mxu0 %v1849
        %v1851 = vand.u32 %v307, 4294901760
        %1852 = vmatprep.subr.mxu0 %v1851
        %v1853 = vand.u32 %v306, 4294901760
        %1854 = vmatpush2.msra.mxu0 %v1853
        %v1855 = vand.u32 %v440, 4294901760
        %v1856 = vsub.f32 %v440, %v1855
        %v1857 = vand.u32 %v1856, 4294901760
        %v1858 = vsub.f32 %v1856, %v1857
        %v1859 = vand.u32 %v1858, 4294901760
        %1860 = vmatprep.mubr.f32.mxu0 %v1859
        %v1861 = vand.u32 %v439, 4294901760
        %v1862 = vsub.f32 %v439, %v1861
        %v1863 = vand.u32 %v1862, 4294901760
        %v1864 = vsub.f32 %v1862, %v1863
        %v1865 = vand.u32 %v1864, 4294901760
        %1866 = vmatmul.mubr.f32.gmra.mxu0 %v1865
        %v1867 = vpop.f32.mrf.mxu0
        %v1868 = vadd.f32 0.0, %v1867
        %v1869 = vpop.f32.mrf.mxu0
        %v1870 = vadd.f32 0.0, %v1869
        %1871 = vdwg.mxu0
        %v1872 = vand.u32 %v299, 4294901760
        %v1873 = vsub.f32 %v299, %v1872
        %v1874 = vand.u32 %v1873, 4294901760
        %v1875 = vsub.f32 %v1873, %v1874
        %v1876 = vand.u32 %v1875, 4294901760
        %1877 = vmatprep.subr.mxu0 %v1876
        %v1878 = vand.u32 %v298, 4294901760
        %v1879 = vsub.f32 %v298, %v1878
        %v1880 = vand.u32 %v1879, 4294901760
        %v1881 = vsub.f32 %v1879, %v1880
        %v1882 = vand.u32 %v1881, 4294901760
        %1883 = vmatpush1.msra.mxu0 %v1882
        %v1884 = vand.u32 %v291, 4294901760
        %v1885 = vsub.f32 %v291, %v1884
        %v1886 = vand.u32 %v1885, 4294901760
        %v1887 = vsub.f32 %v1885, %v1886
        %v1888 = vand.u32 %v1887, 4294901760
        %1889 = vmatprep.subr.mxu0 %v1888
        %v1890 = vand.u32 %v290, 4294901760
        %v1891 = vsub.f32 %v290, %v1890
        %v1892 = vand.u32 %v1891, 4294901760
        %v1893 = vsub.f32 %v1891, %v1892
        %v1894 = vand.u32 %v1893, 4294901760
        %1895 = vmatpush1.msra.mxu0 %v1894
        %v1896 = vand.u32 %v283, 4294901760
        %v1897 = vsub.f32 %v283, %v1896
        %v1898 = vand.u32 %v1897, 4294901760
        %v1899 = vsub.f32 %v1897, %v1898
        %v1900 = vand.u32 %v1899, 4294901760
        %1901 = vmatprep.subr.mxu0 %v1900
        %v1902 = vand.u32 %v282, 4294901760
        %v1903 = vsub.f32 %v282, %v1902
        %v1904 = vand.u32 %v1903, 4294901760
        %v1905 = vsub.f32 %v1903, %v1904
        %v1906 = vand.u32 %v1905, 4294901760
        %1907 = vmatpush1.msra.mxu0 %v1906
        %v1908 = vand.u32 %v275, 4294901760
        %v1909 = vsub.f32 %v275, %v1908
        %v1910 = vand.u32 %v1909, 4294901760
        %v1911 = vsub.f32 %v1909, %v1910
        %v1912 = vand.u32 %v1911, 4294901760
        %1913 = vmatprep.subr.mxu0 %v1912
        %v1914 = vand.u32 %v274, 4294901760
        %v1915 = vsub.f32 %v274, %v1914
        %v1916 = vand.u32 %v1915, 4294901760
        %v1917 = vsub.f32 %v1915, %v1916
        %v1918 = vand.u32 %v1917, 4294901760
        %1919 = vmatpush1.msra.mxu0 %v1918
        %v1920 = vand.u32 %v267, 4294901760
        %v1921 = vsub.f32 %v267, %v1920
        %v1922 = vand.u32 %v1921, 4294901760
        %v1923 = vsub.f32 %v1921, %v1922
        %v1924 = vand.u32 %v1923, 4294901760
        %1925 = vmatprep.subr.mxu0 %v1924
        %v1926 = vand.u32 %v266, 4294901760
        %v1927 = vsub.f32 %v266, %v1926
        %v1928 = vand.u32 %v1927, 4294901760
        %v1929 = vsub.f32 %v1927, %v1928
        %v1930 = vand.u32 %v1929, 4294901760
        %1931 = vmatpush1.msra.mxu0 %v1930
        %v1932 = vand.u32 %v259, 4294901760
        %v1933 = vsub.f32 %v259, %v1932
        %v1934 = vand.u32 %v1933, 4294901760
        %v1935 = vsub.f32 %v1933, %v1934
        %v1936 = vand.u32 %v1935, 4294901760
        %1937 = vmatprep.subr.mxu0 %v1936
        %v1938 = vand.u32 %v258, 4294901760
        %v1939 = vsub.f32 %v258, %v1938
        %v1940 = vand.u32 %v1939, 4294901760
        %v1941 = vsub.f32 %v1939, %v1940
        %v1942 = vand.u32 %v1941, 4294901760
        %1943 = vmatpush1.msra.mxu0 %v1942
        %v1944 = vand.u32 %v251, 4294901760
        %v1945 = vsub.f32 %v251, %v1944
        %v1946 = vand.u32 %v1945, 4294901760
        %v1947 = vsub.f32 %v1945, %v1946
        %v1948 = vand.u32 %v1947, 4294901760
        %1949 = vmatprep.subr.mxu0 %v1948
        %v1950 = vand.u32 %v250, 4294901760
        %v1951 = vsub.f32 %v250, %v1950
        %v1952 = vand.u32 %v1951, 4294901760
        %v1953 = vsub.f32 %v1951, %v1952
        %v1954 = vand.u32 %v1953, 4294901760
        %1955 = vmatpush1.msra.mxu0 %v1954
        %v1956 = vand.u32 %v243, 4294901760
        %v1957 = vsub.f32 %v243, %v1956
        %v1958 = vand.u32 %v1957, 4294901760
        %v1959 = vsub.f32 %v1957, %v1958
        %v1960 = vand.u32 %v1959, 4294901760
        %1961 = vmatprep.subr.mxu0 %v1960
        %v1962 = vand.u32 %v242, 4294901760
        %v1963 = vsub.f32 %v242, %v1962
        %v1964 = vand.u32 %v1963, 4294901760
        %v1965 = vsub.f32 %v1963, %v1964
        %v1966 = vand.u32 %v1965, 4294901760
        %1967 = vmatpush1.msra.mxu0 %v1966
        %v1968 = vand.u32 %v235, 4294901760
        %v1969 = vsub.f32 %v235, %v1968
        %v1970 = vand.u32 %v1969, 4294901760
        %v1971 = vsub.f32 %v1969, %v1970
        %v1972 = vand.u32 %v1971, 4294901760
        %1973 = vmatprep.subr.mxu0 %v1972
        %v1974 = vand.u32 %v234, 4294901760
        %v1975 = vsub.f32 %v234, %v1974
        %v1976 = vand.u32 %v1975, 4294901760
        %v1977 = vsub.f32 %v1975, %v1976
        %v1978 = vand.u32 %v1977, 4294901760
        %1979 = vmatpush1.msra.mxu0 %v1978
        %v1980 = vand.u32 %v227, 4294901760
        %v1981 = vsub.f32 %v227, %v1980
        %v1982 = vand.u32 %v1981, 4294901760
        %v1983 = vsub.f32 %v1981, %v1982
        %v1984 = vand.u32 %v1983, 4294901760
        %1985 = vmatprep.subr.mxu0 %v1984
        %v1986 = vand.u32 %v226, 4294901760
        %v1987 = vsub.f32 %v226, %v1986
        %v1988 = vand.u32 %v1987, 4294901760
        %v1989 = vsub.f32 %v1987, %v1988
        %v1990 = vand.u32 %v1989, 4294901760
        %1991 = vmatpush1.msra.mxu0 %v1990
        %v1992 = vand.u32 %v219, 4294901760
        %v1993 = vsub.f32 %v219, %v1992
        %v1994 = vand.u32 %v1993, 4294901760
        %v1995 = vsub.f32 %v1993, %v1994
        %v1996 = vand.u32 %v1995, 4294901760
        %1997 = vmatprep.subr.mxu0 %v1996
        %v1998 = vand.u32 %v218, 4294901760
        %v1999 = vsub.f32 %v218, %v1998
        %v2000 = vand.u32 %v1999, 4294901760
        %v2001 = vsub.f32 %v1999, %v2000
        %v2002 = vand.u32 %v2001, 4294901760
        %2003 = vmatpush1.msra.mxu0 %v2002
        %v2004 = vand.u32 %v211, 4294901760
        %v2005 = vsub.f32 %v211, %v2004
        %v2006 = vand.u32 %v2005, 4294901760
        %v2007 = vsub.f32 %v2005, %v2006
        %v2008 = vand.u32 %v2007, 4294901760
        %2009 = vmatprep.subr.mxu0 %v2008
        %v2010 = vand.u32 %v210, 4294901760
        %v2011 = vsub.f32 %v210, %v2010
        %v2012 = vand.u32 %v2011, 4294901760
        %v2013 = vsub.f32 %v2011, %v2012
        %v2014 = vand.u32 %v2013, 4294901760
        %2015 = vmatpush1.msra.mxu0 %v2014
        %v2016 = vand.u32 %v203, 4294901760
        %v2017 = vsub.f32 %v203, %v2016
        %v2018 = vand.u32 %v2017, 4294901760
        %v2019 = vsub.f32 %v2017, %v2018
        %v2020 = vand.u32 %v2019, 4294901760
        %2021 = vmatprep.subr.mxu0 %v2020
        %v2022 = vand.u32 %v202, 4294901760
        %v2023 = vsub.f32 %v202, %v2022
        %v2024 = vand.u32 %v2023, 4294901760
        %v2025 = vsub.f32 %v2023, %v2024
        %v2026 = vand.u32 %v2025, 4294901760
        %2027 = vmatpush1.msra.mxu0 %v2026
        %v2028 = vand.u32 %v195, 4294901760
        %v2029 = vsub.f32 %v195, %v2028
        %v2030 = vand.u32 %v2029, 4294901760
        %v2031 = vsub.f32 %v2029, %v2030
        %v2032 = vand.u32 %v2031, 4294901760
        %2033 = vmatprep.subr.mxu0 %v2032
        %v2034 = vand.u32 %v194, 4294901760
        %v2035 = vsub.f32 %v194, %v2034
        %v2036 = vand.u32 %v2035, 4294901760
        %v2037 = vsub.f32 %v2035, %v2036
        %v2038 = vand.u32 %v2037, 4294901760
        %2039 = vmatpush1.msra.mxu0 %v2038
        %v2040 = vand.u32 %v187, 4294901760
        %v2041 = vsub.f32 %v187, %v2040
        %v2042 = vand.u32 %v2041, 4294901760
        %v2043 = vsub.f32 %v2041, %v2042
        %v2044 = vand.u32 %v2043, 4294901760
        %2045 = vmatprep.subr.mxu0 %v2044
        %v2046 = vand.u32 %v186, 4294901760
        %v2047 = vsub.f32 %v186, %v2046
        %v2048 = vand.u32 %v2047, 4294901760
        %v2049 = vsub.f32 %v2047, %v2048
        %v2050 = vand.u32 %v2049, 4294901760
        %2051 = vmatpush1.msra.mxu0 %v2050
        %v2052 = vand.u32 %v179, 4294901760
        %v2053 = vsub.f32 %v179, %v2052
        %v2054 = vand.u32 %v2053, 4294901760
        %v2055 = vsub.f32 %v2053, %v2054
        %v2056 = vand.u32 %v2055, 4294901760
        %2057 = vmatprep.subr.mxu0 %v2056
        %v2058 = vand.u32 %v178, 4294901760
        %v2059 = vsub.f32 %v178, %v2058
        %v2060 = vand.u32 %v2059, 4294901760
        %v2061 = vsub.f32 %v2059, %v2060
        %v2062 = vand.u32 %v2061, 4294901760
        %2063 = vmatpush1.msra.mxu0 %v2062
        %v2064 = vand.u32 %v427, 4294901760
        %v2065 = vsub.f32 %v427, %v2064
        %v2066 = vand.u32 %v2065, 4294901760
        %v2067 = vsub.f32 %v2065, %v2066
        %v2068 = vand.u32 %v2067, 4294901760
        %2069 = vmatprep.subr.mxu0 %v2068
        %v2070 = vand.u32 %v426, 4294901760
        %v2071 = vsub.f32 %v426, %v2070
        %v2072 = vand.u32 %v2071, 4294901760
        %v2073 = vsub.f32 %v2071, %v2072
        %v2074 = vand.u32 %v2073, 4294901760
        %2075 = vmatpush2.msra.mxu0 %v2074
        %v2076 = vand.u32 %v419, 4294901760
        %v2077 = vsub.f32 %v419, %v2076
        %v2078 = vand.u32 %v2077, 4294901760
        %v2079 = vsub.f32 %v2077, %v2078
        %v2080 = vand.u32 %v2079, 4294901760
        %2081 = vmatprep.subr.mxu0 %v2080
        %v2082 = vand.u32 %v418, 4294901760
        %v2083 = vsub.f32 %v418, %v2082
        %v2084 = vand.u32 %v2083, 4294901760
        %v2085 = vsub.f32 %v2083, %v2084
        %v2086 = vand.u32 %v2085, 4294901760
        %2087 = vmatpush2.msra.mxu0 %v2086
        %v2088 = vand.u32 %v411, 4294901760
        %v2089 = vsub.f32 %v411, %v2088
        %v2090 = vand.u32 %v2089, 4294901760
        %v2091 = vsub.f32 %v2089, %v2090
        %v2092 = vand.u32 %v2091, 4294901760
        %2093 = vmatprep.subr.mxu0 %v2092
        %v2094 = vand.u32 %v410, 4294901760
        %v2095 = vsub.f32 %v410, %v2094
        %v2096 = vand.u32 %v2095, 4294901760
        %v2097 = vsub.f32 %v2095, %v2096
        %v2098 = vand.u32 %v2097, 4294901760
        %2099 = vmatpush2.msra.mxu0 %v2098
        %v2100 = vand.u32 %v403, 4294901760
        %v2101 = vsub.f32 %v403, %v2100
        %v2102 = vand.u32 %v2101, 4294901760
        %v2103 = vsub.f32 %v2101, %v2102
        %v2104 = vand.u32 %v2103, 4294901760
        %2105 = vmatprep.subr.mxu0 %v2104
        %v2106 = vand.u32 %v402, 4294901760
        %v2107 = vsub.f32 %v402, %v2106
        %v2108 = vand.u32 %v2107, 4294901760
        %v2109 = vsub.f32 %v2107, %v2108
        %v2110 = vand.u32 %v2109, 4294901760
        %2111 = vmatpush2.msra.mxu0 %v2110
        %v2112 = vand.u32 %v395, 4294901760
        %v2113 = vsub.f32 %v395, %v2112
        %v2114 = vand.u32 %v2113, 4294901760
        %v2115 = vsub.f32 %v2113, %v2114
        %v2116 = vand.u32 %v2115, 4294901760
        %2117 = vmatprep.subr.mxu0 %v2116
        %v2118 = vand.u32 %v394, 4294901760
        %v2119 = vsub.f32 %v394, %v2118
        %v2120 = vand.u32 %v2119, 4294901760
        %v2121 = vsub.f32 %v2119, %v2120
        %v2122 = vand.u32 %v2121, 4294901760
        %2123 = vmatpush2.msra.mxu0 %v2122
        %v2124 = vand.u32 %v387, 4294901760
        %v2125 = vsub.f32 %v387, %v2124
        %v2126 = vand.u32 %v2125, 4294901760
        %v2127 = vsub.f32 %v2125, %v2126
        %v2128 = vand.u32 %v2127, 4294901760
        %2129 = vmatprep.subr.mxu0 %v2128
        %v2130 = vand.u32 %v386, 4294901760
        %v2131 = vsub.f32 %v386, %v2130
        %v2132 = vand.u32 %v2131, 4294901760
        %v2133 = vsub.f32 %v2131, %v2132
        %v2134 = vand.u32 %v2133, 4294901760
        %2135 = vmatpush2.msra.mxu0 %v2134
        %v2136 = vand.u32 %v379, 4294901760
        %v2137 = vsub.f32 %v379, %v2136
        %v2138 = vand.u32 %v2137, 4294901760
        %v2139 = vsub.f32 %v2137, %v2138
        %v2140 = vand.u32 %v2139, 4294901760
        %2141 = vmatprep.subr.mxu0 %v2140
        %v2142 = vand.u32 %v378, 4294901760
        %v2143 = vsub.f32 %v378, %v2142
        %v2144 = vand.u32 %v2143, 4294901760
        %v2145 = vsub.f32 %v2143, %v2144
        %v2146 = vand.u32 %v2145, 4294901760
        %2147 = vmatpush2.msra.mxu0 %v2146
        %v2148 = vand.u32 %v371, 4294901760
        %v2149 = vsub.f32 %v371, %v2148
        %v2150 = vand.u32 %v2149, 4294901760
        %v2151 = vsub.f32 %v2149, %v2150
        %v2152 = vand.u32 %v2151, 4294901760
        %2153 = vmatprep.subr.mxu0 %v2152
        %v2154 = vand.u32 %v370, 4294901760
        %v2155 = vsub.f32 %v370, %v2154
        %v2156 = vand.u32 %v2155, 4294901760
        %v2157 = vsub.f32 %v2155, %v2156
        %v2158 = vand.u32 %v2157, 4294901760
        %2159 = vmatpush2.msra.mxu0 %v2158
        %v2160 = vand.u32 %v363, 4294901760
        %v2161 = vsub.f32 %v363, %v2160
        %v2162 = vand.u32 %v2161, 4294901760
        %v2163 = vsub.f32 %v2161, %v2162
        %v2164 = vand.u32 %v2163, 4294901760
        %2165 = vmatprep.subr.mxu0 %v2164
        %v2166 = vand.u32 %v362, 4294901760
        %v2167 = vsub.f32 %v362, %v2166
        %v2168 = vand.u32 %v2167, 4294901760
        %v2169 = vsub.f32 %v2167, %v2168
        %v2170 = vand.u32 %v2169, 4294901760
        %2171 = vmatpush2.msra.mxu0 %v2170
        %v2172 = vand.u32 %v355, 4294901760
        %v2173 = vsub.f32 %v355, %v2172
        %v2174 = vand.u32 %v2173, 4294901760
        %v2175 = vsub.f32 %v2173, %v2174
        %v2176 = vand.u32 %v2175, 4294901760
        %2177 = vmatprep.subr.mxu0 %v2176
        %v2178 = vand.u32 %v354, 4294901760
        %v2179 = vsub.f32 %v354, %v2178
        %v2180 = vand.u32 %v2179, 4294901760
        %v2181 = vsub.f32 %v2179, %v2180
        %v2182 = vand.u32 %v2181, 4294901760
        %2183 = vmatpush2.msra.mxu0 %v2182
        %v2184 = vand.u32 %v347, 4294901760
        %v2185 = vsub.f32 %v347, %v2184
        %v2186 = vand.u32 %v2185, 4294901760
        %v2187 = vsub.f32 %v2185, %v2186
        %v2188 = vand.u32 %v2187, 4294901760
        %2189 = vmatprep.subr.mxu0 %v2188
        %v2190 = vand.u32 %v346, 4294901760
        %v2191 = vsub.f32 %v346, %v2190
        %v2192 = vand.u32 %v2191, 4294901760
        %v2193 = vsub.f32 %v2191, %v2192
        %v2194 = vand.u32 %v2193, 4294901760
        %2195 = vmatpush2.msra.mxu0 %v2194
        %v2196 = vand.u32 %v339, 4294901760
        %v2197 = vsub.f32 %v339, %v2196
        %v2198 = vand.u32 %v2197, 4294901760
        %v2199 = vsub.f32 %v2197, %v2198
        %v2200 = vand.u32 %v2199, 4294901760
        %2201 = vmatprep.subr.mxu0 %v2200
        %v2202 = vand.u32 %v338, 4294901760
        %v2203 = vsub.f32 %v338, %v2202
        %v2204 = vand.u32 %v2203, 4294901760
        %v2205 = vsub.f32 %v2203, %v2204
        %v2206 = vand.u32 %v2205, 4294901760
        %2207 = vmatpush2.msra.mxu0 %v2206
        %v2208 = vand.u32 %v331, 4294901760
        %v2209 = vsub.f32 %v331, %v2208
        %v2210 = vand.u32 %v2209, 4294901760
        %v2211 = vsub.f32 %v2209, %v2210
        %v2212 = vand.u32 %v2211, 4294901760
        %2213 = vmatprep.subr.mxu0 %v2212
        %v2214 = vand.u32 %v330, 4294901760
        %v2215 = vsub.f32 %v330, %v2214
        %v2216 = vand.u32 %v2215, 4294901760
        %v2217 = vsub.f32 %v2215, %v2216
        %v2218 = vand.u32 %v2217, 4294901760
        %2219 = vmatpush2.msra.mxu0 %v2218
        %v2220 = vand.u32 %v323, 4294901760
        %v2221 = vsub.f32 %v323, %v2220
        %v2222 = vand.u32 %v2221, 4294901760
        %v2223 = vsub.f32 %v2221, %v2222
        %v2224 = vand.u32 %v2223, 4294901760
        %2225 = vmatprep.subr.mxu0 %v2224
        %v2226 = vand.u32 %v322, 4294901760
        %v2227 = vsub.f32 %v322, %v2226
        %v2228 = vand.u32 %v2227, 4294901760
        %v2229 = vsub.f32 %v2227, %v2228
        %v2230 = vand.u32 %v2229, 4294901760
        %2231 = vmatpush2.msra.mxu0 %v2230
        %v2232 = vand.u32 %v315, 4294901760
        %v2233 = vsub.f32 %v315, %v2232
        %v2234 = vand.u32 %v2233, 4294901760
        %v2235 = vsub.f32 %v2233, %v2234
        %v2236 = vand.u32 %v2235, 4294901760
        %2237 = vmatprep.subr.mxu0 %v2236
        %v2238 = vand.u32 %v314, 4294901760
        %v2239 = vsub.f32 %v314, %v2238
        %v2240 = vand.u32 %v2239, 4294901760
        %v2241 = vsub.f32 %v2239, %v2240
        %v2242 = vand.u32 %v2241, 4294901760
        %2243 = vmatpush2.msra.mxu0 %v2242
        %v2244 = vand.u32 %v307, 4294901760
        %v2245 = vsub.f32 %v307, %v2244
        %v2246 = vand.u32 %v2245, 4294901760
        %v2247 = vsub.f32 %v2245, %v2246
        %v2248 = vand.u32 %v2247, 4294901760
        %2249 = vmatprep.subr.mxu0 %v2248
        %v2250 = vand.u32 %v306, 4294901760
        %v2251 = vsub.f32 %v306, %v2250
        %v2252 = vand.u32 %v2251, 4294901760
        %v2253 = vsub.f32 %v2251, %v2252
        %v2254 = vand.u32 %v2253, 4294901760
        %2255 = vmatpush2.msra.mxu0 %v2254
        %v2256 = vand.u32 %v440, 4294901760
        %2257 = vmatprep.mubr.f32.mxu0 %v2256
        %v2258 = vand.u32 %v439, 4294901760
        %2259 = vmatmul.mubr.f32.gmra.mxu0 %v2258
        %v2260 = vpop.f32.mrf.mxu0
        %v2261 = vadd.f32 %v1868, %v2260
        %v2262 = vpop.f32.mrf.mxu0
        %v2263 = vadd.f32 %v1870, %v2262
        %2264 = vdwg.mxu0
        %v2265 = vand.u32 %v299, 4294901760
        %v2266 = vsub.f32 %v299, %v2265
        %2267 = vmatprep.subr.mxu0 %v2266
        %v2268 = vand.u32 %v298, 4294901760
        %v2269 = vsub.f32 %v298, %v2268
        %2270 = vmatpush1.msra.mxu0 %v2269
        %v2271 = vand.u32 %v291, 4294901760
        %v2272 = vsub.f32 %v291, %v2271
        %2273 = vmatprep.subr.mxu0 %v2272
        %v2274 = vand.u32 %v290, 4294901760
        %v2275 = vsub.f32 %v290, %v2274
        %2276 = vmatpush1.msra.mxu0 %v2275
        %v2277 = vand.u32 %v283, 4294901760
        %v2278 = vsub.f32 %v283, %v2277
        %2279 = vmatprep.subr.mxu0 %v2278
        %v2280 = vand.u32 %v282, 4294901760
        %v2281 = vsub.f32 %v282, %v2280
        %2282 = vmatpush1.msra.mxu0 %v2281
        %v2283 = vand.u32 %v275, 4294901760
        %v2284 = vsub.f32 %v275, %v2283
        %2285 = vmatprep.subr.mxu0 %v2284
        %v2286 = vand.u32 %v274, 4294901760
        %v2287 = vsub.f32 %v274, %v2286
        %2288 = vmatpush1.msra.mxu0 %v2287
        %v2289 = vand.u32 %v267, 4294901760
        %v2290 = vsub.f32 %v267, %v2289
        %2291 = vmatprep.subr.mxu0 %v2290
        %v2292 = vand.u32 %v266, 4294901760
        %v2293 = vsub.f32 %v266, %v2292
        %2294 = vmatpush1.msra.mxu0 %v2293
        %v2295 = vand.u32 %v259, 4294901760
        %v2296 = vsub.f32 %v259, %v2295
        %2297 = vmatprep.subr.mxu0 %v2296
        %v2298 = vand.u32 %v258, 4294901760
        %v2299 = vsub.f32 %v258, %v2298
        %2300 = vmatpush1.msra.mxu0 %v2299
        %v2301 = vand.u32 %v251, 4294901760
        %v2302 = vsub.f32 %v251, %v2301
        %2303 = vmatprep.subr.mxu0 %v2302
        %v2304 = vand.u32 %v250, 4294901760
        %v2305 = vsub.f32 %v250, %v2304
        %2306 = vmatpush1.msra.mxu0 %v2305
        %v2307 = vand.u32 %v243, 4294901760
        %v2308 = vsub.f32 %v243, %v2307
        %2309 = vmatprep.subr.mxu0 %v2308
        %v2310 = vand.u32 %v242, 4294901760
        %v2311 = vsub.f32 %v242, %v2310
        %2312 = vmatpush1.msra.mxu0 %v2311
        %v2313 = vand.u32 %v235, 4294901760
        %v2314 = vsub.f32 %v235, %v2313
        %2315 = vmatprep.subr.mxu0 %v2314
        %v2316 = vand.u32 %v234, 4294901760
        %v2317 = vsub.f32 %v234, %v2316
        %2318 = vmatpush1.msra.mxu0 %v2317
        %v2319 = vand.u32 %v227, 4294901760
        %v2320 = vsub.f32 %v227, %v2319
        %2321 = vmatprep.subr.mxu0 %v2320
        %v2322 = vand.u32 %v226, 4294901760
        %v2323 = vsub.f32 %v226, %v2322
        %2324 = vmatpush1.msra.mxu0 %v2323
        %v2325 = vand.u32 %v219, 4294901760
        %v2326 = vsub.f32 %v219, %v2325
        %2327 = vmatprep.subr.mxu0 %v2326
        %v2328 = vand.u32 %v218, 4294901760
        %v2329 = vsub.f32 %v218, %v2328
        %2330 = vmatpush1.msra.mxu0 %v2329
        %v2331 = vand.u32 %v211, 4294901760
        %v2332 = vsub.f32 %v211, %v2331
        %2333 = vmatprep.subr.mxu0 %v2332
        %v2334 = vand.u32 %v210, 4294901760
        %v2335 = vsub.f32 %v210, %v2334
        %2336 = vmatpush1.msra.mxu0 %v2335
        %v2337 = vand.u32 %v203, 4294901760
        %v2338 = vsub.f32 %v203, %v2337
        %2339 = vmatprep.subr.mxu0 %v2338
        %v2340 = vand.u32 %v202, 4294901760
        %v2341 = vsub.f32 %v202, %v2340
        %2342 = vmatpush1.msra.mxu0 %v2341
        %v2343 = vand.u32 %v195, 4294901760
        %v2344 = vsub.f32 %v195, %v2343
        %2345 = vmatprep.subr.mxu0 %v2344
        %v2346 = vand.u32 %v194, 4294901760
        %v2347 = vsub.f32 %v194, %v2346
        %2348 = vmatpush1.msra.mxu0 %v2347
        %v2349 = vand.u32 %v187, 4294901760
        %v2350 = vsub.f32 %v187, %v2349
        %2351 = vmatprep.subr.mxu0 %v2350
        %v2352 = vand.u32 %v186, 4294901760
        %v2353 = vsub.f32 %v186, %v2352
        %2354 = vmatpush1.msra.mxu0 %v2353
        %v2355 = vand.u32 %v179, 4294901760
        %v2356 = vsub.f32 %v179, %v2355
        %2357 = vmatprep.subr.mxu0 %v2356
        %v2358 = vand.u32 %v178, 4294901760
        %v2359 = vsub.f32 %v178, %v2358
        %2360 = vmatpush1.msra.mxu0 %v2359
        %v2361 = vand.u32 %v427, 4294901760
        %v2362 = vsub.f32 %v427, %v2361
        %2363 = vmatprep.subr.mxu0 %v2362
        %v2364 = vand.u32 %v426, 4294901760
        %v2365 = vsub.f32 %v426, %v2364
        %2366 = vmatpush2.msra.mxu0 %v2365
        %v2367 = vand.u32 %v419, 4294901760
        %v2368 = vsub.f32 %v419, %v2367
        %2369 = vmatprep.subr.mxu0 %v2368
        %v2370 = vand.u32 %v418, 4294901760
        %v2371 = vsub.f32 %v418, %v2370
        %2372 = vmatpush2.msra.mxu0 %v2371
        %v2373 = vand.u32 %v411, 4294901760
        %v2374 = vsub.f32 %v411, %v2373
        %2375 = vmatprep.subr.mxu0 %v2374
        %v2376 = vand.u32 %v410, 4294901760
        %v2377 = vsub.f32 %v410, %v2376
        %2378 = vmatpush2.msra.mxu0 %v2377
        %v2379 = vand.u32 %v403, 4294901760
        %v2380 = vsub.f32 %v403, %v2379
        %2381 = vmatprep.subr.mxu0 %v2380
        %v2382 = vand.u32 %v402, 4294901760
        %v2383 = vsub.f32 %v402, %v2382
        %2384 = vmatpush2.msra.mxu0 %v2383
        %v2385 = vand.u32 %v395, 4294901760
        %v2386 = vsub.f32 %v395, %v2385
        %2387 = vmatprep.subr.mxu0 %v2386
        %v2388 = vand.u32 %v394, 4294901760
        %v2389 = vsub.f32 %v394, %v2388
        %2390 = vmatpush2.msra.mxu0 %v2389
        %v2391 = vand.u32 %v387, 4294901760
        %v2392 = vsub.f32 %v387, %v2391
        %2393 = vmatprep.subr.mxu0 %v2392
        %v2394 = vand.u32 %v386, 4294901760
        %v2395 = vsub.f32 %v386, %v2394
        %2396 = vmatpush2.msra.mxu0 %v2395
        %v2397 = vand.u32 %v379, 4294901760
        %v2398 = vsub.f32 %v379, %v2397
        %2399 = vmatprep.subr.mxu0 %v2398
        %v2400 = vand.u32 %v378, 4294901760
        %v2401 = vsub.f32 %v378, %v2400
        %2402 = vmatpush2.msra.mxu0 %v2401
        %v2403 = vand.u32 %v371, 4294901760
        %v2404 = vsub.f32 %v371, %v2403
        %2405 = vmatprep.subr.mxu0 %v2404
        %v2406 = vand.u32 %v370, 4294901760
        %v2407 = vsub.f32 %v370, %v2406
        %2408 = vmatpush2.msra.mxu0 %v2407
        %v2409 = vand.u32 %v363, 4294901760
        %v2410 = vsub.f32 %v363, %v2409
        %2411 = vmatprep.subr.mxu0 %v2410
        %v2412 = vand.u32 %v362, 4294901760
        %v2413 = vsub.f32 %v362, %v2412
        %2414 = vmatpush2.msra.mxu0 %v2413
        %v2415 = vand.u32 %v355, 4294901760
        %v2416 = vsub.f32 %v355, %v2415
        %2417 = vmatprep.subr.mxu0 %v2416
        %v2418 = vand.u32 %v354, 4294901760
        %v2419 = vsub.f32 %v354, %v2418
        %2420 = vmatpush2.msra.mxu0 %v2419
        %v2421 = vand.u32 %v347, 4294901760
        %v2422 = vsub.f32 %v347, %v2421
        %2423 = vmatprep.subr.mxu0 %v2422
        %v2424 = vand.u32 %v346, 4294901760
        %v2425 = vsub.f32 %v346, %v2424
        %2426 = vmatpush2.msra.mxu0 %v2425
        %v2427 = vand.u32 %v339, 4294901760
        %v2428 = vsub.f32 %v339, %v2427
        %2429 = vmatprep.subr.mxu0 %v2428
        %v2430 = vand.u32 %v338, 4294901760
        %v2431 = vsub.f32 %v338, %v2430
        %2432 = vmatpush2.msra.mxu0 %v2431
        %v2433 = vand.u32 %v331, 4294901760
        %v2434 = vsub.f32 %v331, %v2433
        %2435 = vmatprep.subr.mxu0 %v2434
        %v2436 = vand.u32 %v330, 4294901760
        %v2437 = vsub.f32 %v330, %v2436
        %2438 = vmatpush2.msra.mxu0 %v2437
        %v2439 = vand.u32 %v323, 4294901760
        %v2440 = vsub.f32 %v323, %v2439
        %2441 = vmatprep.subr.mxu0 %v2440
        %v2442 = vand.u32 %v322, 4294901760
        %v2443 = vsub.f32 %v322, %v2442
        %2444 = vmatpush2.msra.mxu0 %v2443
        %v2445 = vand.u32 %v315, 4294901760
        %v2446 = vsub.f32 %v315, %v2445
        %2447 = vmatprep.subr.mxu0 %v2446
        %v2448 = vand.u32 %v314, 4294901760
        %v2449 = vsub.f32 %v314, %v2448
        %2450 = vmatpush2.msra.mxu0 %v2449
        %v2451 = vand.u32 %v307, 4294901760
        %v2452 = vsub.f32 %v307, %v2451
        %2453 = vmatprep.subr.mxu0 %v2452
        %v2454 = vand.u32 %v306, 4294901760
        %v2455 = vsub.f32 %v306, %v2454
        %2456 = vmatpush2.msra.mxu0 %v2455
        %v2457 = vand.u32 %v440, 4294901760
        %v2458 = vsub.f32 %v440, %v2457
        %2459 = vmatprep.mubr.f32.mxu0 %v2458
        %v2460 = vand.u32 %v439, 4294901760
        %v2461 = vsub.f32 %v439, %v2460
        %2462 = vmatmul.mubr.f32.gmra.mxu0 %v2461
        %v2463 = vpop.f32.mrf.mxu0
        %v2464 = vadd.f32 %v2261, %v2463
        %v2465 = vpop.f32.mrf.mxu0
        %v2466 = vadd.f32 %v2263, %v2465
        %2467 = vdwg.mxu0
        %v2468 = vand.u32 %v299, 4294901760
        %2469 = vmatprep.subr.mxu0 %v2468
        %v2470 = vand.u32 %v298, 4294901760
        %2471 = vmatpush1.msra.mxu0 %v2470
        %v2472 = vand.u32 %v291, 4294901760
        %2473 = vmatprep.subr.mxu0 %v2472
        %v2474 = vand.u32 %v290, 4294901760
        %2475 = vmatpush1.msra.mxu0 %v2474
        %v2476 = vand.u32 %v283, 4294901760
        %2477 = vmatprep.subr.mxu0 %v2476
        %v2478 = vand.u32 %v282, 4294901760
        %2479 = vmatpush1.msra.mxu0 %v2478
        %v2480 = vand.u32 %v275, 4294901760
        %2481 = vmatprep.subr.mxu0 %v2480
        %v2482 = vand.u32 %v274, 4294901760
        %2483 = vmatpush1.msra.mxu0 %v2482
        %v2484 = vand.u32 %v267, 4294901760
        %2485 = vmatprep.subr.mxu0 %v2484
        %v2486 = vand.u32 %v266, 4294901760
        %2487 = vmatpush1.msra.mxu0 %v2486
        %v2488 = vand.u32 %v259, 4294901760
        %2489 = vmatprep.subr.mxu0 %v2488
        %v2490 = vand.u32 %v258, 4294901760
        %2491 = vmatpush1.msra.mxu0 %v2490
        %v2492 = vand.u32 %v251, 4294901760
        %2493 = vmatprep.subr.mxu0 %v2492
        %v2494 = vand.u32 %v250, 4294901760
        %2495 = vmatpush1.msra.mxu0 %v2494
        %v2496 = vand.u32 %v243, 4294901760
        %2497 = vmatprep.subr.mxu0 %v2496
        %v2498 = vand.u32 %v242, 4294901760
        %2499 = vmatpush1.msra.mxu0 %v2498
        %v2500 = vand.u32 %v235, 4294901760
        %2501 = vmatprep.subr.mxu0 %v2500
        %v2502 = vand.u32 %v234, 4294901760
        %2503 = vmatpush1.msra.mxu0 %v2502
        %v2504 = vand.u32 %v227, 4294901760
        %2505 = vmatprep.subr.mxu0 %v2504
        %v2506 = vand.u32 %v226, 4294901760
        %2507 = vmatpush1.msra.mxu0 %v2506
        %v2508 = vand.u32 %v219, 4294901760
        %2509 = vmatprep.subr.mxu0 %v2508
        %v2510 = vand.u32 %v218, 4294901760
        %2511 = vmatpush1.msra.mxu0 %v2510
        %v2512 = vand.u32 %v211, 4294901760
        %2513 = vmatprep.subr.mxu0 %v2512
        %v2514 = vand.u32 %v210, 4294901760
        %2515 = vmatpush1.msra.mxu0 %v2514
        %v2516 = vand.u32 %v203, 4294901760
        %2517 = vmatprep.subr.mxu0 %v2516
        %v2518 = vand.u32 %v202, 4294901760
        %2519 = vmatpush1.msra.mxu0 %v2518
        %v2520 = vand.u32 %v195, 4294901760
        %2521 = vmatprep.subr.mxu0 %v2520
        %v2522 = vand.u32 %v194, 4294901760
        %2523 = vmatpush1.msra.mxu0 %v2522
        %v2524 = vand.u32 %v187, 4294901760
        %2525 = vmatprep.subr.mxu0 %v2524
        %v2526 = vand.u32 %v186, 4294901760
        %2527 = vmatpush1.msra.mxu0 %v2526
        %v2528 = vand.u32 %v179, 4294901760
        %2529 = vmatprep.subr.mxu0 %v2528
        %v2530 = vand.u32 %v178, 4294901760
        %2531 = vmatpush1.msra.mxu0 %v2530
        %v2532 = vand.u32 %v427, 4294901760
        %2533 = vmatprep.subr.mxu0 %v2532
        %v2534 = vand.u32 %v426, 4294901760
        %2535 = vmatpush2.msra.mxu0 %v2534
        %v2536 = vand.u32 %v419, 4294901760
        %2537 = vmatprep.subr.mxu0 %v2536
        %v2538 = vand.u32 %v418, 4294901760
        %2539 = vmatpush2.msra.mxu0 %v2538
        %v2540 = vand.u32 %v411, 4294901760
        %2541 = vmatprep.subr.mxu0 %v2540
        %v2542 = vand.u32 %v410, 4294901760
        %2543 = vmatpush2.msra.mxu0 %v2542
        %v2544 = vand.u32 %v403, 4294901760
        %2545 = vmatprep.subr.mxu0 %v2544
        %v2546 = vand.u32 %v402, 4294901760
        %2547 = vmatpush2.msra.mxu0 %v2546
        %v2548 = vand.u32 %v395, 4294901760
        %2549 = vmatprep.subr.mxu0 %v2548
        %v2550 = vand.u32 %v394, 4294901760
        %2551 = vmatpush2.msra.mxu0 %v2550
        %v2552 = vand.u32 %v387, 4294901760
        %2553 = vmatprep.subr.mxu0 %v2552
        %v2554 = vand.u32 %v386, 4294901760
        %2555 = vmatpush2.msra.mxu0 %v2554
        %v2556 = vand.u32 %v379, 4294901760
        %2557 = vmatprep.subr.mxu0 %v2556
        %v2558 = vand.u32 %v378, 4294901760
        %2559 = vmatpush2.msra.mxu0 %v2558
        %v2560 = vand.u32 %v371, 4294901760
        %2561 = vmatprep.subr.mxu0 %v2560
        %v2562 = vand.u32 %v370, 4294901760
        %2563 = vmatpush2.msra.mxu0 %v2562
        %v2564 = vand.u32 %v363, 4294901760
        %2565 = vmatprep.subr.mxu0 %v2564
        %v2566 = vand.u32 %v362, 4294901760
        %2567 = vmatpush2.msra.mxu0 %v2566
        %v2568 = vand.u32 %v355, 4294901760
        %2569 = vmatprep.subr.mxu0 %v2568
        %v2570 = vand.u32 %v354, 4294901760
        %2571 = vmatpush2.msra.mxu0 %v2570
        %v2572 = vand.u32 %v347, 4294901760
        %2573 = vmatprep.subr.mxu0 %v2572
        %v2574 = vand.u32 %v346, 4294901760
        %2575 = vmatpush2.msra.mxu0 %v2574
        %v2576 = vand.u32 %v339, 4294901760
        %2577 = vmatprep.subr.mxu0 %v2576
        %v2578 = vand.u32 %v338, 4294901760
        %2579 = vmatpush2.msra.mxu0 %v2578
        %v2580 = vand.u32 %v331, 4294901760
        %2581 = vmatprep.subr.mxu0 %v2580
        %v2582 = vand.u32 %v330, 4294901760
        %2583 = vmatpush2.msra.mxu0 %v2582
        %v2584 = vand.u32 %v323, 4294901760
        %2585 = vmatprep.subr.mxu0 %v2584
        %v2586 = vand.u32 %v322, 4294901760
        %2587 = vmatpush2.msra.mxu0 %v2586
        %v2588 = vand.u32 %v315, 4294901760
        %2589 = vmatprep.subr.mxu0 %v2588
        %v2590 = vand.u32 %v314, 4294901760
        %2591 = vmatpush2.msra.mxu0 %v2590
        %v2592 = vand.u32 %v307, 4294901760
        %2593 = vmatprep.subr.mxu0 %v2592
        %v2594 = vand.u32 %v306, 4294901760
        %2595 = vmatpush2.msra.mxu0 %v2594
        %v2596 = vand.u32 %v440, 4294901760
        %v2597 = vsub.f32 %v440, %v2596
        %v2598 = vand.u32 %v2597, 4294901760
        %2599 = vmatprep.mubr.f32.mxu0 %v2598
        %v2600 = vand.u32 %v439, 4294901760
        %v2601 = vsub.f32 %v439, %v2600
        %v2602 = vand.u32 %v2601, 4294901760
        %2603 = vmatmul.mubr.f32.gmra.mxu0 %v2602
        %v2604 = vpop.f32.mrf.mxu0
        %v2605 = vadd.f32 %v2464, %v2604
        %v2606 = vpop.f32.mrf.mxu0
        %v2607 = vadd.f32 %v2466, %v2606
        %2608 = vdwg.mxu0
        %v2609 = vand.u32 %v299, 4294901760
        %v2610 = vsub.f32 %v299, %v2609
        %v2611 = vand.u32 %v2610, 4294901760
        %2612 = vmatprep.subr.mxu0 %v2611
        %v2613 = vand.u32 %v298, 4294901760
        %v2614 = vsub.f32 %v298, %v2613
        %v2615 = vand.u32 %v2614, 4294901760
        %2616 = vmatpush1.msra.mxu0 %v2615
        %v2617 = vand.u32 %v291, 4294901760
        %v2618 = vsub.f32 %v291, %v2617
        %v2619 = vand.u32 %v2618, 4294901760
        %2620 = vmatprep.subr.mxu0 %v2619
        %v2621 = vand.u32 %v290, 4294901760
        %v2622 = vsub.f32 %v290, %v2621
        %v2623 = vand.u32 %v2622, 4294901760
        %2624 = vmatpush1.msra.mxu0 %v2623
        %v2625 = vand.u32 %v283, 4294901760
        %v2626 = vsub.f32 %v283, %v2625
        %v2627 = vand.u32 %v2626, 4294901760
        %2628 = vmatprep.subr.mxu0 %v2627
        %v2629 = vand.u32 %v282, 4294901760
        %v2630 = vsub.f32 %v282, %v2629
        %v2631 = vand.u32 %v2630, 4294901760
        %2632 = vmatpush1.msra.mxu0 %v2631
        %v2633 = vand.u32 %v275, 4294901760
        %v2634 = vsub.f32 %v275, %v2633
        %v2635 = vand.u32 %v2634, 4294901760
        %2636 = vmatprep.subr.mxu0 %v2635
        %v2637 = vand.u32 %v274, 4294901760
        %v2638 = vsub.f32 %v274, %v2637
        %v2639 = vand.u32 %v2638, 4294901760
        %2640 = vmatpush1.msra.mxu0 %v2639
        %v2641 = vand.u32 %v267, 4294901760
        %v2642 = vsub.f32 %v267, %v2641
        %v2643 = vand.u32 %v2642, 4294901760
        %2644 = vmatprep.subr.mxu0 %v2643
        %v2645 = vand.u32 %v266, 4294901760
        %v2646 = vsub.f32 %v266, %v2645
        %v2647 = vand.u32 %v2646, 4294901760
        %2648 = vmatpush1.msra.mxu0 %v2647
        %v2649 = vand.u32 %v259, 4294901760
        %v2650 = vsub.f32 %v259, %v2649
        %v2651 = vand.u32 %v2650, 4294901760
        %2652 = vmatprep.subr.mxu0 %v2651
        %v2653 = vand.u32 %v258, 4294901760
        %v2654 = vsub.f32 %v258, %v2653
        %v2655 = vand.u32 %v2654, 4294901760
        %2656 = vmatpush1.msra.mxu0 %v2655
        %v2657 = vand.u32 %v251, 4294901760
        %v2658 = vsub.f32 %v251, %v2657
        %v2659 = vand.u32 %v2658, 4294901760
        %2660 = vmatprep.subr.mxu0 %v2659
        %v2661 = vand.u32 %v250, 4294901760
        %v2662 = vsub.f32 %v250, %v2661
        %v2663 = vand.u32 %v2662, 4294901760
        %2664 = vmatpush1.msra.mxu0 %v2663
        %v2665 = vand.u32 %v243, 4294901760
        %v2666 = vsub.f32 %v243, %v2665
        %v2667 = vand.u32 %v2666, 4294901760
        %2668 = vmatprep.subr.mxu0 %v2667
        %v2669 = vand.u32 %v242, 4294901760
        %v2670 = vsub.f32 %v242, %v2669
        %v2671 = vand.u32 %v2670, 4294901760
        %2672 = vmatpush1.msra.mxu0 %v2671
        %v2673 = vand.u32 %v235, 4294901760
        %v2674 = vsub.f32 %v235, %v2673
        %v2675 = vand.u32 %v2674, 4294901760
        %2676 = vmatprep.subr.mxu0 %v2675
        %v2677 = vand.u32 %v234, 4294901760
        %v2678 = vsub.f32 %v234, %v2677
        %v2679 = vand.u32 %v2678, 4294901760
        %2680 = vmatpush1.msra.mxu0 %v2679
        %v2681 = vand.u32 %v227, 4294901760
        %v2682 = vsub.f32 %v227, %v2681
        %v2683 = vand.u32 %v2682, 4294901760
        %2684 = vmatprep.subr.mxu0 %v2683
        %v2685 = vand.u32 %v226, 4294901760
        %v2686 = vsub.f32 %v226, %v2685
        %v2687 = vand.u32 %v2686, 4294901760
        %2688 = vmatpush1.msra.mxu0 %v2687
        %v2689 = vand.u32 %v219, 4294901760
        %v2690 = vsub.f32 %v219, %v2689
        %v2691 = vand.u32 %v2690, 4294901760
        %2692 = vmatprep.subr.mxu0 %v2691
        %v2693 = vand.u32 %v218, 4294901760
        %v2694 = vsub.f32 %v218, %v2693
        %v2695 = vand.u32 %v2694, 4294901760
        %2696 = vmatpush1.msra.mxu0 %v2695
        %v2697 = vand.u32 %v211, 4294901760
        %v2698 = vsub.f32 %v211, %v2697
        %v2699 = vand.u32 %v2698, 4294901760
        %2700 = vmatprep.subr.mxu0 %v2699
        %v2701 = vand.u32 %v210, 4294901760
        %v2702 = vsub.f32 %v210, %v2701
        %v2703 = vand.u32 %v2702, 4294901760
        %2704 = vmatpush1.msra.mxu0 %v2703
        %v2705 = vand.u32 %v203, 4294901760
        %v2706 = vsub.f32 %v203, %v2705
        %v2707 = vand.u32 %v2706, 4294901760
        %2708 = vmatprep.subr.mxu0 %v2707
        %v2709 = vand.u32 %v202, 4294901760
        %v2710 = vsub.f32 %v202, %v2709
        %v2711 = vand.u32 %v2710, 4294901760
        %2712 = vmatpush1.msra.mxu0 %v2711
        %v2713 = vand.u32 %v195, 4294901760
        %v2714 = vsub.f32 %v195, %v2713
        %v2715 = vand.u32 %v2714, 4294901760
        %2716 = vmatprep.subr.mxu0 %v2715
        %v2717 = vand.u32 %v194, 4294901760
        %v2718 = vsub.f32 %v194, %v2717
        %v2719 = vand.u32 %v2718, 4294901760
        %2720 = vmatpush1.msra.mxu0 %v2719
        %v2721 = vand.u32 %v187, 4294901760
        %v2722 = vsub.f32 %v187, %v2721
        %v2723 = vand.u32 %v2722, 4294901760
        %2724 = vmatprep.subr.mxu0 %v2723
        %v2725 = vand.u32 %v186, 4294901760
        %v2726 = vsub.f32 %v186, %v2725
        %v2727 = vand.u32 %v2726, 4294901760
        %2728 = vmatpush1.msra.mxu0 %v2727
        %v2729 = vand.u32 %v179, 4294901760
        %v2730 = vsub.f32 %v179, %v2729
        %v2731 = vand.u32 %v2730, 4294901760
        %2732 = vmatprep.subr.mxu0 %v2731
        %v2733 = vand.u32 %v178, 4294901760
        %v2734 = vsub.f32 %v178, %v2733
        %v2735 = vand.u32 %v2734, 4294901760
        %2736 = vmatpush1.msra.mxu0 %v2735
        %v2737 = vand.u32 %v427, 4294901760
        %v2738 = vsub.f32 %v427, %v2737
        %v2739 = vand.u32 %v2738, 4294901760
        %2740 = vmatprep.subr.mxu0 %v2739
        %v2741 = vand.u32 %v426, 4294901760
        %v2742 = vsub.f32 %v426, %v2741
        %v2743 = vand.u32 %v2742, 4294901760
        %2744 = vmatpush2.msra.mxu0 %v2743
        %v2745 = vand.u32 %v419, 4294901760
        %v2746 = vsub.f32 %v419, %v2745
        %v2747 = vand.u32 %v2746, 4294901760
        %2748 = vmatprep.subr.mxu0 %v2747
        %v2749 = vand.u32 %v418, 4294901760
        %v2750 = vsub.f32 %v418, %v2749
        %v2751 = vand.u32 %v2750, 4294901760
        %2752 = vmatpush2.msra.mxu0 %v2751
        %v2753 = vand.u32 %v411, 4294901760
        %v2754 = vsub.f32 %v411, %v2753
        %v2755 = vand.u32 %v2754, 4294901760
        %2756 = vmatprep.subr.mxu0 %v2755
        %v2757 = vand.u32 %v410, 4294901760
        %v2758 = vsub.f32 %v410, %v2757
        %v2759 = vand.u32 %v2758, 4294901760
        %2760 = vmatpush2.msra.mxu0 %v2759
        %v2761 = vand.u32 %v403, 4294901760
        %v2762 = vsub.f32 %v403, %v2761
        %v2763 = vand.u32 %v2762, 4294901760
        %2764 = vmatprep.subr.mxu0 %v2763
        %v2765 = vand.u32 %v402, 4294901760
        %v2766 = vsub.f32 %v402, %v2765
        %v2767 = vand.u32 %v2766, 4294901760
        %2768 = vmatpush2.msra.mxu0 %v2767
        %v2769 = vand.u32 %v395, 4294901760
        %v2770 = vsub.f32 %v395, %v2769
        %v2771 = vand.u32 %v2770, 4294901760
        %2772 = vmatprep.subr.mxu0 %v2771
        %v2773 = vand.u32 %v394, 4294901760
        %v2774 = vsub.f32 %v394, %v2773
        %v2775 = vand.u32 %v2774, 4294901760
        %2776 = vmatpush2.msra.mxu0 %v2775
        %v2777 = vand.u32 %v387, 4294901760
        %v2778 = vsub.f32 %v387, %v2777
        %v2779 = vand.u32 %v2778, 4294901760
        %2780 = vmatprep.subr.mxu0 %v2779
        %v2781 = vand.u32 %v386, 4294901760
        %v2782 = vsub.f32 %v386, %v2781
        %v2783 = vand.u32 %v2782, 4294901760
        %2784 = vmatpush2.msra.mxu0 %v2783
        %v2785 = vand.u32 %v379, 4294901760
        %v2786 = vsub.f32 %v379, %v2785
        %v2787 = vand.u32 %v2786, 4294901760
        %2788 = vmatprep.subr.mxu0 %v2787
        %v2789 = vand.u32 %v378, 4294901760
        %v2790 = vsub.f32 %v378, %v2789
        %v2791 = vand.u32 %v2790, 4294901760
        %2792 = vmatpush2.msra.mxu0 %v2791
        %v2793 = vand.u32 %v371, 4294901760
        %v2794 = vsub.f32 %v371, %v2793
        %v2795 = vand.u32 %v2794, 4294901760
        %2796 = vmatprep.subr.mxu0 %v2795
        %v2797 = vand.u32 %v370, 4294901760
        %v2798 = vsub.f32 %v370, %v2797
        %v2799 = vand.u32 %v2798, 4294901760
        %2800 = vmatpush2.msra.mxu0 %v2799
        %v2801 = vand.u32 %v363, 4294901760
        %v2802 = vsub.f32 %v363, %v2801
        %v2803 = vand.u32 %v2802, 4294901760
        %2804 = vmatprep.subr.mxu0 %v2803
        %v2805 = vand.u32 %v362, 4294901760
        %v2806 = vsub.f32 %v362, %v2805
        %v2807 = vand.u32 %v2806, 4294901760
        %2808 = vmatpush2.msra.mxu0 %v2807
        %v2809 = vand.u32 %v355, 4294901760
        %v2810 = vsub.f32 %v355, %v2809
        %v2811 = vand.u32 %v2810, 4294901760
        %2812 = vmatprep.subr.mxu0 %v2811
        %v2813 = vand.u32 %v354, 4294901760
        %v2814 = vsub.f32 %v354, %v2813
        %v2815 = vand.u32 %v2814, 4294901760
        %2816 = vmatpush2.msra.mxu0 %v2815
        %v2817 = vand.u32 %v347, 4294901760
        %v2818 = vsub.f32 %v347, %v2817
        %v2819 = vand.u32 %v2818, 4294901760
        %2820 = vmatprep.subr.mxu0 %v2819
        %v2821 = vand.u32 %v346, 4294901760
        %v2822 = vsub.f32 %v346, %v2821
        %v2823 = vand.u32 %v2822, 4294901760
        %2824 = vmatpush2.msra.mxu0 %v2823
        %v2825 = vand.u32 %v339, 4294901760
        %v2826 = vsub.f32 %v339, %v2825
        %v2827 = vand.u32 %v2826, 4294901760
        %2828 = vmatprep.subr.mxu0 %v2827
        %v2829 = vand.u32 %v338, 4294901760
        %v2830 = vsub.f32 %v338, %v2829
        %v2831 = vand.u32 %v2830, 4294901760
        %2832 = vmatpush2.msra.mxu0 %v2831
        %v2833 = vand.u32 %v331, 4294901760
        %v2834 = vsub.f32 %v331, %v2833
        %v2835 = vand.u32 %v2834, 4294901760
        %2836 = vmatprep.subr.mxu0 %v2835
        %v2837 = vand.u32 %v330, 4294901760
        %v2838 = vsub.f32 %v330, %v2837
        %v2839 = vand.u32 %v2838, 4294901760
        %2840 = vmatpush2.msra.mxu0 %v2839
        %v2841 = vand.u32 %v323, 4294901760
        %v2842 = vsub.f32 %v323, %v2841
        %v2843 = vand.u32 %v2842, 4294901760
        %2844 = vmatprep.subr.mxu0 %v2843
        %v2845 = vand.u32 %v322, 4294901760
        %v2846 = vsub.f32 %v322, %v2845
        %v2847 = vand.u32 %v2846, 4294901760
        %2848 = vmatpush2.msra.mxu0 %v2847
        %v2849 = vand.u32 %v315, 4294901760
        %v2850 = vsub.f32 %v315, %v2849
        %v2851 = vand.u32 %v2850, 4294901760
        %2852 = vmatprep.subr.mxu0 %v2851
        %v2853 = vand.u32 %v314, 4294901760
        %v2854 = vsub.f32 %v314, %v2853
        %v2855 = vand.u32 %v2854, 4294901760
        %2856 = vmatpush2.msra.mxu0 %v2855
        %v2857 = vand.u32 %v307, 4294901760
        %v2858 = vsub.f32 %v307, %v2857
        %v2859 = vand.u32 %v2858, 4294901760
        %2860 = vmatprep.subr.mxu0 %v2859
        %v2861 = vand.u32 %v306, 4294901760
        %v2862 = vsub.f32 %v306, %v2861
        %v2863 = vand.u32 %v2862, 4294901760
        %2864 = vmatpush2.msra.mxu0 %v2863
        %v2865 = vand.u32 %v440, 4294901760
        %2866 = vmatprep.mubr.f32.mxu0 %v2865
        %v2867 = vand.u32 %v439, 4294901760
        %2868 = vmatmul.mubr.f32.gmra.mxu0 %v2867
        %v2869 = vpop.f32.mrf.mxu0
        %v2870 = vadd.f32 %v2605, %v2869
        %v2871 = vpop.f32.mrf.mxu0
        %v2872 = vadd.f32 %v2607, %v2871
        %2873 = vdwg.mxu0
        %v2874 = vand.u32 %v299, 4294901760
        %2875 = vmatprep.subr.mxu0 %v2874
        %v2876 = vand.u32 %v298, 4294901760
        %2877 = vmatpush1.msra.mxu0 %v2876
        %v2878 = vand.u32 %v291, 4294901760
        %2879 = vmatprep.subr.mxu0 %v2878
        %v2880 = vand.u32 %v290, 4294901760
        %2881 = vmatpush1.msra.mxu0 %v2880
        %v2882 = vand.u32 %v283, 4294901760
        %2883 = vmatprep.subr.mxu0 %v2882
        %v2884 = vand.u32 %v282, 4294901760
        %2885 = vmatpush1.msra.mxu0 %v2884
        %v2886 = vand.u32 %v275, 4294901760
        %2887 = vmatprep.subr.mxu0 %v2886
        %v2888 = vand.u32 %v274, 4294901760
        %2889 = vmatpush1.msra.mxu0 %v2888
        %v2890 = vand.u32 %v267, 4294901760
        %2891 = vmatprep.subr.mxu0 %v2890
        %v2892 = vand.u32 %v266, 4294901760
        %2893 = vmatpush1.msra.mxu0 %v2892
        %v2894 = vand.u32 %v259, 4294901760
        %2895 = vmatprep.subr.mxu0 %v2894
        %v2896 = vand.u32 %v258, 4294901760
        %2897 = vmatpush1.msra.mxu0 %v2896
        %v2898 = vand.u32 %v251, 4294901760
        %2899 = vmatprep.subr.mxu0 %v2898
        %v2900 = vand.u32 %v250, 4294901760
        %2901 = vmatpush1.msra.mxu0 %v2900
        %v2902 = vand.u32 %v243, 4294901760
        %2903 = vmatprep.subr.mxu0 %v2902
        %v2904 = vand.u32 %v242, 4294901760
        %2905 = vmatpush1.msra.mxu0 %v2904
        %v2906 = vand.u32 %v235, 4294901760
        %2907 = vmatprep.subr.mxu0 %v2906
        %v2908 = vand.u32 %v234, 4294901760
        %2909 = vmatpush1.msra.mxu0 %v2908
        %v2910 = vand.u32 %v227, 4294901760
        %2911 = vmatprep.subr.mxu0 %v2910
        %v2912 = vand.u32 %v226, 4294901760
        %2913 = vmatpush1.msra.mxu0 %v2912
        %v2914 = vand.u32 %v219, 4294901760
        %2915 = vmatprep.subr.mxu0 %v2914
        %v2916 = vand.u32 %v218, 4294901760
        %2917 = vmatpush1.msra.mxu0 %v2916
        %v2918 = vand.u32 %v211, 4294901760
        %2919 = vmatprep.subr.mxu0 %v2918
        %v2920 = vand.u32 %v210, 4294901760
        %2921 = vmatpush1.msra.mxu0 %v2920
        %v2922 = vand.u32 %v203, 4294901760
        %2923 = vmatprep.subr.mxu0 %v2922
        %v2924 = vand.u32 %v202, 4294901760
        %2925 = vmatpush1.msra.mxu0 %v2924
        %v2926 = vand.u32 %v195, 4294901760
        %2927 = vmatprep.subr.mxu0 %v2926
        %v2928 = vand.u32 %v194, 4294901760
        %2929 = vmatpush1.msra.mxu0 %v2928
        %v2930 = vand.u32 %v187, 4294901760
        %2931 = vmatprep.subr.mxu0 %v2930
        %v2932 = vand.u32 %v186, 4294901760
        %2933 = vmatpush1.msra.mxu0 %v2932
        %v2934 = vand.u32 %v179, 4294901760
        %2935 = vmatprep.subr.mxu0 %v2934
        %v2936 = vand.u32 %v178, 4294901760
        %2937 = vmatpush1.msra.mxu0 %v2936
        %v2938 = vand.u32 %v427, 4294901760
        %2939 = vmatprep.subr.mxu0 %v2938
        %v2940 = vand.u32 %v426, 4294901760
        %2941 = vmatpush2.msra.mxu0 %v2940
        %v2942 = vand.u32 %v419, 4294901760
        %2943 = vmatprep.subr.mxu0 %v2942
        %v2944 = vand.u32 %v418, 4294901760
        %2945 = vmatpush2.msra.mxu0 %v2944
        %v2946 = vand.u32 %v411, 4294901760
        %2947 = vmatprep.subr.mxu0 %v2946
        %v2948 = vand.u32 %v410, 4294901760
        %2949 = vmatpush2.msra.mxu0 %v2948
        %v2950 = vand.u32 %v403, 4294901760
        %2951 = vmatprep.subr.mxu0 %v2950
        %v2952 = vand.u32 %v402, 4294901760
        %2953 = vmatpush2.msra.mxu0 %v2952
        %v2954 = vand.u32 %v395, 4294901760
        %2955 = vmatprep.subr.mxu0 %v2954
        %v2956 = vand.u32 %v394, 4294901760
        %2957 = vmatpush2.msra.mxu0 %v2956
        %v2958 = vand.u32 %v387, 4294901760
        %2959 = vmatprep.subr.mxu0 %v2958
        %v2960 = vand.u32 %v386, 4294901760
        %2961 = vmatpush2.msra.mxu0 %v2960
        %v2962 = vand.u32 %v379, 4294901760
        %2963 = vmatprep.subr.mxu0 %v2962
        %v2964 = vand.u32 %v378, 4294901760
        %2965 = vmatpush2.msra.mxu0 %v2964
        %v2966 = vand.u32 %v371, 4294901760
        %2967 = vmatprep.subr.mxu0 %v2966
        %v2968 = vand.u32 %v370, 4294901760
        %2969 = vmatpush2.msra.mxu0 %v2968
        %v2970 = vand.u32 %v363, 4294901760
        %2971 = vmatprep.subr.mxu0 %v2970
        %v2972 = vand.u32 %v362, 4294901760
        %2973 = vmatpush2.msra.mxu0 %v2972
        %v2974 = vand.u32 %v355, 4294901760
        %2975 = vmatprep.subr.mxu0 %v2974
        %v2976 = vand.u32 %v354, 4294901760
        %2977 = vmatpush2.msra.mxu0 %v2976
        %v2978 = vand.u32 %v347, 4294901760
        %2979 = vmatprep.subr.mxu0 %v2978
        %v2980 = vand.u32 %v346, 4294901760
        %2981 = vmatpush2.msra.mxu0 %v2980
        %v2982 = vand.u32 %v339, 4294901760
        %2983 = vmatprep.subr.mxu0 %v2982
        %v2984 = vand.u32 %v338, 4294901760
        %2985 = vmatpush2.msra.mxu0 %v2984
        %v2986 = vand.u32 %v331, 4294901760
        %2987 = vmatprep.subr.mxu0 %v2986
        %v2988 = vand.u32 %v330, 4294901760
        %2989 = vmatpush2.msra.mxu0 %v2988
        %v2990 = vand.u32 %v323, 4294901760
        %2991 = vmatprep.subr.mxu0 %v2990
        %v2992 = vand.u32 %v322, 4294901760
        %2993 = vmatpush2.msra.mxu0 %v2992
        %v2994 = vand.u32 %v315, 4294901760
        %2995 = vmatprep.subr.mxu0 %v2994
        %v2996 = vand.u32 %v314, 4294901760
        %2997 = vmatpush2.msra.mxu0 %v2996
        %v2998 = vand.u32 %v307, 4294901760
        %2999 = vmatprep.subr.mxu0 %v2998
        %v3000 = vand.u32 %v306, 4294901760
        %3001 = vmatpush2.msra.mxu0 %v3000
        %v3002 = vand.u32 %v440, 4294901760
        %3003 = vmatprep.mubr.f32.mxu0 %v3002
        %v3004 = vand.u32 %v439, 4294901760
        %3005 = vmatmul.mubr.f32.gmra.mxu0 %v3004
        %v3006 = vpop.f32.mrf.mxu0
        %v3007 = vadd.f32 %v2870, %v3006
        %v3008 = vpop.f32.mrf.mxu0
        %v3009 = vadd.f32 %v2872, %v3008
        %3010 = vdwg.mxu0
        %v3011 = vand.u32 %v301, 4294901760
        %3012 = vmatprep.subr.mxu0 %v3011
        %v3013 = vand.u32 %v300, 4294901760
        %3014 = vmatpush1.msra.mxu0 %v3013
        %v3015 = vand.u32 %v293, 4294901760
        %3016 = vmatprep.subr.mxu0 %v3015
        %v3017 = vand.u32 %v292, 4294901760
        %3018 = vmatpush1.msra.mxu0 %v3017
        %v3019 = vand.u32 %v285, 4294901760
        %3020 = vmatprep.subr.mxu0 %v3019
        %v3021 = vand.u32 %v284, 4294901760
        %3022 = vmatpush1.msra.mxu0 %v3021
        %v3023 = vand.u32 %v277, 4294901760
        %3024 = vmatprep.subr.mxu0 %v3023
        %v3025 = vand.u32 %v276, 4294901760
        %3026 = vmatpush1.msra.mxu0 %v3025
        %v3027 = vand.u32 %v269, 4294901760
        %3028 = vmatprep.subr.mxu0 %v3027
        %v3029 = vand.u32 %v268, 4294901760
        %3030 = vmatpush1.msra.mxu0 %v3029
        %v3031 = vand.u32 %v261, 4294901760
        %3032 = vmatprep.subr.mxu0 %v3031
        %v3033 = vand.u32 %v260, 4294901760
        %3034 = vmatpush1.msra.mxu0 %v3033
        %v3035 = vand.u32 %v253, 4294901760
        %3036 = vmatprep.subr.mxu0 %v3035
        %v3037 = vand.u32 %v252, 4294901760
        %3038 = vmatpush1.msra.mxu0 %v3037
        %v3039 = vand.u32 %v245, 4294901760
        %3040 = vmatprep.subr.mxu0 %v3039
        %v3041 = vand.u32 %v244, 4294901760
        %3042 = vmatpush1.msra.mxu0 %v3041
        %v3043 = vand.u32 %v237, 4294901760
        %3044 = vmatprep.subr.mxu0 %v3043
        %v3045 = vand.u32 %v236, 4294901760
        %3046 = vmatpush1.msra.mxu0 %v3045
        %v3047 = vand.u32 %v229, 4294901760
        %3048 = vmatprep.subr.mxu0 %v3047
        %v3049 = vand.u32 %v228, 4294901760
        %3050 = vmatpush1.msra.mxu0 %v3049
        %v3051 = vand.u32 %v221, 4294901760
        %3052 = vmatprep.subr.mxu0 %v3051
        %v3053 = vand.u32 %v220, 4294901760
        %3054 = vmatpush1.msra.mxu0 %v3053
        %v3055 = vand.u32 %v213, 4294901760
        %3056 = vmatprep.subr.mxu0 %v3055
        %v3057 = vand.u32 %v212, 4294901760
        %3058 = vmatpush1.msra.mxu0 %v3057
        %v3059 = vand.u32 %v205, 4294901760
        %3060 = vmatprep.subr.mxu0 %v3059
        %v3061 = vand.u32 %v204, 4294901760
        %3062 = vmatpush1.msra.mxu0 %v3061
        %v3063 = vand.u32 %v197, 4294901760
        %3064 = vmatprep.subr.mxu0 %v3063
        %v3065 = vand.u32 %v196, 4294901760
        %3066 = vmatpush1.msra.mxu0 %v3065
        %v3067 = vand.u32 %v189, 4294901760
        %3068 = vmatprep.subr.mxu0 %v3067
        %v3069 = vand.u32 %v188, 4294901760
        %3070 = vmatpush1.msra.mxu0 %v3069
        %v3071 = vand.u32 %v181, 4294901760
        %3072 = vmatprep.subr.mxu0 %v3071
        %v3073 = vand.u32 %v180, 4294901760
        %3074 = vmatpush1.msra.mxu0 %v3073
        %v3075 = vand.u32 %v429, 4294901760
        %3076 = vmatprep.subr.mxu0 %v3075
        %v3077 = vand.u32 %v428, 4294901760
        %3078 = vmatpush2.msra.mxu0 %v3077
        %v3079 = vand.u32 %v421, 4294901760
        %3080 = vmatprep.subr.mxu0 %v3079
        %v3081 = vand.u32 %v420, 4294901760
        %3082 = vmatpush2.msra.mxu0 %v3081
        %v3083 = vand.u32 %v413, 4294901760
        %3084 = vmatprep.subr.mxu0 %v3083
        %v3085 = vand.u32 %v412, 4294901760
        %3086 = vmatpush2.msra.mxu0 %v3085
        %v3087 = vand.u32 %v405, 4294901760
        %3088 = vmatprep.subr.mxu0 %v3087
        %v3089 = vand.u32 %v404, 4294901760
        %3090 = vmatpush2.msra.mxu0 %v3089
        %v3091 = vand.u32 %v397, 4294901760
        %3092 = vmatprep.subr.mxu0 %v3091
        %v3093 = vand.u32 %v396, 4294901760
        %3094 = vmatpush2.msra.mxu0 %v3093
        %v3095 = vand.u32 %v389, 4294901760
        %3096 = vmatprep.subr.mxu0 %v3095
        %v3097 = vand.u32 %v388, 4294901760
        %3098 = vmatpush2.msra.mxu0 %v3097
        %v3099 = vand.u32 %v381, 4294901760
        %3100 = vmatprep.subr.mxu0 %v3099
        %v3101 = vand.u32 %v380, 4294901760
        %3102 = vmatpush2.msra.mxu0 %v3101
        %v3103 = vand.u32 %v373, 4294901760
        %3104 = vmatprep.subr.mxu0 %v3103
        %v3105 = vand.u32 %v372, 4294901760
        %3106 = vmatpush2.msra.mxu0 %v3105
        %v3107 = vand.u32 %v365, 4294901760
        %3108 = vmatprep.subr.mxu0 %v3107
        %v3109 = vand.u32 %v364, 4294901760
        %3110 = vmatpush2.msra.mxu0 %v3109
        %v3111 = vand.u32 %v357, 4294901760
        %3112 = vmatprep.subr.mxu0 %v3111
        %v3113 = vand.u32 %v356, 4294901760
        %3114 = vmatpush2.msra.mxu0 %v3113
        %v3115 = vand.u32 %v349, 4294901760
        %3116 = vmatprep.subr.mxu0 %v3115
        %v3117 = vand.u32 %v348, 4294901760
        %3118 = vmatpush2.msra.mxu0 %v3117
        %v3119 = vand.u32 %v341, 4294901760
        %3120 = vmatprep.subr.mxu0 %v3119
        %v3121 = vand.u32 %v340, 4294901760
        %3122 = vmatpush2.msra.mxu0 %v3121
        %v3123 = vand.u32 %v333, 4294901760
        %3124 = vmatprep.subr.mxu0 %v3123
        %v3125 = vand.u32 %v332, 4294901760
        %3126 = vmatpush2.msra.mxu0 %v3125
        %v3127 = vand.u32 %v325, 4294901760
        %3128 = vmatprep.subr.mxu0 %v3127
        %v3129 = vand.u32 %v324, 4294901760
        %3130 = vmatpush2.msra.mxu0 %v3129
        %v3131 = vand.u32 %v317, 4294901760
        %3132 = vmatprep.subr.mxu0 %v3131
        %v3133 = vand.u32 %v316, 4294901760
        %3134 = vmatpush2.msra.mxu0 %v3133
        %v3135 = vand.u32 %v309, 4294901760
        %3136 = vmatprep.subr.mxu0 %v3135
        %v3137 = vand.u32 %v308, 4294901760
        %3138 = vmatpush2.msra.mxu0 %v3137
        %v3139 = vand.u32 %v440, 4294901760
        %v3140 = vsub.f32 %v440, %v3139
        %v3141 = vand.u32 %v3140, 4294901760
        %v3142 = vsub.f32 %v3140, %v3141
        %v3143 = vand.u32 %v3142, 4294901760
        %3144 = vmatprep.mubr.f32.mxu0 %v3143
        %v3145 = vand.u32 %v439, 4294901760
        %v3146 = vsub.f32 %v439, %v3145
        %v3147 = vand.u32 %v3146, 4294901760
        %v3148 = vsub.f32 %v3146, %v3147
        %v3149 = vand.u32 %v3148, 4294901760
        %3150 = vmatmul.mubr.f32.gmra.mxu0 %v3149
        %v3151 = vpop.f32.mrf.mxu0
        %v3152 = vadd.f32 0.0, %v3151
        %v3153 = vpop.f32.mrf.mxu0
        %v3154 = vadd.f32 0.0, %v3153
        %3155 = vdwg.mxu0
        %v3156 = vand.u32 %v301, 4294901760
        %v3157 = vsub.f32 %v301, %v3156
        %v3158 = vand.u32 %v3157, 4294901760
        %v3159 = vsub.f32 %v3157, %v3158
        %v3160 = vand.u32 %v3159, 4294901760
        %3161 = vmatprep.subr.mxu0 %v3160
        %v3162 = vand.u32 %v300, 4294901760
        %v3163 = vsub.f32 %v300, %v3162
        %v3164 = vand.u32 %v3163, 4294901760
        %v3165 = vsub.f32 %v3163, %v3164
        %v3166 = vand.u32 %v3165, 4294901760
        %3167 = vmatpush1.msra.mxu0 %v3166
        %v3168 = vand.u32 %v293, 4294901760
        %v3169 = vsub.f32 %v293, %v3168
        %v3170 = vand.u32 %v3169, 4294901760
        %v3171 = vsub.f32 %v3169, %v3170
        %v3172 = vand.u32 %v3171, 4294901760
        %3173 = vmatprep.subr.mxu0 %v3172
        %v3174 = vand.u32 %v292, 4294901760
        %v3175 = vsub.f32 %v292, %v3174
        %v3176 = vand.u32 %v3175, 4294901760
        %v3177 = vsub.f32 %v3175, %v3176
        %v3178 = vand.u32 %v3177, 4294901760
        %3179 = vmatpush1.msra.mxu0 %v3178
        %v3180 = vand.u32 %v285, 4294901760
        %v3181 = vsub.f32 %v285, %v3180
        %v3182 = vand.u32 %v3181, 4294901760
        %v3183 = vsub.f32 %v3181, %v3182
        %v3184 = vand.u32 %v3183, 4294901760
        %3185 = vmatprep.subr.mxu0 %v3184
        %v3186 = vand.u32 %v284, 4294901760
        %v3187 = vsub.f32 %v284, %v3186
        %v3188 = vand.u32 %v3187, 4294901760
        %v3189 = vsub.f32 %v3187, %v3188
        %v3190 = vand.u32 %v3189, 4294901760
        %3191 = vmatpush1.msra.mxu0 %v3190
        %v3192 = vand.u32 %v277, 4294901760
        %v3193 = vsub.f32 %v277, %v3192
        %v3194 = vand.u32 %v3193, 4294901760
        %v3195 = vsub.f32 %v3193, %v3194
        %v3196 = vand.u32 %v3195, 4294901760
        %3197 = vmatprep.subr.mxu0 %v3196
        %v3198 = vand.u32 %v276, 4294901760
        %v3199 = vsub.f32 %v276, %v3198
        %v3200 = vand.u32 %v3199, 4294901760
        %v3201 = vsub.f32 %v3199, %v3200
        %v3202 = vand.u32 %v3201, 4294901760
        %3203 = vmatpush1.msra.mxu0 %v3202
        %v3204 = vand.u32 %v269, 4294901760
        %v3205 = vsub.f32 %v269, %v3204
        %v3206 = vand.u32 %v3205, 4294901760
        %v3207 = vsub.f32 %v3205, %v3206
        %v3208 = vand.u32 %v3207, 4294901760
        %3209 = vmatprep.subr.mxu0 %v3208
        %v3210 = vand.u32 %v268, 4294901760
        %v3211 = vsub.f32 %v268, %v3210
        %v3212 = vand.u32 %v3211, 4294901760
        %v3213 = vsub.f32 %v3211, %v3212
        %v3214 = vand.u32 %v3213, 4294901760
        %3215 = vmatpush1.msra.mxu0 %v3214
        %v3216 = vand.u32 %v261, 4294901760
        %v3217 = vsub.f32 %v261, %v3216
        %v3218 = vand.u32 %v3217, 4294901760
        %v3219 = vsub.f32 %v3217, %v3218
        %v3220 = vand.u32 %v3219, 4294901760
        %3221 = vmatprep.subr.mxu0 %v3220
        %v3222 = vand.u32 %v260, 4294901760
        %v3223 = vsub.f32 %v260, %v3222
        %v3224 = vand.u32 %v3223, 4294901760
        %v3225 = vsub.f32 %v3223, %v3224
        %v3226 = vand.u32 %v3225, 4294901760
        %3227 = vmatpush1.msra.mxu0 %v3226
        %v3228 = vand.u32 %v253, 4294901760
        %v3229 = vsub.f32 %v253, %v3228
        %v3230 = vand.u32 %v3229, 4294901760
        %v3231 = vsub.f32 %v3229, %v3230
        %v3232 = vand.u32 %v3231, 4294901760
        %3233 = vmatprep.subr.mxu0 %v3232
        %v3234 = vand.u32 %v252, 4294901760
        %v3235 = vsub.f32 %v252, %v3234
        %v3236 = vand.u32 %v3235, 4294901760
        %v3237 = vsub.f32 %v3235, %v3236
        %v3238 = vand.u32 %v3237, 4294901760
        %3239 = vmatpush1.msra.mxu0 %v3238
        %v3240 = vand.u32 %v245, 4294901760
        %v3241 = vsub.f32 %v245, %v3240
        %v3242 = vand.u32 %v3241, 4294901760
        %v3243 = vsub.f32 %v3241, %v3242
        %v3244 = vand.u32 %v3243, 4294901760
        %3245 = vmatprep.subr.mxu0 %v3244
        %v3246 = vand.u32 %v244, 4294901760
        %v3247 = vsub.f32 %v244, %v3246
        %v3248 = vand.u32 %v3247, 4294901760
        %v3249 = vsub.f32 %v3247, %v3248
        %v3250 = vand.u32 %v3249, 4294901760
        %3251 = vmatpush1.msra.mxu0 %v3250
        %v3252 = vand.u32 %v237, 4294901760
        %v3253 = vsub.f32 %v237, %v3252
        %v3254 = vand.u32 %v3253, 4294901760
        %v3255 = vsub.f32 %v3253, %v3254
        %v3256 = vand.u32 %v3255, 4294901760
        %3257 = vmatprep.subr.mxu0 %v3256
        %v3258 = vand.u32 %v236, 4294901760
        %v3259 = vsub.f32 %v236, %v3258
        %v3260 = vand.u32 %v3259, 4294901760
        %v3261 = vsub.f32 %v3259, %v3260
        %v3262 = vand.u32 %v3261, 4294901760
        %3263 = vmatpush1.msra.mxu0 %v3262
        %v3264 = vand.u32 %v229, 4294901760
        %v3265 = vsub.f32 %v229, %v3264
        %v3266 = vand.u32 %v3265, 4294901760
        %v3267 = vsub.f32 %v3265, %v3266
        %v3268 = vand.u32 %v3267, 4294901760
        %3269 = vmatprep.subr.mxu0 %v3268
        %v3270 = vand.u32 %v228, 4294901760
        %v3271 = vsub.f32 %v228, %v3270
        %v3272 = vand.u32 %v3271, 4294901760
        %v3273 = vsub.f32 %v3271, %v3272
        %v3274 = vand.u32 %v3273, 4294901760
        %3275 = vmatpush1.msra.mxu0 %v3274
        %v3276 = vand.u32 %v221, 4294901760
        %v3277 = vsub.f32 %v221, %v3276
        %v3278 = vand.u32 %v3277, 4294901760
        %v3279 = vsub.f32 %v3277, %v3278
        %v3280 = vand.u32 %v3279, 4294901760
        %3281 = vmatprep.subr.mxu0 %v3280
        %v3282 = vand.u32 %v220, 4294901760
        %v3283 = vsub.f32 %v220, %v3282
        %v3284 = vand.u32 %v3283, 4294901760
        %v3285 = vsub.f32 %v3283, %v3284
        %v3286 = vand.u32 %v3285, 4294901760
        %3287 = vmatpush1.msra.mxu0 %v3286
        %v3288 = vand.u32 %v213, 4294901760
        %v3289 = vsub.f32 %v213, %v3288
        %v3290 = vand.u32 %v3289, 4294901760
        %v3291 = vsub.f32 %v3289, %v3290
        %v3292 = vand.u32 %v3291, 4294901760
        %3293 = vmatprep.subr.mxu0 %v3292
        %v3294 = vand.u32 %v212, 4294901760
        %v3295 = vsub.f32 %v212, %v3294
        %v3296 = vand.u32 %v3295, 4294901760
        %v3297 = vsub.f32 %v3295, %v3296
        %v3298 = vand.u32 %v3297, 4294901760
        %3299 = vmatpush1.msra.mxu0 %v3298
        %v3300 = vand.u32 %v205, 4294901760
        %v3301 = vsub.f32 %v205, %v3300
        %v3302 = vand.u32 %v3301, 4294901760
        %v3303 = vsub.f32 %v3301, %v3302
        %v3304 = vand.u32 %v3303, 4294901760
        %3305 = vmatprep.subr.mxu0 %v3304
        %v3306 = vand.u32 %v204, 4294901760
        %v3307 = vsub.f32 %v204, %v3306
        %v3308 = vand.u32 %v3307, 4294901760
        %v3309 = vsub.f32 %v3307, %v3308
        %v3310 = vand.u32 %v3309, 4294901760
        %3311 = vmatpush1.msra.mxu0 %v3310
        %v3312 = vand.u32 %v197, 4294901760
        %v3313 = vsub.f32 %v197, %v3312
        %v3314 = vand.u32 %v3313, 4294901760
        %v3315 = vsub.f32 %v3313, %v3314
        %v3316 = vand.u32 %v3315, 4294901760
        %3317 = vmatprep.subr.mxu0 %v3316
        %v3318 = vand.u32 %v196, 4294901760
        %v3319 = vsub.f32 %v196, %v3318
        %v3320 = vand.u32 %v3319, 4294901760
        %v3321 = vsub.f32 %v3319, %v3320
        %v3322 = vand.u32 %v3321, 4294901760
        %3323 = vmatpush1.msra.mxu0 %v3322
        %v3324 = vand.u32 %v189, 4294901760
        %v3325 = vsub.f32 %v189, %v3324
        %v3326 = vand.u32 %v3325, 4294901760
        %v3327 = vsub.f32 %v3325, %v3326
        %v3328 = vand.u32 %v3327, 4294901760
        %3329 = vmatprep.subr.mxu0 %v3328
        %v3330 = vand.u32 %v188, 4294901760
        %v3331 = vsub.f32 %v188, %v3330
        %v3332 = vand.u32 %v3331, 4294901760
        %v3333 = vsub.f32 %v3331, %v3332
        %v3334 = vand.u32 %v3333, 4294901760
        %3335 = vmatpush1.msra.mxu0 %v3334
        %v3336 = vand.u32 %v181, 4294901760
        %v3337 = vsub.f32 %v181, %v3336
        %v3338 = vand.u32 %v3337, 4294901760
        %v3339 = vsub.f32 %v3337, %v3338
        %v3340 = vand.u32 %v3339, 4294901760
        %3341 = vmatprep.subr.mxu0 %v3340
        %v3342 = vand.u32 %v180, 4294901760
        %v3343 = vsub.f32 %v180, %v3342
        %v3344 = vand.u32 %v3343, 4294901760
        %v3345 = vsub.f32 %v3343, %v3344
        %v3346 = vand.u32 %v3345, 4294901760
        %3347 = vmatpush1.msra.mxu0 %v3346
        %v3348 = vand.u32 %v429, 4294901760
        %v3349 = vsub.f32 %v429, %v3348
        %v3350 = vand.u32 %v3349, 4294901760
        %v3351 = vsub.f32 %v3349, %v3350
        %v3352 = vand.u32 %v3351, 4294901760
        %3353 = vmatprep.subr.mxu0 %v3352
        %v3354 = vand.u32 %v428, 4294901760
        %v3355 = vsub.f32 %v428, %v3354
        %v3356 = vand.u32 %v3355, 4294901760
        %v3357 = vsub.f32 %v3355, %v3356
        %v3358 = vand.u32 %v3357, 4294901760
        %3359 = vmatpush2.msra.mxu0 %v3358
        %v3360 = vand.u32 %v421, 4294901760
        %v3361 = vsub.f32 %v421, %v3360
        %v3362 = vand.u32 %v3361, 4294901760
        %v3363 = vsub.f32 %v3361, %v3362
        %v3364 = vand.u32 %v3363, 4294901760
        %3365 = vmatprep.subr.mxu0 %v3364
        %v3366 = vand.u32 %v420, 4294901760
        %v3367 = vsub.f32 %v420, %v3366
        %v3368 = vand.u32 %v3367, 4294901760
        %v3369 = vsub.f32 %v3367, %v3368
        %v3370 = vand.u32 %v3369, 4294901760
        %3371 = vmatpush2.msra.mxu0 %v3370
        %v3372 = vand.u32 %v413, 4294901760
        %v3373 = vsub.f32 %v413, %v3372
        %v3374 = vand.u32 %v3373, 4294901760
        %v3375 = vsub.f32 %v3373, %v3374
        %v3376 = vand.u32 %v3375, 4294901760
        %3377 = vmatprep.subr.mxu0 %v3376
        %v3378 = vand.u32 %v412, 4294901760
        %v3379 = vsub.f32 %v412, %v3378
        %v3380 = vand.u32 %v3379, 4294901760
        %v3381 = vsub.f32 %v3379, %v3380
        %v3382 = vand.u32 %v3381, 4294901760
        %3383 = vmatpush2.msra.mxu0 %v3382
        %v3384 = vand.u32 %v405, 4294901760
        %v3385 = vsub.f32 %v405, %v3384
        %v3386 = vand.u32 %v3385, 4294901760
        %v3387 = vsub.f32 %v3385, %v3386
        %v3388 = vand.u32 %v3387, 4294901760
        %3389 = vmatprep.subr.mxu0 %v3388
        %v3390 = vand.u32 %v404, 4294901760
        %v3391 = vsub.f32 %v404, %v3390
        %v3392 = vand.u32 %v3391, 4294901760
        %v3393 = vsub.f32 %v3391, %v3392
        %v3394 = vand.u32 %v3393, 4294901760
        %3395 = vmatpush2.msra.mxu0 %v3394
        %v3396 = vand.u32 %v397, 4294901760
        %v3397 = vsub.f32 %v397, %v3396
        %v3398 = vand.u32 %v3397, 4294901760
        %v3399 = vsub.f32 %v3397, %v3398
        %v3400 = vand.u32 %v3399, 4294901760
        %3401 = vmatprep.subr.mxu0 %v3400
        %v3402 = vand.u32 %v396, 4294901760
        %v3403 = vsub.f32 %v396, %v3402
        %v3404 = vand.u32 %v3403, 4294901760
        %v3405 = vsub.f32 %v3403, %v3404
        %v3406 = vand.u32 %v3405, 4294901760
        %3407 = vmatpush2.msra.mxu0 %v3406
        %v3408 = vand.u32 %v389, 4294901760
        %v3409 = vsub.f32 %v389, %v3408
        %v3410 = vand.u32 %v3409, 4294901760
        %v3411 = vsub.f32 %v3409, %v3410
        %v3412 = vand.u32 %v3411, 4294901760
        %3413 = vmatprep.subr.mxu0 %v3412
        %v3414 = vand.u32 %v388, 4294901760
        %v3415 = vsub.f32 %v388, %v3414
        %v3416 = vand.u32 %v3415, 4294901760
        %v3417 = vsub.f32 %v3415, %v3416
        %v3418 = vand.u32 %v3417, 4294901760
        %3419 = vmatpush2.msra.mxu0 %v3418
        %v3420 = vand.u32 %v381, 4294901760
        %v3421 = vsub.f32 %v381, %v3420
        %v3422 = vand.u32 %v3421, 4294901760
        %v3423 = vsub.f32 %v3421, %v3422
        %v3424 = vand.u32 %v3423, 4294901760
        %3425 = vmatprep.subr.mxu0 %v3424
        %v3426 = vand.u32 %v380, 4294901760
        %v3427 = vsub.f32 %v380, %v3426
        %v3428 = vand.u32 %v3427, 4294901760
        %v3429 = vsub.f32 %v3427, %v3428
        %v3430 = vand.u32 %v3429, 4294901760
        %3431 = vmatpush2.msra.mxu0 %v3430
        %v3432 = vand.u32 %v373, 4294901760
        %v3433 = vsub.f32 %v373, %v3432
        %v3434 = vand.u32 %v3433, 4294901760
        %v3435 = vsub.f32 %v3433, %v3434
        %v3436 = vand.u32 %v3435, 4294901760
        %3437 = vmatprep.subr.mxu0 %v3436
        %v3438 = vand.u32 %v372, 4294901760
        %v3439 = vsub.f32 %v372, %v3438
        %v3440 = vand.u32 %v3439, 4294901760
        %v3441 = vsub.f32 %v3439, %v3440
        %v3442 = vand.u32 %v3441, 4294901760
        %3443 = vmatpush2.msra.mxu0 %v3442
        %v3444 = vand.u32 %v365, 4294901760
        %v3445 = vsub.f32 %v365, %v3444
        %v3446 = vand.u32 %v3445, 4294901760
        %v3447 = vsub.f32 %v3445, %v3446
        %v3448 = vand.u32 %v3447, 4294901760
        %3449 = vmatprep.subr.mxu0 %v3448
        %v3450 = vand.u32 %v364, 4294901760
        %v3451 = vsub.f32 %v364, %v3450
        %v3452 = vand.u32 %v3451, 4294901760
        %v3453 = vsub.f32 %v3451, %v3452
        %v3454 = vand.u32 %v3453, 4294901760
        %3455 = vmatpush2.msra.mxu0 %v3454
        %v3456 = vand.u32 %v357, 4294901760
        %v3457 = vsub.f32 %v357, %v3456
        %v3458 = vand.u32 %v3457, 4294901760
        %v3459 = vsub.f32 %v3457, %v3458
        %v3460 = vand.u32 %v3459, 4294901760
        %3461 = vmatprep.subr.mxu0 %v3460
        %v3462 = vand.u32 %v356, 4294901760
        %v3463 = vsub.f32 %v356, %v3462
        %v3464 = vand.u32 %v3463, 4294901760
        %v3465 = vsub.f32 %v3463, %v3464
        %v3466 = vand.u32 %v3465, 4294901760
        %3467 = vmatpush2.msra.mxu0 %v3466
        %v3468 = vand.u32 %v349, 4294901760
        %v3469 = vsub.f32 %v349, %v3468
        %v3470 = vand.u32 %v3469, 4294901760
        %v3471 = vsub.f32 %v3469, %v3470
        %v3472 = vand.u32 %v3471, 4294901760
        %3473 = vmatprep.subr.mxu0 %v3472
        %v3474 = vand.u32 %v348, 4294901760
        %v3475 = vsub.f32 %v348, %v3474
        %v3476 = vand.u32 %v3475, 4294901760
        %v3477 = vsub.f32 %v3475, %v3476
        %v3478 = vand.u32 %v3477, 4294901760
        %3479 = vmatpush2.msra.mxu0 %v3478
        %v3480 = vand.u32 %v341, 4294901760
        %v3481 = vsub.f32 %v341, %v3480
        %v3482 = vand.u32 %v3481, 4294901760
        %v3483 = vsub.f32 %v3481, %v3482
        %v3484 = vand.u32 %v3483, 4294901760
        %3485 = vmatprep.subr.mxu0 %v3484
        %v3486 = vand.u32 %v340, 4294901760
        %v3487 = vsub.f32 %v340, %v3486
        %v3488 = vand.u32 %v3487, 4294901760
        %v3489 = vsub.f32 %v3487, %v3488
        %v3490 = vand.u32 %v3489, 4294901760
        %3491 = vmatpush2.msra.mxu0 %v3490
        %v3492 = vand.u32 %v333, 4294901760
        %v3493 = vsub.f32 %v333, %v3492
        %v3494 = vand.u32 %v3493, 4294901760
        %v3495 = vsub.f32 %v3493, %v3494
        %v3496 = vand.u32 %v3495, 4294901760
        %3497 = vmatprep.subr.mxu0 %v3496
        %v3498 = vand.u32 %v332, 4294901760
        %v3499 = vsub.f32 %v332, %v3498
        %v3500 = vand.u32 %v3499, 4294901760
        %v3501 = vsub.f32 %v3499, %v3500
        %v3502 = vand.u32 %v3501, 4294901760
        %3503 = vmatpush2.msra.mxu0 %v3502
        %v3504 = vand.u32 %v325, 4294901760
        %v3505 = vsub.f32 %v325, %v3504
        %v3506 = vand.u32 %v3505, 4294901760
        %v3507 = vsub.f32 %v3505, %v3506
        %v3508 = vand.u32 %v3507, 4294901760
        %3509 = vmatprep.subr.mxu0 %v3508
        %v3510 = vand.u32 %v324, 4294901760
        %v3511 = vsub.f32 %v324, %v3510
        %v3512 = vand.u32 %v3511, 4294901760
        %v3513 = vsub.f32 %v3511, %v3512
        %v3514 = vand.u32 %v3513, 4294901760
        %3515 = vmatpush2.msra.mxu0 %v3514
        %v3516 = vand.u32 %v317, 4294901760
        %v3517 = vsub.f32 %v317, %v3516
        %v3518 = vand.u32 %v3517, 4294901760
        %v3519 = vsub.f32 %v3517, %v3518
        %v3520 = vand.u32 %v3519, 4294901760
        %3521 = vmatprep.subr.mxu0 %v3520
        %v3522 = vand.u32 %v316, 4294901760
        %v3523 = vsub.f32 %v316, %v3522
        %v3524 = vand.u32 %v3523, 4294901760
        %v3525 = vsub.f32 %v3523, %v3524
        %v3526 = vand.u32 %v3525, 4294901760
        %3527 = vmatpush2.msra.mxu0 %v3526
        %v3528 = vand.u32 %v309, 4294901760
        %v3529 = vsub.f32 %v309, %v3528
        %v3530 = vand.u32 %v3529, 4294901760
        %v3531 = vsub.f32 %v3529, %v3530
        %v3532 = vand.u32 %v3531, 4294901760
        %3533 = vmatprep.subr.mxu0 %v3532
        %v3534 = vand.u32 %v308, 4294901760
        %v3535 = vsub.f32 %v308, %v3534
        %v3536 = vand.u32 %v3535, 4294901760
        %v3537 = vsub.f32 %v3535, %v3536
        %v3538 = vand.u32 %v3537, 4294901760
        %3539 = vmatpush2.msra.mxu0 %v3538
        %v3540 = vand.u32 %v440, 4294901760
        %3541 = vmatprep.mubr.f32.mxu0 %v3540
        %v3542 = vand.u32 %v439, 4294901760
        %3543 = vmatmul.mubr.f32.gmra.mxu0 %v3542
        %v3544 = vpop.f32.mrf.mxu0
        %v3545 = vadd.f32 %v3152, %v3544
        %v3546 = vpop.f32.mrf.mxu0
        %v3547 = vadd.f32 %v3154, %v3546
        %3548 = vdwg.mxu0
        %v3549 = vand.u32 %v301, 4294901760
        %v3550 = vsub.f32 %v301, %v3549
        %3551 = vmatprep.subr.mxu0 %v3550
        %v3552 = vand.u32 %v300, 4294901760
        %v3553 = vsub.f32 %v300, %v3552
        %3554 = vmatpush1.msra.mxu0 %v3553
        %v3555 = vand.u32 %v293, 4294901760
        %v3556 = vsub.f32 %v293, %v3555
        %3557 = vmatprep.subr.mxu0 %v3556
        %v3558 = vand.u32 %v292, 4294901760
        %v3559 = vsub.f32 %v292, %v3558
        %3560 = vmatpush1.msra.mxu0 %v3559
        %v3561 = vand.u32 %v285, 4294901760
        %v3562 = vsub.f32 %v285, %v3561
        %3563 = vmatprep.subr.mxu0 %v3562
        %v3564 = vand.u32 %v284, 4294901760
        %v3565 = vsub.f32 %v284, %v3564
        %3566 = vmatpush1.msra.mxu0 %v3565
        %v3567 = vand.u32 %v277, 4294901760
        %v3568 = vsub.f32 %v277, %v3567
        %3569 = vmatprep.subr.mxu0 %v3568
        %v3570 = vand.u32 %v276, 4294901760
        %v3571 = vsub.f32 %v276, %v3570
        %3572 = vmatpush1.msra.mxu0 %v3571
        %v3573 = vand.u32 %v269, 4294901760
        %v3574 = vsub.f32 %v269, %v3573
        %3575 = vmatprep.subr.mxu0 %v3574
        %v3576 = vand.u32 %v268, 4294901760
        %v3577 = vsub.f32 %v268, %v3576
        %3578 = vmatpush1.msra.mxu0 %v3577
        %v3579 = vand.u32 %v261, 4294901760
        %v3580 = vsub.f32 %v261, %v3579
        %3581 = vmatprep.subr.mxu0 %v3580
        %v3582 = vand.u32 %v260, 4294901760
        %v3583 = vsub.f32 %v260, %v3582
        %3584 = vmatpush1.msra.mxu0 %v3583
        %v3585 = vand.u32 %v253, 4294901760
        %v3586 = vsub.f32 %v253, %v3585
        %3587 = vmatprep.subr.mxu0 %v3586
        %v3588 = vand.u32 %v252, 4294901760
        %v3589 = vsub.f32 %v252, %v3588
        %3590 = vmatpush1.msra.mxu0 %v3589
        %v3591 = vand.u32 %v245, 4294901760
        %v3592 = vsub.f32 %v245, %v3591
        %3593 = vmatprep.subr.mxu0 %v3592
        %v3594 = vand.u32 %v244, 4294901760
        %v3595 = vsub.f32 %v244, %v3594
        %3596 = vmatpush1.msra.mxu0 %v3595
        %v3597 = vand.u32 %v237, 4294901760
        %v3598 = vsub.f32 %v237, %v3597
        %3599 = vmatprep.subr.mxu0 %v3598
        %v3600 = vand.u32 %v236, 4294901760
        %v3601 = vsub.f32 %v236, %v3600
        %3602 = vmatpush1.msra.mxu0 %v3601
        %v3603 = vand.u32 %v229, 4294901760
        %v3604 = vsub.f32 %v229, %v3603
        %3605 = vmatprep.subr.mxu0 %v3604
        %v3606 = vand.u32 %v228, 4294901760
        %v3607 = vsub.f32 %v228, %v3606
        %3608 = vmatpush1.msra.mxu0 %v3607
        %v3609 = vand.u32 %v221, 4294901760
        %v3610 = vsub.f32 %v221, %v3609
        %3611 = vmatprep.subr.mxu0 %v3610
        %v3612 = vand.u32 %v220, 4294901760
        %v3613 = vsub.f32 %v220, %v3612
        %3614 = vmatpush1.msra.mxu0 %v3613
        %v3615 = vand.u32 %v213, 4294901760
        %v3616 = vsub.f32 %v213, %v3615
        %3617 = vmatprep.subr.mxu0 %v3616
        %v3618 = vand.u32 %v212, 4294901760
        %v3619 = vsub.f32 %v212, %v3618
        %3620 = vmatpush1.msra.mxu0 %v3619
        %v3621 = vand.u32 %v205, 4294901760
        %v3622 = vsub.f32 %v205, %v3621
        %3623 = vmatprep.subr.mxu0 %v3622
        %v3624 = vand.u32 %v204, 4294901760
        %v3625 = vsub.f32 %v204, %v3624
        %3626 = vmatpush1.msra.mxu0 %v3625
        %v3627 = vand.u32 %v197, 4294901760
        %v3628 = vsub.f32 %v197, %v3627
        %3629 = vmatprep.subr.mxu0 %v3628
        %v3630 = vand.u32 %v196, 4294901760
        %v3631 = vsub.f32 %v196, %v3630
        %3632 = vmatpush1.msra.mxu0 %v3631
        %v3633 = vand.u32 %v189, 4294901760
        %v3634 = vsub.f32 %v189, %v3633
        %3635 = vmatprep.subr.mxu0 %v3634
        %v3636 = vand.u32 %v188, 4294901760
        %v3637 = vsub.f32 %v188, %v3636
        %3638 = vmatpush1.msra.mxu0 %v3637
        %v3639 = vand.u32 %v181, 4294901760
        %v3640 = vsub.f32 %v181, %v3639
        %3641 = vmatprep.subr.mxu0 %v3640
        %v3642 = vand.u32 %v180, 4294901760
        %v3643 = vsub.f32 %v180, %v3642
        %3644 = vmatpush1.msra.mxu0 %v3643
        %v3645 = vand.u32 %v429, 4294901760
        %v3646 = vsub.f32 %v429, %v3645
        %3647 = vmatprep.subr.mxu0 %v3646
        %v3648 = vand.u32 %v428, 4294901760
        %v3649 = vsub.f32 %v428, %v3648
        %3650 = vmatpush2.msra.mxu0 %v3649
        %v3651 = vand.u32 %v421, 4294901760
        %v3652 = vsub.f32 %v421, %v3651
        %3653 = vmatprep.subr.mxu0 %v3652
        %v3654 = vand.u32 %v420, 4294901760
        %v3655 = vsub.f32 %v420, %v3654
        %3656 = vmatpush2.msra.mxu0 %v3655
        %v3657 = vand.u32 %v413, 4294901760
        %v3658 = vsub.f32 %v413, %v3657
        %3659 = vmatprep.subr.mxu0 %v3658
        %v3660 = vand.u32 %v412, 4294901760
        %v3661 = vsub.f32 %v412, %v3660
        %3662 = vmatpush2.msra.mxu0 %v3661
        %v3663 = vand.u32 %v405, 4294901760
        %v3664 = vsub.f32 %v405, %v3663
        %3665 = vmatprep.subr.mxu0 %v3664
        %v3666 = vand.u32 %v404, 4294901760
        %v3667 = vsub.f32 %v404, %v3666
        %3668 = vmatpush2.msra.mxu0 %v3667
        %v3669 = vand.u32 %v397, 4294901760
        %v3670 = vsub.f32 %v397, %v3669
        %3671 = vmatprep.subr.mxu0 %v3670
        %v3672 = vand.u32 %v396, 4294901760
        %v3673 = vsub.f32 %v396, %v3672
        %3674 = vmatpush2.msra.mxu0 %v3673
        %v3675 = vand.u32 %v389, 4294901760
        %v3676 = vsub.f32 %v389, %v3675
        %3677 = vmatprep.subr.mxu0 %v3676
        %v3678 = vand.u32 %v388, 4294901760
        %v3679 = vsub.f32 %v388, %v3678
        %3680 = vmatpush2.msra.mxu0 %v3679
        %v3681 = vand.u32 %v381, 4294901760
        %v3682 = vsub.f32 %v381, %v3681
        %3683 = vmatprep.subr.mxu0 %v3682
        %v3684 = vand.u32 %v380, 4294901760
        %v3685 = vsub.f32 %v380, %v3684
        %3686 = vmatpush2.msra.mxu0 %v3685
        %v3687 = vand.u32 %v373, 4294901760
        %v3688 = vsub.f32 %v373, %v3687
        %3689 = vmatprep.subr.mxu0 %v3688
        %v3690 = vand.u32 %v372, 4294901760
        %v3691 = vsub.f32 %v372, %v3690
        %3692 = vmatpush2.msra.mxu0 %v3691
        %v3693 = vand.u32 %v365, 4294901760
        %v3694 = vsub.f32 %v365, %v3693
        %3695 = vmatprep.subr.mxu0 %v3694
        %v3696 = vand.u32 %v364, 4294901760
        %v3697 = vsub.f32 %v364, %v3696
        %3698 = vmatpush2.msra.mxu0 %v3697
        %v3699 = vand.u32 %v357, 4294901760
        %v3700 = vsub.f32 %v357, %v3699
        %3701 = vmatprep.subr.mxu0 %v3700
        %v3702 = vand.u32 %v356, 4294901760
        %v3703 = vsub.f32 %v356, %v3702
        %3704 = vmatpush2.msra.mxu0 %v3703
        %v3705 = vand.u32 %v349, 4294901760
        %v3706 = vsub.f32 %v349, %v3705
        %3707 = vmatprep.subr.mxu0 %v3706
        %v3708 = vand.u32 %v348, 4294901760
        %v3709 = vsub.f32 %v348, %v3708
        %3710 = vmatpush2.msra.mxu0 %v3709
        %v3711 = vand.u32 %v341, 4294901760
        %v3712 = vsub.f32 %v341, %v3711
        %3713 = vmatprep.subr.mxu0 %v3712
        %v3714 = vand.u32 %v340, 4294901760
        %v3715 = vsub.f32 %v340, %v3714
        %3716 = vmatpush2.msra.mxu0 %v3715
        %v3717 = vand.u32 %v333, 4294901760
        %v3718 = vsub.f32 %v333, %v3717
        %3719 = vmatprep.subr.mxu0 %v3718
        %v3720 = vand.u32 %v332, 4294901760
        %v3721 = vsub.f32 %v332, %v3720
        %3722 = vmatpush2.msra.mxu0 %v3721
        %v3723 = vand.u32 %v325, 4294901760
        %v3724 = vsub.f32 %v325, %v3723
        %3725 = vmatprep.subr.mxu0 %v3724
        %v3726 = vand.u32 %v324, 4294901760
        %v3727 = vsub.f32 %v324, %v3726
        %3728 = vmatpush2.msra.mxu0 %v3727
        %v3729 = vand.u32 %v317, 4294901760
        %v3730 = vsub.f32 %v317, %v3729
        %3731 = vmatprep.subr.mxu0 %v3730
        %v3732 = vand.u32 %v316, 4294901760
        %v3733 = vsub.f32 %v316, %v3732
        %3734 = vmatpush2.msra.mxu0 %v3733
        %v3735 = vand.u32 %v309, 4294901760
        %v3736 = vsub.f32 %v309, %v3735
        %3737 = vmatprep.subr.mxu0 %v3736
        %v3738 = vand.u32 %v308, 4294901760
        %v3739 = vsub.f32 %v308, %v3738
        %3740 = vmatpush2.msra.mxu0 %v3739
        %v3741 = vand.u32 %v440, 4294901760
        %v3742 = vsub.f32 %v440, %v3741
        %3743 = vmatprep.mubr.f32.mxu0 %v3742
        %v3744 = vand.u32 %v439, 4294901760
        %v3745 = vsub.f32 %v439, %v3744
        %3746 = vmatmul.mubr.f32.gmra.mxu0 %v3745
        %v3747 = vpop.f32.mrf.mxu0
        %v3748 = vadd.f32 %v3545, %v3747
        %v3749 = vpop.f32.mrf.mxu0
        %v3750 = vadd.f32 %v3547, %v3749
        %3751 = vdwg.mxu0
        %v3752 = vand.u32 %v301, 4294901760
        %3753 = vmatprep.subr.mxu0 %v3752
        %v3754 = vand.u32 %v300, 4294901760
        %3755 = vmatpush1.msra.mxu0 %v3754
        %v3756 = vand.u32 %v293, 4294901760
        %3757 = vmatprep.subr.mxu0 %v3756
        %v3758 = vand.u32 %v292, 4294901760
        %3759 = vmatpush1.msra.mxu0 %v3758
        %v3760 = vand.u32 %v285, 4294901760
        %3761 = vmatprep.subr.mxu0 %v3760
        %v3762 = vand.u32 %v284, 4294901760
        %3763 = vmatpush1.msra.mxu0 %v3762
        %v3764 = vand.u32 %v277, 4294901760
        %3765 = vmatprep.subr.mxu0 %v3764
        %v3766 = vand.u32 %v276, 4294901760
        %3767 = vmatpush1.msra.mxu0 %v3766
        %v3768 = vand.u32 %v269, 4294901760
        %3769 = vmatprep.subr.mxu0 %v3768
        %v3770 = vand.u32 %v268, 4294901760
        %3771 = vmatpush1.msra.mxu0 %v3770
        %v3772 = vand.u32 %v261, 4294901760
        %3773 = vmatprep.subr.mxu0 %v3772
        %v3774 = vand.u32 %v260, 4294901760
        %3775 = vmatpush1.msra.mxu0 %v3774
        %v3776 = vand.u32 %v253, 4294901760
        %3777 = vmatprep.subr.mxu0 %v3776
        %v3778 = vand.u32 %v252, 4294901760
        %3779 = vmatpush1.msra.mxu0 %v3778
        %v3780 = vand.u32 %v245, 4294901760
        %3781 = vmatprep.subr.mxu0 %v3780
        %v3782 = vand.u32 %v244, 4294901760
        %3783 = vmatpush1.msra.mxu0 %v3782
        %v3784 = vand.u32 %v237, 4294901760
        %3785 = vmatprep.subr.mxu0 %v3784
        %v3786 = vand.u32 %v236, 4294901760
        %3787 = vmatpush1.msra.mxu0 %v3786
        %v3788 = vand.u32 %v229, 4294901760
        %3789 = vmatprep.subr.mxu0 %v3788
        %v3790 = vand.u32 %v228, 4294901760
        %3791 = vmatpush1.msra.mxu0 %v3790
        %v3792 = vand.u32 %v221, 4294901760
        %3793 = vmatprep.subr.mxu0 %v3792
        %v3794 = vand.u32 %v220, 4294901760
        %3795 = vmatpush1.msra.mxu0 %v3794
        %v3796 = vand.u32 %v213, 4294901760
        %3797 = vmatprep.subr.mxu0 %v3796
        %v3798 = vand.u32 %v212, 4294901760
        %3799 = vmatpush1.msra.mxu0 %v3798
        %v3800 = vand.u32 %v205, 4294901760
        %3801 = vmatprep.subr.mxu0 %v3800
        %v3802 = vand.u32 %v204, 4294901760
        %3803 = vmatpush1.msra.mxu0 %v3802
        %v3804 = vand.u32 %v197, 4294901760
        %3805 = vmatprep.subr.mxu0 %v3804
        %v3806 = vand.u32 %v196, 4294901760
        %3807 = vmatpush1.msra.mxu0 %v3806
        %v3808 = vand.u32 %v189, 4294901760
        %3809 = vmatprep.subr.mxu0 %v3808
        %v3810 = vand.u32 %v188, 4294901760
        %3811 = vmatpush1.msra.mxu0 %v3810
        %v3812 = vand.u32 %v181, 4294901760
        %3813 = vmatprep.subr.mxu0 %v3812
        %v3814 = vand.u32 %v180, 4294901760
        %3815 = vmatpush1.msra.mxu0 %v3814
        %v3816 = vand.u32 %v429, 4294901760
        %3817 = vmatprep.subr.mxu0 %v3816
        %v3818 = vand.u32 %v428, 4294901760
        %3819 = vmatpush2.msra.mxu0 %v3818
        %v3820 = vand.u32 %v421, 4294901760
        %3821 = vmatprep.subr.mxu0 %v3820
        %v3822 = vand.u32 %v420, 4294901760
        %3823 = vmatpush2.msra.mxu0 %v3822
        %v3824 = vand.u32 %v413, 4294901760
        %3825 = vmatprep.subr.mxu0 %v3824
        %v3826 = vand.u32 %v412, 4294901760
        %3827 = vmatpush2.msra.mxu0 %v3826
        %v3828 = vand.u32 %v405, 4294901760
        %3829 = vmatprep.subr.mxu0 %v3828
        %v3830 = vand.u32 %v404, 4294901760
        %3831 = vmatpush2.msra.mxu0 %v3830
        %v3832 = vand.u32 %v397, 4294901760
        %3833 = vmatprep.subr.mxu0 %v3832
        %v3834 = vand.u32 %v396, 4294901760
        %3835 = vmatpush2.msra.mxu0 %v3834
        %v3836 = vand.u32 %v389, 4294901760
        %3837 = vmatprep.subr.mxu0 %v3836
        %v3838 = vand.u32 %v388, 4294901760
        %3839 = vmatpush2.msra.mxu0 %v3838
        %v3840 = vand.u32 %v381, 4294901760
        %3841 = vmatprep.subr.mxu0 %v3840
        %v3842 = vand.u32 %v380, 4294901760
        %3843 = vmatpush2.msra.mxu0 %v3842
        %v3844 = vand.u32 %v373, 4294901760
        %3845 = vmatprep.subr.mxu0 %v3844
        %v3846 = vand.u32 %v372, 4294901760
        %3847 = vmatpush2.msra.mxu0 %v3846
        %v3848 = vand.u32 %v365, 4294901760
        %3849 = vmatprep.subr.mxu0 %v3848
        %v3850 = vand.u32 %v364, 4294901760
        %3851 = vmatpush2.msra.mxu0 %v3850
        %v3852 = vand.u32 %v357, 4294901760
        %3853 = vmatprep.subr.mxu0 %v3852
        %v3854 = vand.u32 %v356, 4294901760
        %3855 = vmatpush2.msra.mxu0 %v3854
        %v3856 = vand.u32 %v349, 4294901760
        %3857 = vmatprep.subr.mxu0 %v3856
        %v3858 = vand.u32 %v348, 4294901760
        %3859 = vmatpush2.msra.mxu0 %v3858
        %v3860 = vand.u32 %v341, 4294901760
        %3861 = vmatprep.subr.mxu0 %v3860
        %v3862 = vand.u32 %v340, 4294901760
        %3863 = vmatpush2.msra.mxu0 %v3862
        %v3864 = vand.u32 %v333, 4294901760
        %3865 = vmatprep.subr.mxu0 %v3864
        %v3866 = vand.u32 %v332, 4294901760
        %3867 = vmatpush2.msra.mxu0 %v3866
        %v3868 = vand.u32 %v325, 4294901760
        %3869 = vmatprep.subr.mxu0 %v3868
        %v3870 = vand.u32 %v324, 4294901760
        %3871 = vmatpush2.msra.mxu0 %v3870
        %v3872 = vand.u32 %v317, 4294901760
        %3873 = vmatprep.subr.mxu0 %v3872
        %v3874 = vand.u32 %v316, 4294901760
        %3875 = vmatpush2.msra.mxu0 %v3874
        %v3876 = vand.u32 %v309, 4294901760
        %3877 = vmatprep.subr.mxu0 %v3876
        %v3878 = vand.u32 %v308, 4294901760
        %3879 = vmatpush2.msra.mxu0 %v3878
        %v3880 = vand.u32 %v440, 4294901760
        %v3881 = vsub.f32 %v440, %v3880
        %v3882 = vand.u32 %v3881, 4294901760
        %3883 = vmatprep.mubr.f32.mxu0 %v3882
        %v3884 = vand.u32 %v439, 4294901760
        %v3885 = vsub.f32 %v439, %v3884
        %v3886 = vand.u32 %v3885, 4294901760
        %3887 = vmatmul.mubr.f32.gmra.mxu0 %v3886
        %v3888 = vpop.f32.mrf.mxu0
        %v3889 = vadd.f32 %v3748, %v3888
        %v3890 = vpop.f32.mrf.mxu0
        %v3891 = vadd.f32 %v3750, %v3890
        %3892 = vdwg.mxu0
        %v3893 = vand.u32 %v301, 4294901760
        %v3894 = vsub.f32 %v301, %v3893
        %v3895 = vand.u32 %v3894, 4294901760
        %3896 = vmatprep.subr.mxu0 %v3895
        %v3897 = vand.u32 %v300, 4294901760
        %v3898 = vsub.f32 %v300, %v3897
        %v3899 = vand.u32 %v3898, 4294901760
        %3900 = vmatpush1.msra.mxu0 %v3899
        %v3901 = vand.u32 %v293, 4294901760
        %v3902 = vsub.f32 %v293, %v3901
        %v3903 = vand.u32 %v3902, 4294901760
        %3904 = vmatprep.subr.mxu0 %v3903
        %v3905 = vand.u32 %v292, 4294901760
        %v3906 = vsub.f32 %v292, %v3905
        %v3907 = vand.u32 %v3906, 4294901760
        %3908 = vmatpush1.msra.mxu0 %v3907
        %v3909 = vand.u32 %v285, 4294901760
        %v3910 = vsub.f32 %v285, %v3909
        %v3911 = vand.u32 %v3910, 4294901760
        %3912 = vmatprep.subr.mxu0 %v3911
        %v3913 = vand.u32 %v284, 4294901760
        %v3914 = vsub.f32 %v284, %v3913
        %v3915 = vand.u32 %v3914, 4294901760
        %3916 = vmatpush1.msra.mxu0 %v3915
        %v3917 = vand.u32 %v277, 4294901760
        %v3918 = vsub.f32 %v277, %v3917
        %v3919 = vand.u32 %v3918, 4294901760
        %3920 = vmatprep.subr.mxu0 %v3919
        %v3921 = vand.u32 %v276, 4294901760
        %v3922 = vsub.f32 %v276, %v3921
        %v3923 = vand.u32 %v3922, 4294901760
        %3924 = vmatpush1.msra.mxu0 %v3923
        %v3925 = vand.u32 %v269, 4294901760
        %v3926 = vsub.f32 %v269, %v3925
        %v3927 = vand.u32 %v3926, 4294901760
        %3928 = vmatprep.subr.mxu0 %v3927
        %v3929 = vand.u32 %v268, 4294901760
        %v3930 = vsub.f32 %v268, %v3929
        %v3931 = vand.u32 %v3930, 4294901760
        %3932 = vmatpush1.msra.mxu0 %v3931
        %v3933 = vand.u32 %v261, 4294901760
        %v3934 = vsub.f32 %v261, %v3933
        %v3935 = vand.u32 %v3934, 4294901760
        %3936 = vmatprep.subr.mxu0 %v3935
        %v3937 = vand.u32 %v260, 4294901760
        %v3938 = vsub.f32 %v260, %v3937
        %v3939 = vand.u32 %v3938, 4294901760
        %3940 = vmatpush1.msra.mxu0 %v3939
        %v3941 = vand.u32 %v253, 4294901760
        %v3942 = vsub.f32 %v253, %v3941
        %v3943 = vand.u32 %v3942, 4294901760
        %3944 = vmatprep.subr.mxu0 %v3943
        %v3945 = vand.u32 %v252, 4294901760
        %v3946 = vsub.f32 %v252, %v3945
        %v3947 = vand.u32 %v3946, 4294901760
        %3948 = vmatpush1.msra.mxu0 %v3947
        %v3949 = vand.u32 %v245, 4294901760
        %v3950 = vsub.f32 %v245, %v3949
        %v3951 = vand.u32 %v3950, 4294901760
        %3952 = vmatprep.subr.mxu0 %v3951
        %v3953 = vand.u32 %v244, 4294901760
        %v3954 = vsub.f32 %v244, %v3953
        %v3955 = vand.u32 %v3954, 4294901760
        %3956 = vmatpush1.msra.mxu0 %v3955
        %v3957 = vand.u32 %v237, 4294901760
        %v3958 = vsub.f32 %v237, %v3957
        %v3959 = vand.u32 %v3958, 4294901760
        %3960 = vmatprep.subr.mxu0 %v3959
        %v3961 = vand.u32 %v236, 4294901760
        %v3962 = vsub.f32 %v236, %v3961
        %v3963 = vand.u32 %v3962, 4294901760
        %3964 = vmatpush1.msra.mxu0 %v3963
        %v3965 = vand.u32 %v229, 4294901760
        %v3966 = vsub.f32 %v229, %v3965
        %v3967 = vand.u32 %v3966, 4294901760
        %3968 = vmatprep.subr.mxu0 %v3967
        %v3969 = vand.u32 %v228, 4294901760
        %v3970 = vsub.f32 %v228, %v3969
        %v3971 = vand.u32 %v3970, 4294901760
        %3972 = vmatpush1.msra.mxu0 %v3971
        %v3973 = vand.u32 %v221, 4294901760
        %v3974 = vsub.f32 %v221, %v3973
        %v3975 = vand.u32 %v3974, 4294901760
        %3976 = vmatprep.subr.mxu0 %v3975
        %v3977 = vand.u32 %v220, 4294901760
        %v3978 = vsub.f32 %v220, %v3977
        %v3979 = vand.u32 %v3978, 4294901760
        %3980 = vmatpush1.msra.mxu0 %v3979
        %v3981 = vand.u32 %v213, 4294901760
        %v3982 = vsub.f32 %v213, %v3981
        %v3983 = vand.u32 %v3982, 4294901760
        %3984 = vmatprep.subr.mxu0 %v3983
        %v3985 = vand.u32 %v212, 4294901760
        %v3986 = vsub.f32 %v212, %v3985
        %v3987 = vand.u32 %v3986, 4294901760
        %3988 = vmatpush1.msra.mxu0 %v3987
        %v3989 = vand.u32 %v205, 4294901760
        %v3990 = vsub.f32 %v205, %v3989
        %v3991 = vand.u32 %v3990, 4294901760
        %3992 = vmatprep.subr.mxu0 %v3991
        %v3993 = vand.u32 %v204, 4294901760
        %v3994 = vsub.f32 %v204, %v3993
        %v3995 = vand.u32 %v3994, 4294901760
        %3996 = vmatpush1.msra.mxu0 %v3995
        %v3997 = vand.u32 %v197, 4294901760
        %v3998 = vsub.f32 %v197, %v3997
        %v3999 = vand.u32 %v3998, 4294901760
        %4000 = vmatprep.subr.mxu0 %v3999
        %v4001 = vand.u32 %v196, 4294901760
        %v4002 = vsub.f32 %v196, %v4001
        %v4003 = vand.u32 %v4002, 4294901760
        %4004 = vmatpush1.msra.mxu0 %v4003
        %v4005 = vand.u32 %v189, 4294901760
        %v4006 = vsub.f32 %v189, %v4005
        %v4007 = vand.u32 %v4006, 4294901760
        %4008 = vmatprep.subr.mxu0 %v4007
        %v4009 = vand.u32 %v188, 4294901760
        %v4010 = vsub.f32 %v188, %v4009
        %v4011 = vand.u32 %v4010, 4294901760
        %4012 = vmatpush1.msra.mxu0 %v4011
        %v4013 = vand.u32 %v181, 4294901760
        %v4014 = vsub.f32 %v181, %v4013
        %v4015 = vand.u32 %v4014, 4294901760
        %4016 = vmatprep.subr.mxu0 %v4015
        %v4017 = vand.u32 %v180, 4294901760
        %v4018 = vsub.f32 %v180, %v4017
        %v4019 = vand.u32 %v4018, 4294901760
        %4020 = vmatpush1.msra.mxu0 %v4019
        %v4021 = vand.u32 %v429, 4294901760
        %v4022 = vsub.f32 %v429, %v4021
        %v4023 = vand.u32 %v4022, 4294901760
        %4024 = vmatprep.subr.mxu0 %v4023
        %v4025 = vand.u32 %v428, 4294901760
        %v4026 = vsub.f32 %v428, %v4025
        %v4027 = vand.u32 %v4026, 4294901760
        %4028 = vmatpush2.msra.mxu0 %v4027
        %v4029 = vand.u32 %v421, 4294901760
        %v4030 = vsub.f32 %v421, %v4029
        %v4031 = vand.u32 %v4030, 4294901760
        %4032 = vmatprep.subr.mxu0 %v4031
        %v4033 = vand.u32 %v420, 4294901760
        %v4034 = vsub.f32 %v420, %v4033
        %v4035 = vand.u32 %v4034, 4294901760
        %4036 = vmatpush2.msra.mxu0 %v4035
        %v4037 = vand.u32 %v413, 4294901760
        %v4038 = vsub.f32 %v413, %v4037
        %v4039 = vand.u32 %v4038, 4294901760
        %4040 = vmatprep.subr.mxu0 %v4039
        %v4041 = vand.u32 %v412, 4294901760
        %v4042 = vsub.f32 %v412, %v4041
        %v4043 = vand.u32 %v4042, 4294901760
        %4044 = vmatpush2.msra.mxu0 %v4043
        %v4045 = vand.u32 %v405, 4294901760
        %v4046 = vsub.f32 %v405, %v4045
        %v4047 = vand.u32 %v4046, 4294901760
        %4048 = vmatprep.subr.mxu0 %v4047
        %v4049 = vand.u32 %v404, 4294901760
        %v4050 = vsub.f32 %v404, %v4049
        %v4051 = vand.u32 %v4050, 4294901760
        %4052 = vmatpush2.msra.mxu0 %v4051
        %v4053 = vand.u32 %v397, 4294901760
        %v4054 = vsub.f32 %v397, %v4053
        %v4055 = vand.u32 %v4054, 4294901760
        %4056 = vmatprep.subr.mxu0 %v4055
        %v4057 = vand.u32 %v396, 4294901760
        %v4058 = vsub.f32 %v396, %v4057
        %v4059 = vand.u32 %v4058, 4294901760
        %4060 = vmatpush2.msra.mxu0 %v4059
        %v4061 = vand.u32 %v389, 4294901760
        %v4062 = vsub.f32 %v389, %v4061
        %v4063 = vand.u32 %v4062, 4294901760
        %4064 = vmatprep.subr.mxu0 %v4063
        %v4065 = vand.u32 %v388, 4294901760
        %v4066 = vsub.f32 %v388, %v4065
        %v4067 = vand.u32 %v4066, 4294901760
        %4068 = vmatpush2.msra.mxu0 %v4067
        %v4069 = vand.u32 %v381, 4294901760
        %v4070 = vsub.f32 %v381, %v4069
        %v4071 = vand.u32 %v4070, 4294901760
        %4072 = vmatprep.subr.mxu0 %v4071
        %v4073 = vand.u32 %v380, 4294901760
        %v4074 = vsub.f32 %v380, %v4073
        %v4075 = vand.u32 %v4074, 4294901760
        %4076 = vmatpush2.msra.mxu0 %v4075
        %v4077 = vand.u32 %v373, 4294901760
        %v4078 = vsub.f32 %v373, %v4077
        %v4079 = vand.u32 %v4078, 4294901760
        %4080 = vmatprep.subr.mxu0 %v4079
        %v4081 = vand.u32 %v372, 4294901760
        %v4082 = vsub.f32 %v372, %v4081
        %v4083 = vand.u32 %v4082, 4294901760
        %4084 = vmatpush2.msra.mxu0 %v4083
        %v4085 = vand.u32 %v365, 4294901760
        %v4086 = vsub.f32 %v365, %v4085
        %v4087 = vand.u32 %v4086, 4294901760
        %4088 = vmatprep.subr.mxu0 %v4087
        %v4089 = vand.u32 %v364, 4294901760
        %v4090 = vsub.f32 %v364, %v4089
        %v4091 = vand.u32 %v4090, 4294901760
        %4092 = vmatpush2.msra.mxu0 %v4091
        %v4093 = vand.u32 %v357, 4294901760
        %v4094 = vsub.f32 %v357, %v4093
        %v4095 = vand.u32 %v4094, 4294901760
        %4096 = vmatprep.subr.mxu0 %v4095
        %v4097 = vand.u32 %v356, 4294901760
        %v4098 = vsub.f32 %v356, %v4097
        %v4099 = vand.u32 %v4098, 4294901760
        %4100 = vmatpush2.msra.mxu0 %v4099
        %v4101 = vand.u32 %v349, 4294901760
        %v4102 = vsub.f32 %v349, %v4101
        %v4103 = vand.u32 %v4102, 4294901760
        %4104 = vmatprep.subr.mxu0 %v4103
        %v4105 = vand.u32 %v348, 4294901760
        %v4106 = vsub.f32 %v348, %v4105
        %v4107 = vand.u32 %v4106, 4294901760
        %4108 = vmatpush2.msra.mxu0 %v4107
        %v4109 = vand.u32 %v341, 4294901760
        %v4110 = vsub.f32 %v341, %v4109
        %v4111 = vand.u32 %v4110, 4294901760
        %4112 = vmatprep.subr.mxu0 %v4111
        %v4113 = vand.u32 %v340, 4294901760
        %v4114 = vsub.f32 %v340, %v4113
        %v4115 = vand.u32 %v4114, 4294901760
        %4116 = vmatpush2.msra.mxu0 %v4115
        %v4117 = vand.u32 %v333, 4294901760
        %v4118 = vsub.f32 %v333, %v4117
        %v4119 = vand.u32 %v4118, 4294901760
        %4120 = vmatprep.subr.mxu0 %v4119
        %v4121 = vand.u32 %v332, 4294901760
        %v4122 = vsub.f32 %v332, %v4121
        %v4123 = vand.u32 %v4122, 4294901760
        %4124 = vmatpush2.msra.mxu0 %v4123
        %v4125 = vand.u32 %v325, 4294901760
        %v4126 = vsub.f32 %v325, %v4125
        %v4127 = vand.u32 %v4126, 4294901760
        %4128 = vmatprep.subr.mxu0 %v4127
        %v4129 = vand.u32 %v324, 4294901760
        %v4130 = vsub.f32 %v324, %v4129
        %v4131 = vand.u32 %v4130, 4294901760
        %4132 = vmatpush2.msra.mxu0 %v4131
        %v4133 = vand.u32 %v317, 4294901760
        %v4134 = vsub.f32 %v317, %v4133
        %v4135 = vand.u32 %v4134, 4294901760
        %4136 = vmatprep.subr.mxu0 %v4135
        %v4137 = vand.u32 %v316, 4294901760
        %v4138 = vsub.f32 %v316, %v4137
        %v4139 = vand.u32 %v4138, 4294901760
        %4140 = vmatpush2.msra.mxu0 %v4139
        %v4141 = vand.u32 %v309, 4294901760
        %v4142 = vsub.f32 %v309, %v4141
        %v4143 = vand.u32 %v4142, 4294901760
        %4144 = vmatprep.subr.mxu0 %v4143
        %v4145 = vand.u32 %v308, 4294901760
        %v4146 = vsub.f32 %v308, %v4145
        %v4147 = vand.u32 %v4146, 4294901760
        %4148 = vmatpush2.msra.mxu0 %v4147
        %v4149 = vand.u32 %v440, 4294901760
        %4150 = vmatprep.mubr.f32.mxu0 %v4149
        %v4151 = vand.u32 %v439, 4294901760
        %4152 = vmatmul.mubr.f32.gmra.mxu0 %v4151
        %v4153 = vpop.f32.mrf.mxu0
        %v4154 = vadd.f32 %v3889, %v4153
        %v4155 = vpop.f32.mrf.mxu0
        %v4156 = vadd.f32 %v3891, %v4155
        %4157 = vdwg.mxu0
        %v4158 = vand.u32 %v301, 4294901760
        %4159 = vmatprep.subr.mxu0 %v4158
        %v4160 = vand.u32 %v300, 4294901760
        %4161 = vmatpush1.msra.mxu0 %v4160
        %v4162 = vand.u32 %v293, 4294901760
        %4163 = vmatprep.subr.mxu0 %v4162
        %v4164 = vand.u32 %v292, 4294901760
        %4165 = vmatpush1.msra.mxu0 %v4164
        %v4166 = vand.u32 %v285, 4294901760
        %4167 = vmatprep.subr.mxu0 %v4166
        %v4168 = vand.u32 %v284, 4294901760
        %4169 = vmatpush1.msra.mxu0 %v4168
        %v4170 = vand.u32 %v277, 4294901760
        %4171 = vmatprep.subr.mxu0 %v4170
        %v4172 = vand.u32 %v276, 4294901760
        %4173 = vmatpush1.msra.mxu0 %v4172
        %v4174 = vand.u32 %v269, 4294901760
        %4175 = vmatprep.subr.mxu0 %v4174
        %v4176 = vand.u32 %v268, 4294901760
        %4177 = vmatpush1.msra.mxu0 %v4176
        %v4178 = vand.u32 %v261, 4294901760
        %4179 = vmatprep.subr.mxu0 %v4178
        %v4180 = vand.u32 %v260, 4294901760
        %4181 = vmatpush1.msra.mxu0 %v4180
        %v4182 = vand.u32 %v253, 4294901760
        %4183 = vmatprep.subr.mxu0 %v4182
        %v4184 = vand.u32 %v252, 4294901760
        %4185 = vmatpush1.msra.mxu0 %v4184
        %v4186 = vand.u32 %v245, 4294901760
        %4187 = vmatprep.subr.mxu0 %v4186
        %v4188 = vand.u32 %v244, 4294901760
        %4189 = vmatpush1.msra.mxu0 %v4188
        %v4190 = vand.u32 %v237, 4294901760
        %4191 = vmatprep.subr.mxu0 %v4190
        %v4192 = vand.u32 %v236, 4294901760
        %4193 = vmatpush1.msra.mxu0 %v4192
        %v4194 = vand.u32 %v229, 4294901760
        %4195 = vmatprep.subr.mxu0 %v4194
        %v4196 = vand.u32 %v228, 4294901760
        %4197 = vmatpush1.msra.mxu0 %v4196
        %v4198 = vand.u32 %v221, 4294901760
        %4199 = vmatprep.subr.mxu0 %v4198
        %v4200 = vand.u32 %v220, 4294901760
        %4201 = vmatpush1.msra.mxu0 %v4200
        %v4202 = vand.u32 %v213, 4294901760
        %4203 = vmatprep.subr.mxu0 %v4202
        %v4204 = vand.u32 %v212, 4294901760
        %4205 = vmatpush1.msra.mxu0 %v4204
        %v4206 = vand.u32 %v205, 4294901760
        %4207 = vmatprep.subr.mxu0 %v4206
        %v4208 = vand.u32 %v204, 4294901760
        %4209 = vmatpush1.msra.mxu0 %v4208
        %v4210 = vand.u32 %v197, 4294901760
        %4211 = vmatprep.subr.mxu0 %v4210
        %v4212 = vand.u32 %v196, 4294901760
        %4213 = vmatpush1.msra.mxu0 %v4212
        %v4214 = vand.u32 %v189, 4294901760
        %4215 = vmatprep.subr.mxu0 %v4214
        %v4216 = vand.u32 %v188, 4294901760
        %4217 = vmatpush1.msra.mxu0 %v4216
        %v4218 = vand.u32 %v181, 4294901760
        %4219 = vmatprep.subr.mxu0 %v4218
        %v4220 = vand.u32 %v180, 4294901760
        %4221 = vmatpush1.msra.mxu0 %v4220
        %v4222 = vand.u32 %v429, 4294901760
        %4223 = vmatprep.subr.mxu0 %v4222
        %v4224 = vand.u32 %v428, 4294901760
        %4225 = vmatpush2.msra.mxu0 %v4224
        %v4226 = vand.u32 %v421, 4294901760
        %4227 = vmatprep.subr.mxu0 %v4226
        %v4228 = vand.u32 %v420, 4294901760
        %4229 = vmatpush2.msra.mxu0 %v4228
        %v4230 = vand.u32 %v413, 4294901760
        %4231 = vmatprep.subr.mxu0 %v4230
        %v4232 = vand.u32 %v412, 4294901760
        %4233 = vmatpush2.msra.mxu0 %v4232
        %v4234 = vand.u32 %v405, 4294901760
        %4235 = vmatprep.subr.mxu0 %v4234
        %v4236 = vand.u32 %v404, 4294901760
        %4237 = vmatpush2.msra.mxu0 %v4236
        %v4238 = vand.u32 %v397, 4294901760
        %4239 = vmatprep.subr.mxu0 %v4238
        %v4240 = vand.u32 %v396, 4294901760
        %4241 = vmatpush2.msra.mxu0 %v4240
        %v4242 = vand.u32 %v389, 4294901760
        %4243 = vmatprep.subr.mxu0 %v4242
        %v4244 = vand.u32 %v388, 4294901760
        %4245 = vmatpush2.msra.mxu0 %v4244
        %v4246 = vand.u32 %v381, 4294901760
        %4247 = vmatprep.subr.mxu0 %v4246
        %v4248 = vand.u32 %v380, 4294901760
        %4249 = vmatpush2.msra.mxu0 %v4248
        %v4250 = vand.u32 %v373, 4294901760
        %4251 = vmatprep.subr.mxu0 %v4250
        %v4252 = vand.u32 %v372, 4294901760
        %4253 = vmatpush2.msra.mxu0 %v4252
        %v4254 = vand.u32 %v365, 4294901760
        %4255 = vmatprep.subr.mxu0 %v4254
        %v4256 = vand.u32 %v364, 4294901760
        %4257 = vmatpush2.msra.mxu0 %v4256
        %v4258 = vand.u32 %v357, 4294901760
        %4259 = vmatprep.subr.mxu0 %v4258
        %v4260 = vand.u32 %v356, 4294901760
        %4261 = vmatpush2.msra.mxu0 %v4260
        %v4262 = vand.u32 %v349, 4294901760
        %4263 = vmatprep.subr.mxu0 %v4262
        %v4264 = vand.u32 %v348, 4294901760
        %4265 = vmatpush2.msra.mxu0 %v4264
        %v4266 = vand.u32 %v341, 4294901760
        %4267 = vmatprep.subr.mxu0 %v4266
        %v4268 = vand.u32 %v340, 4294901760
        %4269 = vmatpush2.msra.mxu0 %v4268
        %v4270 = vand.u32 %v333, 4294901760
        %4271 = vmatprep.subr.mxu0 %v4270
        %v4272 = vand.u32 %v332, 4294901760
        %4273 = vmatpush2.msra.mxu0 %v4272
        %v4274 = vand.u32 %v325, 4294901760
        %4275 = vmatprep.subr.mxu0 %v4274
        %v4276 = vand.u32 %v324, 4294901760
        %4277 = vmatpush2.msra.mxu0 %v4276
        %v4278 = vand.u32 %v317, 4294901760
        %4279 = vmatprep.subr.mxu0 %v4278
        %v4280 = vand.u32 %v316, 4294901760
        %4281 = vmatpush2.msra.mxu0 %v4280
        %v4282 = vand.u32 %v309, 4294901760
        %4283 = vmatprep.subr.mxu0 %v4282
        %v4284 = vand.u32 %v308, 4294901760
        %4285 = vmatpush2.msra.mxu0 %v4284
        %v4286 = vand.u32 %v440, 4294901760
        %4287 = vmatprep.mubr.f32.mxu0 %v4286
        %v4288 = vand.u32 %v439, 4294901760
        %4289 = vmatmul.mubr.f32.gmra.mxu0 %v4288
        %v4290 = vpop.f32.mrf.mxu0
        %v4291 = vadd.f32 %v4154, %v4290
        %v4292 = vpop.f32.mrf.mxu0
        %v4293 = vadd.f32 %v4156, %v4292
        %4294 = vdwg.mxu0
        %v4295 = vand.u32 %v303, 4294901760
        %4296 = vmatprep.subr.mxu0 %v4295
        %v4297 = vand.u32 %v302, 4294901760
        %4298 = vmatpush1.msra.mxu0 %v4297
        %v4299 = vand.u32 %v295, 4294901760
        %4300 = vmatprep.subr.mxu0 %v4299
        %v4301 = vand.u32 %v294, 4294901760
        %4302 = vmatpush1.msra.mxu0 %v4301
        %v4303 = vand.u32 %v287, 4294901760
        %4304 = vmatprep.subr.mxu0 %v4303
        %v4305 = vand.u32 %v286, 4294901760
        %4306 = vmatpush1.msra.mxu0 %v4305
        %v4307 = vand.u32 %v279, 4294901760
        %4308 = vmatprep.subr.mxu0 %v4307
        %v4309 = vand.u32 %v278, 4294901760
        %4310 = vmatpush1.msra.mxu0 %v4309
        %v4311 = vand.u32 %v271, 4294901760
        %4312 = vmatprep.subr.mxu0 %v4311
        %v4313 = vand.u32 %v270, 4294901760
        %4314 = vmatpush1.msra.mxu0 %v4313
        %v4315 = vand.u32 %v263, 4294901760
        %4316 = vmatprep.subr.mxu0 %v4315
        %v4317 = vand.u32 %v262, 4294901760
        %4318 = vmatpush1.msra.mxu0 %v4317
        %v4319 = vand.u32 %v255, 4294901760
        %4320 = vmatprep.subr.mxu0 %v4319
        %v4321 = vand.u32 %v254, 4294901760
        %4322 = vmatpush1.msra.mxu0 %v4321
        %v4323 = vand.u32 %v247, 4294901760
        %4324 = vmatprep.subr.mxu0 %v4323
        %v4325 = vand.u32 %v246, 4294901760
        %4326 = vmatpush1.msra.mxu0 %v4325
        %v4327 = vand.u32 %v239, 4294901760
        %4328 = vmatprep.subr.mxu0 %v4327
        %v4329 = vand.u32 %v238, 4294901760
        %4330 = vmatpush1.msra.mxu0 %v4329
        %v4331 = vand.u32 %v231, 4294901760
        %4332 = vmatprep.subr.mxu0 %v4331
        %v4333 = vand.u32 %v230, 4294901760
        %4334 = vmatpush1.msra.mxu0 %v4333
        %v4335 = vand.u32 %v223, 4294901760
        %4336 = vmatprep.subr.mxu0 %v4335
        %v4337 = vand.u32 %v222, 4294901760
        %4338 = vmatpush1.msra.mxu0 %v4337
        %v4339 = vand.u32 %v215, 4294901760
        %4340 = vmatprep.subr.mxu0 %v4339
        %v4341 = vand.u32 %v214, 4294901760
        %4342 = vmatpush1.msra.mxu0 %v4341
        %v4343 = vand.u32 %v207, 4294901760
        %4344 = vmatprep.subr.mxu0 %v4343
        %v4345 = vand.u32 %v206, 4294901760
        %4346 = vmatpush1.msra.mxu0 %v4345
        %v4347 = vand.u32 %v199, 4294901760
        %4348 = vmatprep.subr.mxu0 %v4347
        %v4349 = vand.u32 %v198, 4294901760
        %4350 = vmatpush1.msra.mxu0 %v4349
        %v4351 = vand.u32 %v191, 4294901760
        %4352 = vmatprep.subr.mxu0 %v4351
        %v4353 = vand.u32 %v190, 4294901760
        %4354 = vmatpush1.msra.mxu0 %v4353
        %v4355 = vand.u32 %v183, 4294901760
        %4356 = vmatprep.subr.mxu0 %v4355
        %v4357 = vand.u32 %v182, 4294901760
        %4358 = vmatpush1.msra.mxu0 %v4357
        %v4359 = vand.u32 %v431, 4294901760
        %4360 = vmatprep.subr.mxu0 %v4359
        %v4361 = vand.u32 %v430, 4294901760
        %4362 = vmatpush2.msra.mxu0 %v4361
        %v4363 = vand.u32 %v423, 4294901760
        %4364 = vmatprep.subr.mxu0 %v4363
        %v4365 = vand.u32 %v422, 4294901760
        %4366 = vmatpush2.msra.mxu0 %v4365
        %v4367 = vand.u32 %v415, 4294901760
        %4368 = vmatprep.subr.mxu0 %v4367
        %v4369 = vand.u32 %v414, 4294901760
        %4370 = vmatpush2.msra.mxu0 %v4369
        %v4371 = vand.u32 %v407, 4294901760
        %4372 = vmatprep.subr.mxu0 %v4371
        %v4373 = vand.u32 %v406, 4294901760
        %4374 = vmatpush2.msra.mxu0 %v4373
        %v4375 = vand.u32 %v399, 4294901760
        %4376 = vmatprep.subr.mxu0 %v4375
        %v4377 = vand.u32 %v398, 4294901760
        %4378 = vmatpush2.msra.mxu0 %v4377
        %v4379 = vand.u32 %v391, 4294901760
        %4380 = vmatprep.subr.mxu0 %v4379
        %v4381 = vand.u32 %v390, 4294901760
        %4382 = vmatpush2.msra.mxu0 %v4381
        %v4383 = vand.u32 %v383, 4294901760
        %4384 = vmatprep.subr.mxu0 %v4383
        %v4385 = vand.u32 %v382, 4294901760
        %4386 = vmatpush2.msra.mxu0 %v4385
        %v4387 = vand.u32 %v375, 4294901760
        %4388 = vmatprep.subr.mxu0 %v4387
        %v4389 = vand.u32 %v374, 4294901760
        %4390 = vmatpush2.msra.mxu0 %v4389
        %v4391 = vand.u32 %v367, 4294901760
        %4392 = vmatprep.subr.mxu0 %v4391
        %v4393 = vand.u32 %v366, 4294901760
        %4394 = vmatpush2.msra.mxu0 %v4393
        %v4395 = vand.u32 %v359, 4294901760
        %4396 = vmatprep.subr.mxu0 %v4395
        %v4397 = vand.u32 %v358, 4294901760
        %4398 = vmatpush2.msra.mxu0 %v4397
        %v4399 = vand.u32 %v351, 4294901760
        %4400 = vmatprep.subr.mxu0 %v4399
        %v4401 = vand.u32 %v350, 4294901760
        %4402 = vmatpush2.msra.mxu0 %v4401
        %v4403 = vand.u32 %v343, 4294901760
        %4404 = vmatprep.subr.mxu0 %v4403
        %v4405 = vand.u32 %v342, 4294901760
        %4406 = vmatpush2.msra.mxu0 %v4405
        %v4407 = vand.u32 %v335, 4294901760
        %4408 = vmatprep.subr.mxu0 %v4407
        %v4409 = vand.u32 %v334, 4294901760
        %4410 = vmatpush2.msra.mxu0 %v4409
        %v4411 = vand.u32 %v327, 4294901760
        %4412 = vmatprep.subr.mxu0 %v4411
        %v4413 = vand.u32 %v326, 4294901760
        %4414 = vmatpush2.msra.mxu0 %v4413
        %v4415 = vand.u32 %v319, 4294901760
        %4416 = vmatprep.subr.mxu0 %v4415
        %v4417 = vand.u32 %v318, 4294901760
        %4418 = vmatpush2.msra.mxu0 %v4417
        %v4419 = vand.u32 %v311, 4294901760
        %4420 = vmatprep.subr.mxu0 %v4419
        %v4421 = vand.u32 %v310, 4294901760
        %4422 = vmatpush2.msra.mxu0 %v4421
        %v4423 = vand.u32 %v440, 4294901760
        %v4424 = vsub.f32 %v440, %v4423
        %v4425 = vand.u32 %v4424, 4294901760
        %v4426 = vsub.f32 %v4424, %v4425
        %v4427 = vand.u32 %v4426, 4294901760
        %4428 = vmatprep.mubr.f32.mxu0 %v4427
        %v4429 = vand.u32 %v439, 4294901760
        %v4430 = vsub.f32 %v439, %v4429
        %v4431 = vand.u32 %v4430, 4294901760
        %v4432 = vsub.f32 %v4430, %v4431
        %v4433 = vand.u32 %v4432, 4294901760
        %4434 = vmatmul.mubr.f32.gmra.mxu0 %v4433
        %v4435 = vpop.f32.mrf.mxu0
        %v4436 = vadd.f32 0.0, %v4435
        %v4437 = vpop.f32.mrf.mxu0
        %v4438 = vadd.f32 0.0, %v4437
        %4439 = vdwg.mxu0
        %v4440 = vand.u32 %v303, 4294901760
        %v4441 = vsub.f32 %v303, %v4440
        %v4442 = vand.u32 %v4441, 4294901760
        %v4443 = vsub.f32 %v4441, %v4442
        %v4444 = vand.u32 %v4443, 4294901760
        %4445 = vmatprep.subr.mxu0 %v4444
        %v4446 = vand.u32 %v302, 4294901760
        %v4447 = vsub.f32 %v302, %v4446
        %v4448 = vand.u32 %v4447, 4294901760
        %v4449 = vsub.f32 %v4447, %v4448
        %v4450 = vand.u32 %v4449, 4294901760
        %4451 = vmatpush1.msra.mxu0 %v4450
        %v4452 = vand.u32 %v295, 4294901760
        %v4453 = vsub.f32 %v295, %v4452
        %v4454 = vand.u32 %v4453, 4294901760
        %v4455 = vsub.f32 %v4453, %v4454
        %v4456 = vand.u32 %v4455, 4294901760
        %4457 = vmatprep.subr.mxu0 %v4456
        %v4458 = vand.u32 %v294, 4294901760
        %v4459 = vsub.f32 %v294, %v4458
        %v4460 = vand.u32 %v4459, 4294901760
        %v4461 = vsub.f32 %v4459, %v4460
        %v4462 = vand.u32 %v4461, 4294901760
        %4463 = vmatpush1.msra.mxu0 %v4462
        %v4464 = vand.u32 %v287, 4294901760
        %v4465 = vsub.f32 %v287, %v4464
        %v4466 = vand.u32 %v4465, 4294901760
        %v4467 = vsub.f32 %v4465, %v4466
        %v4468 = vand.u32 %v4467, 4294901760
        %4469 = vmatprep.subr.mxu0 %v4468
        %v4470 = vand.u32 %v286, 4294901760
        %v4471 = vsub.f32 %v286, %v4470
        %v4472 = vand.u32 %v4471, 4294901760
        %v4473 = vsub.f32 %v4471, %v4472
        %v4474 = vand.u32 %v4473, 4294901760
        %4475 = vmatpush1.msra.mxu0 %v4474
        %v4476 = vand.u32 %v279, 4294901760
        %v4477 = vsub.f32 %v279, %v4476
        %v4478 = vand.u32 %v4477, 4294901760
        %v4479 = vsub.f32 %v4477, %v4478
        %v4480 = vand.u32 %v4479, 4294901760
        %4481 = vmatprep.subr.mxu0 %v4480
        %v4482 = vand.u32 %v278, 4294901760
        %v4483 = vsub.f32 %v278, %v4482
        %v4484 = vand.u32 %v4483, 4294901760
        %v4485 = vsub.f32 %v4483, %v4484
        %v4486 = vand.u32 %v4485, 4294901760
        %4487 = vmatpush1.msra.mxu0 %v4486
        %v4488 = vand.u32 %v271, 4294901760
        %v4489 = vsub.f32 %v271, %v4488
        %v4490 = vand.u32 %v4489, 4294901760
        %v4491 = vsub.f32 %v4489, %v4490
        %v4492 = vand.u32 %v4491, 4294901760
        %4493 = vmatprep.subr.mxu0 %v4492
        %v4494 = vand.u32 %v270, 4294901760
        %v4495 = vsub.f32 %v270, %v4494
        %v4496 = vand.u32 %v4495, 4294901760
        %v4497 = vsub.f32 %v4495, %v4496
        %v4498 = vand.u32 %v4497, 4294901760
        %4499 = vmatpush1.msra.mxu0 %v4498
        %v4500 = vand.u32 %v263, 4294901760
        %v4501 = vsub.f32 %v263, %v4500
        %v4502 = vand.u32 %v4501, 4294901760
        %v4503 = vsub.f32 %v4501, %v4502
        %v4504 = vand.u32 %v4503, 4294901760
        %4505 = vmatprep.subr.mxu0 %v4504
        %v4506 = vand.u32 %v262, 4294901760
        %v4507 = vsub.f32 %v262, %v4506
        %v4508 = vand.u32 %v4507, 4294901760
        %v4509 = vsub.f32 %v4507, %v4508
        %v4510 = vand.u32 %v4509, 4294901760
        %4511 = vmatpush1.msra.mxu0 %v4510
        %v4512 = vand.u32 %v255, 4294901760
        %v4513 = vsub.f32 %v255, %v4512
        %v4514 = vand.u32 %v4513, 4294901760
        %v4515 = vsub.f32 %v4513, %v4514
        %v4516 = vand.u32 %v4515, 4294901760
        %4517 = vmatprep.subr.mxu0 %v4516
        %v4518 = vand.u32 %v254, 4294901760
        %v4519 = vsub.f32 %v254, %v4518
        %v4520 = vand.u32 %v4519, 4294901760
        %v4521 = vsub.f32 %v4519, %v4520
        %v4522 = vand.u32 %v4521, 4294901760
        %4523 = vmatpush1.msra.mxu0 %v4522
        %v4524 = vand.u32 %v247, 4294901760
        %v4525 = vsub.f32 %v247, %v4524
        %v4526 = vand.u32 %v4525, 4294901760
        %v4527 = vsub.f32 %v4525, %v4526
        %v4528 = vand.u32 %v4527, 4294901760
        %4529 = vmatprep.subr.mxu0 %v4528
        %v4530 = vand.u32 %v246, 4294901760
        %v4531 = vsub.f32 %v246, %v4530
        %v4532 = vand.u32 %v4531, 4294901760
        %v4533 = vsub.f32 %v4531, %v4532
        %v4534 = vand.u32 %v4533, 4294901760
        %4535 = vmatpush1.msra.mxu0 %v4534
        %v4536 = vand.u32 %v239, 4294901760
        %v4537 = vsub.f32 %v239, %v4536
        %v4538 = vand.u32 %v4537, 4294901760
        %v4539 = vsub.f32 %v4537, %v4538
        %v4540 = vand.u32 %v4539, 4294901760
        %4541 = vmatprep.subr.mxu0 %v4540
        %v4542 = vand.u32 %v238, 4294901760
        %v4543 = vsub.f32 %v238, %v4542
        %v4544 = vand.u32 %v4543, 4294901760
        %v4545 = vsub.f32 %v4543, %v4544
        %v4546 = vand.u32 %v4545, 4294901760
        %4547 = vmatpush1.msra.mxu0 %v4546
        %v4548 = vand.u32 %v231, 4294901760
        %v4549 = vsub.f32 %v231, %v4548
        %v4550 = vand.u32 %v4549, 4294901760
        %v4551 = vsub.f32 %v4549, %v4550
        %v4552 = vand.u32 %v4551, 4294901760
        %4553 = vmatprep.subr.mxu0 %v4552
        %v4554 = vand.u32 %v230, 4294901760
        %v4555 = vsub.f32 %v230, %v4554
        %v4556 = vand.u32 %v4555, 4294901760
        %v4557 = vsub.f32 %v4555, %v4556
        %v4558 = vand.u32 %v4557, 4294901760
        %4559 = vmatpush1.msra.mxu0 %v4558
        %v4560 = vand.u32 %v223, 4294901760
        %v4561 = vsub.f32 %v223, %v4560
        %v4562 = vand.u32 %v4561, 4294901760
        %v4563 = vsub.f32 %v4561, %v4562
        %v4564 = vand.u32 %v4563, 4294901760
        %4565 = vmatprep.subr.mxu0 %v4564
        %v4566 = vand.u32 %v222, 4294901760
        %v4567 = vsub.f32 %v222, %v4566
        %v4568 = vand.u32 %v4567, 4294901760
        %v4569 = vsub.f32 %v4567, %v4568
        %v4570 = vand.u32 %v4569, 4294901760
        %4571 = vmatpush1.msra.mxu0 %v4570
        %v4572 = vand.u32 %v215, 4294901760
        %v4573 = vsub.f32 %v215, %v4572
        %v4574 = vand.u32 %v4573, 4294901760
        %v4575 = vsub.f32 %v4573, %v4574
        %v4576 = vand.u32 %v4575, 4294901760
        %4577 = vmatprep.subr.mxu0 %v4576
        %v4578 = vand.u32 %v214, 4294901760
        %v4579 = vsub.f32 %v214, %v4578
        %v4580 = vand.u32 %v4579, 4294901760
        %v4581 = vsub.f32 %v4579, %v4580
        %v4582 = vand.u32 %v4581, 4294901760
        %4583 = vmatpush1.msra.mxu0 %v4582
        %v4584 = vand.u32 %v207, 4294901760
        %v4585 = vsub.f32 %v207, %v4584
        %v4586 = vand.u32 %v4585, 4294901760
        %v4587 = vsub.f32 %v4585, %v4586
        %v4588 = vand.u32 %v4587, 4294901760
        %4589 = vmatprep.subr.mxu0 %v4588
        %v4590 = vand.u32 %v206, 4294901760
        %v4591 = vsub.f32 %v206, %v4590
        %v4592 = vand.u32 %v4591, 4294901760
        %v4593 = vsub.f32 %v4591, %v4592
        %v4594 = vand.u32 %v4593, 4294901760
        %4595 = vmatpush1.msra.mxu0 %v4594
        %v4596 = vand.u32 %v199, 4294901760
        %v4597 = vsub.f32 %v199, %v4596
        %v4598 = vand.u32 %v4597, 4294901760
        %v4599 = vsub.f32 %v4597, %v4598
        %v4600 = vand.u32 %v4599, 4294901760
        %4601 = vmatprep.subr.mxu0 %v4600
        %v4602 = vand.u32 %v198, 4294901760
        %v4603 = vsub.f32 %v198, %v4602
        %v4604 = vand.u32 %v4603, 4294901760
        %v4605 = vsub.f32 %v4603, %v4604
        %v4606 = vand.u32 %v4605, 4294901760
        %4607 = vmatpush1.msra.mxu0 %v4606
        %v4608 = vand.u32 %v191, 4294901760
        %v4609 = vsub.f32 %v191, %v4608
        %v4610 = vand.u32 %v4609, 4294901760
        %v4611 = vsub.f32 %v4609, %v4610
        %v4612 = vand.u32 %v4611, 4294901760
        %4613 = vmatprep.subr.mxu0 %v4612
        %v4614 = vand.u32 %v190, 4294901760
        %v4615 = vsub.f32 %v190, %v4614
        %v4616 = vand.u32 %v4615, 4294901760
        %v4617 = vsub.f32 %v4615, %v4616
        %v4618 = vand.u32 %v4617, 4294901760
        %4619 = vmatpush1.msra.mxu0 %v4618
        %v4620 = vand.u32 %v183, 4294901760
        %v4621 = vsub.f32 %v183, %v4620
        %v4622 = vand.u32 %v4621, 4294901760
        %v4623 = vsub.f32 %v4621, %v4622
        %v4624 = vand.u32 %v4623, 4294901760
        %4625 = vmatprep.subr.mxu0 %v4624
        %v4626 = vand.u32 %v182, 4294901760
        %v4627 = vsub.f32 %v182, %v4626
        %v4628 = vand.u32 %v4627, 4294901760
        %v4629 = vsub.f32 %v4627, %v4628
        %v4630 = vand.u32 %v4629, 4294901760
        %4631 = vmatpush1.msra.mxu0 %v4630
        %v4632 = vand.u32 %v431, 4294901760
        %v4633 = vsub.f32 %v431, %v4632
        %v4634 = vand.u32 %v4633, 4294901760
        %v4635 = vsub.f32 %v4633, %v4634
        %v4636 = vand.u32 %v4635, 4294901760
        %4637 = vmatprep.subr.mxu0 %v4636
        %v4638 = vand.u32 %v430, 4294901760
        %v4639 = vsub.f32 %v430, %v4638
        %v4640 = vand.u32 %v4639, 4294901760
        %v4641 = vsub.f32 %v4639, %v4640
        %v4642 = vand.u32 %v4641, 4294901760
        %4643 = vmatpush2.msra.mxu0 %v4642
        %v4644 = vand.u32 %v423, 4294901760
        %v4645 = vsub.f32 %v423, %v4644
        %v4646 = vand.u32 %v4645, 4294901760
        %v4647 = vsub.f32 %v4645, %v4646
        %v4648 = vand.u32 %v4647, 4294901760
        %4649 = vmatprep.subr.mxu0 %v4648
        %v4650 = vand.u32 %v422, 4294901760
        %v4651 = vsub.f32 %v422, %v4650
        %v4652 = vand.u32 %v4651, 4294901760
        %v4653 = vsub.f32 %v4651, %v4652
        %v4654 = vand.u32 %v4653, 4294901760
        %4655 = vmatpush2.msra.mxu0 %v4654
        %v4656 = vand.u32 %v415, 4294901760
        %v4657 = vsub.f32 %v415, %v4656
        %v4658 = vand.u32 %v4657, 4294901760
        %v4659 = vsub.f32 %v4657, %v4658
        %v4660 = vand.u32 %v4659, 4294901760
        %4661 = vmatprep.subr.mxu0 %v4660
        %v4662 = vand.u32 %v414, 4294901760
        %v4663 = vsub.f32 %v414, %v4662
        %v4664 = vand.u32 %v4663, 4294901760
        %v4665 = vsub.f32 %v4663, %v4664
        %v4666 = vand.u32 %v4665, 4294901760
        %4667 = vmatpush2.msra.mxu0 %v4666
        %v4668 = vand.u32 %v407, 4294901760
        %v4669 = vsub.f32 %v407, %v4668
        %v4670 = vand.u32 %v4669, 4294901760
        %v4671 = vsub.f32 %v4669, %v4670
        %v4672 = vand.u32 %v4671, 4294901760
        %4673 = vmatprep.subr.mxu0 %v4672
        %v4674 = vand.u32 %v406, 4294901760
        %v4675 = vsub.f32 %v406, %v4674
        %v4676 = vand.u32 %v4675, 4294901760
        %v4677 = vsub.f32 %v4675, %v4676
        %v4678 = vand.u32 %v4677, 4294901760
        %4679 = vmatpush2.msra.mxu0 %v4678
        %v4680 = vand.u32 %v399, 4294901760
        %v4681 = vsub.f32 %v399, %v4680
        %v4682 = vand.u32 %v4681, 4294901760
        %v4683 = vsub.f32 %v4681, %v4682
        %v4684 = vand.u32 %v4683, 4294901760
        %4685 = vmatprep.subr.mxu0 %v4684
        %v4686 = vand.u32 %v398, 4294901760
        %v4687 = vsub.f32 %v398, %v4686
        %v4688 = vand.u32 %v4687, 4294901760
        %v4689 = vsub.f32 %v4687, %v4688
        %v4690 = vand.u32 %v4689, 4294901760
        %4691 = vmatpush2.msra.mxu0 %v4690
        %v4692 = vand.u32 %v391, 4294901760
        %v4693 = vsub.f32 %v391, %v4692
        %v4694 = vand.u32 %v4693, 4294901760
        %v4695 = vsub.f32 %v4693, %v4694
        %v4696 = vand.u32 %v4695, 4294901760
        %4697 = vmatprep.subr.mxu0 %v4696
        %v4698 = vand.u32 %v390, 4294901760
        %v4699 = vsub.f32 %v390, %v4698
        %v4700 = vand.u32 %v4699, 4294901760
        %v4701 = vsub.f32 %v4699, %v4700
        %v4702 = vand.u32 %v4701, 4294901760
        %4703 = vmatpush2.msra.mxu0 %v4702
        %v4704 = vand.u32 %v383, 4294901760
        %v4705 = vsub.f32 %v383, %v4704
        %v4706 = vand.u32 %v4705, 4294901760
        %v4707 = vsub.f32 %v4705, %v4706
        %v4708 = vand.u32 %v4707, 4294901760
        %4709 = vmatprep.subr.mxu0 %v4708
        %v4710 = vand.u32 %v382, 4294901760
        %v4711 = vsub.f32 %v382, %v4710
        %v4712 = vand.u32 %v4711, 4294901760
        %v4713 = vsub.f32 %v4711, %v4712
        %v4714 = vand.u32 %v4713, 4294901760
        %4715 = vmatpush2.msra.mxu0 %v4714
        %v4716 = vand.u32 %v375, 4294901760
        %v4717 = vsub.f32 %v375, %v4716
        %v4718 = vand.u32 %v4717, 4294901760
        %v4719 = vsub.f32 %v4717, %v4718
        %v4720 = vand.u32 %v4719, 4294901760
        %4721 = vmatprep.subr.mxu0 %v4720
        %v4722 = vand.u32 %v374, 4294901760
        %v4723 = vsub.f32 %v374, %v4722
        %v4724 = vand.u32 %v4723, 4294901760
        %v4725 = vsub.f32 %v4723, %v4724
        %v4726 = vand.u32 %v4725, 4294901760
        %4727 = vmatpush2.msra.mxu0 %v4726
        %v4728 = vand.u32 %v367, 4294901760
        %v4729 = vsub.f32 %v367, %v4728
        %v4730 = vand.u32 %v4729, 4294901760
        %v4731 = vsub.f32 %v4729, %v4730
        %v4732 = vand.u32 %v4731, 4294901760
        %4733 = vmatprep.subr.mxu0 %v4732
        %v4734 = vand.u32 %v366, 4294901760
        %v4735 = vsub.f32 %v366, %v4734
        %v4736 = vand.u32 %v4735, 4294901760
        %v4737 = vsub.f32 %v4735, %v4736
        %v4738 = vand.u32 %v4737, 4294901760
        %4739 = vmatpush2.msra.mxu0 %v4738
        %v4740 = vand.u32 %v359, 4294901760
        %v4741 = vsub.f32 %v359, %v4740
        %v4742 = vand.u32 %v4741, 4294901760
        %v4743 = vsub.f32 %v4741, %v4742
        %v4744 = vand.u32 %v4743, 4294901760
        %4745 = vmatprep.subr.mxu0 %v4744
        %v4746 = vand.u32 %v358, 4294901760
        %v4747 = vsub.f32 %v358, %v4746
        %v4748 = vand.u32 %v4747, 4294901760
        %v4749 = vsub.f32 %v4747, %v4748
        %v4750 = vand.u32 %v4749, 4294901760
        %4751 = vmatpush2.msra.mxu0 %v4750
        %v4752 = vand.u32 %v351, 4294901760
        %v4753 = vsub.f32 %v351, %v4752
        %v4754 = vand.u32 %v4753, 4294901760
        %v4755 = vsub.f32 %v4753, %v4754
        %v4756 = vand.u32 %v4755, 4294901760
        %4757 = vmatprep.subr.mxu0 %v4756
        %v4758 = vand.u32 %v350, 4294901760
        %v4759 = vsub.f32 %v350, %v4758
        %v4760 = vand.u32 %v4759, 4294901760
        %v4761 = vsub.f32 %v4759, %v4760
        %v4762 = vand.u32 %v4761, 4294901760
        %4763 = vmatpush2.msra.mxu0 %v4762
        %v4764 = vand.u32 %v343, 4294901760
        %v4765 = vsub.f32 %v343, %v4764
        %v4766 = vand.u32 %v4765, 4294901760
        %v4767 = vsub.f32 %v4765, %v4766
        %v4768 = vand.u32 %v4767, 4294901760
        %4769 = vmatprep.subr.mxu0 %v4768
        %v4770 = vand.u32 %v342, 4294901760
        %v4771 = vsub.f32 %v342, %v4770
        %v4772 = vand.u32 %v4771, 4294901760
        %v4773 = vsub.f32 %v4771, %v4772
        %v4774 = vand.u32 %v4773, 4294901760
        %4775 = vmatpush2.msra.mxu0 %v4774
        %v4776 = vand.u32 %v335, 4294901760
        %v4777 = vsub.f32 %v335, %v4776
        %v4778 = vand.u32 %v4777, 4294901760
        %v4779 = vsub.f32 %v4777, %v4778
        %v4780 = vand.u32 %v4779, 4294901760
        %4781 = vmatprep.subr.mxu0 %v4780
        %v4782 = vand.u32 %v334, 4294901760
        %v4783 = vsub.f32 %v334, %v4782
        %v4784 = vand.u32 %v4783, 4294901760
        %v4785 = vsub.f32 %v4783, %v4784
        %v4786 = vand.u32 %v4785, 4294901760
        %4787 = vmatpush2.msra.mxu0 %v4786
        %v4788 = vand.u32 %v327, 4294901760
        %v4789 = vsub.f32 %v327, %v4788
        %v4790 = vand.u32 %v4789, 4294901760
        %v4791 = vsub.f32 %v4789, %v4790
        %v4792 = vand.u32 %v4791, 4294901760
        %4793 = vmatprep.subr.mxu0 %v4792
        %v4794 = vand.u32 %v326, 4294901760
        %v4795 = vsub.f32 %v326, %v4794
        %v4796 = vand.u32 %v4795, 4294901760
        %v4797 = vsub.f32 %v4795, %v4796
        %v4798 = vand.u32 %v4797, 4294901760
        %4799 = vmatpush2.msra.mxu0 %v4798
        %v4800 = vand.u32 %v319, 4294901760
        %v4801 = vsub.f32 %v319, %v4800
        %v4802 = vand.u32 %v4801, 4294901760
        %v4803 = vsub.f32 %v4801, %v4802
        %v4804 = vand.u32 %v4803, 4294901760
        %4805 = vmatprep.subr.mxu0 %v4804
        %v4806 = vand.u32 %v318, 4294901760
        %v4807 = vsub.f32 %v318, %v4806
        %v4808 = vand.u32 %v4807, 4294901760
        %v4809 = vsub.f32 %v4807, %v4808
        %v4810 = vand.u32 %v4809, 4294901760
        %4811 = vmatpush2.msra.mxu0 %v4810
        %v4812 = vand.u32 %v311, 4294901760
        %v4813 = vsub.f32 %v311, %v4812
        %v4814 = vand.u32 %v4813, 4294901760
        %v4815 = vsub.f32 %v4813, %v4814
        %v4816 = vand.u32 %v4815, 4294901760
        %4817 = vmatprep.subr.mxu0 %v4816
        %v4818 = vand.u32 %v310, 4294901760
        %v4819 = vsub.f32 %v310, %v4818
        %v4820 = vand.u32 %v4819, 4294901760
        %v4821 = vsub.f32 %v4819, %v4820
        %v4822 = vand.u32 %v4821, 4294901760
        %4823 = vmatpush2.msra.mxu0 %v4822
        %v4824 = vand.u32 %v440, 4294901760
        %4825 = vmatprep.mubr.f32.mxu0 %v4824
        %v4826 = vand.u32 %v439, 4294901760
        %4827 = vmatmul.mubr.f32.gmra.mxu0 %v4826
        %v4828 = vpop.f32.mrf.mxu0
        %v4829 = vadd.f32 %v4436, %v4828
        %v4830 = vpop.f32.mrf.mxu0
        %v4831 = vadd.f32 %v4438, %v4830
        %4832 = vdwg.mxu0
        %v4833 = vand.u32 %v303, 4294901760
        %v4834 = vsub.f32 %v303, %v4833
        %4835 = vmatprep.subr.mxu0 %v4834
        %v4836 = vand.u32 %v302, 4294901760
        %v4837 = vsub.f32 %v302, %v4836
        %4838 = vmatpush1.msra.mxu0 %v4837
        %v4839 = vand.u32 %v295, 4294901760
        %v4840 = vsub.f32 %v295, %v4839
        %4841 = vmatprep.subr.mxu0 %v4840
        %v4842 = vand.u32 %v294, 4294901760
        %v4843 = vsub.f32 %v294, %v4842
        %4844 = vmatpush1.msra.mxu0 %v4843
        %v4845 = vand.u32 %v287, 4294901760
        %v4846 = vsub.f32 %v287, %v4845
        %4847 = vmatprep.subr.mxu0 %v4846
        %v4848 = vand.u32 %v286, 4294901760
        %v4849 = vsub.f32 %v286, %v4848
        %4850 = vmatpush1.msra.mxu0 %v4849
        %v4851 = vand.u32 %v279, 4294901760
        %v4852 = vsub.f32 %v279, %v4851
        %4853 = vmatprep.subr.mxu0 %v4852
        %v4854 = vand.u32 %v278, 4294901760
        %v4855 = vsub.f32 %v278, %v4854
        %4856 = vmatpush1.msra.mxu0 %v4855
        %v4857 = vand.u32 %v271, 4294901760
        %v4858 = vsub.f32 %v271, %v4857
        %4859 = vmatprep.subr.mxu0 %v4858
        %v4860 = vand.u32 %v270, 4294901760
        %v4861 = vsub.f32 %v270, %v4860
        %4862 = vmatpush1.msra.mxu0 %v4861
        %v4863 = vand.u32 %v263, 4294901760
        %v4864 = vsub.f32 %v263, %v4863
        %4865 = vmatprep.subr.mxu0 %v4864
        %v4866 = vand.u32 %v262, 4294901760
        %v4867 = vsub.f32 %v262, %v4866
        %4868 = vmatpush1.msra.mxu0 %v4867
        %v4869 = vand.u32 %v255, 4294901760
        %v4870 = vsub.f32 %v255, %v4869
        %4871 = vmatprep.subr.mxu0 %v4870
        %v4872 = vand.u32 %v254, 4294901760
        %v4873 = vsub.f32 %v254, %v4872
        %4874 = vmatpush1.msra.mxu0 %v4873
        %v4875 = vand.u32 %v247, 4294901760
        %v4876 = vsub.f32 %v247, %v4875
        %4877 = vmatprep.subr.mxu0 %v4876
        %v4878 = vand.u32 %v246, 4294901760
        %v4879 = vsub.f32 %v246, %v4878
        %4880 = vmatpush1.msra.mxu0 %v4879
        %v4881 = vand.u32 %v239, 4294901760
        %v4882 = vsub.f32 %v239, %v4881
        %4883 = vmatprep.subr.mxu0 %v4882
        %v4884 = vand.u32 %v238, 4294901760
        %v4885 = vsub.f32 %v238, %v4884
        %4886 = vmatpush1.msra.mxu0 %v4885
        %v4887 = vand.u32 %v231, 4294901760
        %v4888 = vsub.f32 %v231, %v4887
        %4889 = vmatprep.subr.mxu0 %v4888
        %v4890 = vand.u32 %v230, 4294901760
        %v4891 = vsub.f32 %v230, %v4890
        %4892 = vmatpush1.msra.mxu0 %v4891
        %v4893 = vand.u32 %v223, 4294901760
        %v4894 = vsub.f32 %v223, %v4893
        %4895 = vmatprep.subr.mxu0 %v4894
        %v4896 = vand.u32 %v222, 4294901760
        %v4897 = vsub.f32 %v222, %v4896
        %4898 = vmatpush1.msra.mxu0 %v4897
        %v4899 = vand.u32 %v215, 4294901760
        %v4900 = vsub.f32 %v215, %v4899
        %4901 = vmatprep.subr.mxu0 %v4900
        %v4902 = vand.u32 %v214, 4294901760
        %v4903 = vsub.f32 %v214, %v4902
        %4904 = vmatpush1.msra.mxu0 %v4903
        %v4905 = vand.u32 %v207, 4294901760
        %v4906 = vsub.f32 %v207, %v4905
        %4907 = vmatprep.subr.mxu0 %v4906
        %v4908 = vand.u32 %v206, 4294901760
        %v4909 = vsub.f32 %v206, %v4908
        %4910 = vmatpush1.msra.mxu0 %v4909
        %v4911 = vand.u32 %v199, 4294901760
        %v4912 = vsub.f32 %v199, %v4911
        %4913 = vmatprep.subr.mxu0 %v4912
        %v4914 = vand.u32 %v198, 4294901760
        %v4915 = vsub.f32 %v198, %v4914
        %4916 = vmatpush1.msra.mxu0 %v4915
        %v4917 = vand.u32 %v191, 4294901760
        %v4918 = vsub.f32 %v191, %v4917
        %4919 = vmatprep.subr.mxu0 %v4918
        %v4920 = vand.u32 %v190, 4294901760
        %v4921 = vsub.f32 %v190, %v4920
        %4922 = vmatpush1.msra.mxu0 %v4921
        %v4923 = vand.u32 %v183, 4294901760
        %v4924 = vsub.f32 %v183, %v4923
        %4925 = vmatprep.subr.mxu0 %v4924
        %v4926 = vand.u32 %v182, 4294901760
        %v4927 = vsub.f32 %v182, %v4926
        %4928 = vmatpush1.msra.mxu0 %v4927
        %v4929 = vand.u32 %v431, 4294901760
        %v4930 = vsub.f32 %v431, %v4929
        %4931 = vmatprep.subr.mxu0 %v4930
        %v4932 = vand.u32 %v430, 4294901760
        %v4933 = vsub.f32 %v430, %v4932
        %4934 = vmatpush2.msra.mxu0 %v4933
        %v4935 = vand.u32 %v423, 4294901760
        %v4936 = vsub.f32 %v423, %v4935
        %4937 = vmatprep.subr.mxu0 %v4936
        %v4938 = vand.u32 %v422, 4294901760
        %v4939 = vsub.f32 %v422, %v4938
        %4940 = vmatpush2.msra.mxu0 %v4939
        %v4941 = vand.u32 %v415, 4294901760
        %v4942 = vsub.f32 %v415, %v4941
        %4943 = vmatprep.subr.mxu0 %v4942
        %v4944 = vand.u32 %v414, 4294901760
        %v4945 = vsub.f32 %v414, %v4944
        %4946 = vmatpush2.msra.mxu0 %v4945
        %v4947 = vand.u32 %v407, 4294901760
        %v4948 = vsub.f32 %v407, %v4947
        %4949 = vmatprep.subr.mxu0 %v4948
        %v4950 = vand.u32 %v406, 4294901760
        %v4951 = vsub.f32 %v406, %v4950
        %4952 = vmatpush2.msra.mxu0 %v4951
        %v4953 = vand.u32 %v399, 4294901760
        %v4954 = vsub.f32 %v399, %v4953
        %4955 = vmatprep.subr.mxu0 %v4954
        %v4956 = vand.u32 %v398, 4294901760
        %v4957 = vsub.f32 %v398, %v4956
        %4958 = vmatpush2.msra.mxu0 %v4957
        %v4959 = vand.u32 %v391, 4294901760
        %v4960 = vsub.f32 %v391, %v4959
        %4961 = vmatprep.subr.mxu0 %v4960
        %v4962 = vand.u32 %v390, 4294901760
        %v4963 = vsub.f32 %v390, %v4962
        %4964 = vmatpush2.msra.mxu0 %v4963
        %v4965 = vand.u32 %v383, 4294901760
        %v4966 = vsub.f32 %v383, %v4965
        %4967 = vmatprep.subr.mxu0 %v4966
        %v4968 = vand.u32 %v382, 4294901760
        %v4969 = vsub.f32 %v382, %v4968
        %4970 = vmatpush2.msra.mxu0 %v4969
        %v4971 = vand.u32 %v375, 4294901760
        %v4972 = vsub.f32 %v375, %v4971
        %4973 = vmatprep.subr.mxu0 %v4972
        %v4974 = vand.u32 %v374, 4294901760
        %v4975 = vsub.f32 %v374, %v4974
        %4976 = vmatpush2.msra.mxu0 %v4975
        %v4977 = vand.u32 %v367, 4294901760
        %v4978 = vsub.f32 %v367, %v4977
        %4979 = vmatprep.subr.mxu0 %v4978
        %v4980 = vand.u32 %v366, 4294901760
        %v4981 = vsub.f32 %v366, %v4980
        %4982 = vmatpush2.msra.mxu0 %v4981
        %v4983 = vand.u32 %v359, 4294901760
        %v4984 = vsub.f32 %v359, %v4983
        %4985 = vmatprep.subr.mxu0 %v4984
        %v4986 = vand.u32 %v358, 4294901760
        %v4987 = vsub.f32 %v358, %v4986
        %4988 = vmatpush2.msra.mxu0 %v4987
        %v4989 = vand.u32 %v351, 4294901760
        %v4990 = vsub.f32 %v351, %v4989
        %4991 = vmatprep.subr.mxu0 %v4990
        %v4992 = vand.u32 %v350, 4294901760
        %v4993 = vsub.f32 %v350, %v4992
        %4994 = vmatpush2.msra.mxu0 %v4993
        %v4995 = vand.u32 %v343, 4294901760
        %v4996 = vsub.f32 %v343, %v4995
        %4997 = vmatprep.subr.mxu0 %v4996
        %v4998 = vand.u32 %v342, 4294901760
        %v4999 = vsub.f32 %v342, %v4998
        %5000 = vmatpush2.msra.mxu0 %v4999
        %v5001 = vand.u32 %v335, 4294901760
        %v5002 = vsub.f32 %v335, %v5001
        %5003 = vmatprep.subr.mxu0 %v5002
        %v5004 = vand.u32 %v334, 4294901760
        %v5005 = vsub.f32 %v334, %v5004
        %5006 = vmatpush2.msra.mxu0 %v5005
        %v5007 = vand.u32 %v327, 4294901760
        %v5008 = vsub.f32 %v327, %v5007
        %5009 = vmatprep.subr.mxu0 %v5008
        %v5010 = vand.u32 %v326, 4294901760
        %v5011 = vsub.f32 %v326, %v5010
        %5012 = vmatpush2.msra.mxu0 %v5011
        %v5013 = vand.u32 %v319, 4294901760
        %v5014 = vsub.f32 %v319, %v5013
        %5015 = vmatprep.subr.mxu0 %v5014
        %v5016 = vand.u32 %v318, 4294901760
        %v5017 = vsub.f32 %v318, %v5016
        %5018 = vmatpush2.msra.mxu0 %v5017
        %v5019 = vand.u32 %v311, 4294901760
        %v5020 = vsub.f32 %v311, %v5019
        %5021 = vmatprep.subr.mxu0 %v5020
        %v5022 = vand.u32 %v310, 4294901760
        %v5023 = vsub.f32 %v310, %v5022
        %5024 = vmatpush2.msra.mxu0 %v5023
        %v5025 = vand.u32 %v440, 4294901760
        %v5026 = vsub.f32 %v440, %v5025
        %5027 = vmatprep.mubr.f32.mxu0 %v5026
        %v5028 = vand.u32 %v439, 4294901760
        %v5029 = vsub.f32 %v439, %v5028
        %5030 = vmatmul.mubr.f32.gmra.mxu0 %v5029
        %v5031 = vpop.f32.mrf.mxu0
        %v5032 = vadd.f32 %v4829, %v5031
        %v5033 = vpop.f32.mrf.mxu0
        %v5034 = vadd.f32 %v4831, %v5033
        %5035 = vdwg.mxu0
        %v5036 = vand.u32 %v303, 4294901760
        %5037 = vmatprep.subr.mxu0 %v5036
        %v5038 = vand.u32 %v302, 4294901760
        %5039 = vmatpush1.msra.mxu0 %v5038
        %v5040 = vand.u32 %v295, 4294901760
        %5041 = vmatprep.subr.mxu0 %v5040
        %v5042 = vand.u32 %v294, 4294901760
        %5043 = vmatpush1.msra.mxu0 %v5042
        %v5044 = vand.u32 %v287, 4294901760
        %5045 = vmatprep.subr.mxu0 %v5044
        %v5046 = vand.u32 %v286, 4294901760
        %5047 = vmatpush1.msra.mxu0 %v5046
        %v5048 = vand.u32 %v279, 4294901760
        %5049 = vmatprep.subr.mxu0 %v5048
        %v5050 = vand.u32 %v278, 4294901760
        %5051 = vmatpush1.msra.mxu0 %v5050
        %v5052 = vand.u32 %v271, 4294901760
        %5053 = vmatprep.subr.mxu0 %v5052
        %v5054 = vand.u32 %v270, 4294901760
        %5055 = vmatpush1.msra.mxu0 %v5054
        %v5056 = vand.u32 %v263, 4294901760
        %5057 = vmatprep.subr.mxu0 %v5056
        %v5058 = vand.u32 %v262, 4294901760
        %5059 = vmatpush1.msra.mxu0 %v5058
        %v5060 = vand.u32 %v255, 4294901760
        %5061 = vmatprep.subr.mxu0 %v5060
        %v5062 = vand.u32 %v254, 4294901760
        %5063 = vmatpush1.msra.mxu0 %v5062
        %v5064 = vand.u32 %v247, 4294901760
        %5065 = vmatprep.subr.mxu0 %v5064
        %v5066 = vand.u32 %v246, 4294901760
        %5067 = vmatpush1.msra.mxu0 %v5066
        %v5068 = vand.u32 %v239, 4294901760
        %5069 = vmatprep.subr.mxu0 %v5068
        %v5070 = vand.u32 %v238, 4294901760
        %5071 = vmatpush1.msra.mxu0 %v5070
        %v5072 = vand.u32 %v231, 4294901760
        %5073 = vmatprep.subr.mxu0 %v5072
        %v5074 = vand.u32 %v230, 4294901760
        %5075 = vmatpush1.msra.mxu0 %v5074
        %v5076 = vand.u32 %v223, 4294901760
        %5077 = vmatprep.subr.mxu0 %v5076
        %v5078 = vand.u32 %v222, 4294901760
        %5079 = vmatpush1.msra.mxu0 %v5078
        %v5080 = vand.u32 %v215, 4294901760
        %5081 = vmatprep.subr.mxu0 %v5080
        %v5082 = vand.u32 %v214, 4294901760
        %5083 = vmatpush1.msra.mxu0 %v5082
        %v5084 = vand.u32 %v207, 4294901760
        %5085 = vmatprep.subr.mxu0 %v5084
        %v5086 = vand.u32 %v206, 4294901760
        %5087 = vmatpush1.msra.mxu0 %v5086
        %v5088 = vand.u32 %v199, 4294901760
        %5089 = vmatprep.subr.mxu0 %v5088
        %v5090 = vand.u32 %v198, 4294901760
        %5091 = vmatpush1.msra.mxu0 %v5090
        %v5092 = vand.u32 %v191, 4294901760
        %5093 = vmatprep.subr.mxu0 %v5092
        %v5094 = vand.u32 %v190, 4294901760
        %5095 = vmatpush1.msra.mxu0 %v5094
        %v5096 = vand.u32 %v183, 4294901760
        %5097 = vmatprep.subr.mxu0 %v5096
        %v5098 = vand.u32 %v182, 4294901760
        %5099 = vmatpush1.msra.mxu0 %v5098
        %v5100 = vand.u32 %v431, 4294901760
        %5101 = vmatprep.subr.mxu0 %v5100
        %v5102 = vand.u32 %v430, 4294901760
        %5103 = vmatpush2.msra.mxu0 %v5102
        %v5104 = vand.u32 %v423, 4294901760
        %5105 = vmatprep.subr.mxu0 %v5104
        %v5106 = vand.u32 %v422, 4294901760
        %5107 = vmatpush2.msra.mxu0 %v5106
        %v5108 = vand.u32 %v415, 4294901760
        %5109 = vmatprep.subr.mxu0 %v5108
        %v5110 = vand.u32 %v414, 4294901760
        %5111 = vmatpush2.msra.mxu0 %v5110
        %v5112 = vand.u32 %v407, 4294901760
        %5113 = vmatprep.subr.mxu0 %v5112
        %v5114 = vand.u32 %v406, 4294901760
        %5115 = vmatpush2.msra.mxu0 %v5114
        %v5116 = vand.u32 %v399, 4294901760
        %5117 = vmatprep.subr.mxu0 %v5116
        %v5118 = vand.u32 %v398, 4294901760
        %5119 = vmatpush2.msra.mxu0 %v5118
        %v5120 = vand.u32 %v391, 4294901760
        %5121 = vmatprep.subr.mxu0 %v5120
        %v5122 = vand.u32 %v390, 4294901760
        %5123 = vmatpush2.msra.mxu0 %v5122
        %v5124 = vand.u32 %v383, 4294901760
        %5125 = vmatprep.subr.mxu0 %v5124
        %v5126 = vand.u32 %v382, 4294901760
        %5127 = vmatpush2.msra.mxu0 %v5126
        %v5128 = vand.u32 %v375, 4294901760
        %5129 = vmatprep.subr.mxu0 %v5128
        %v5130 = vand.u32 %v374, 4294901760
        %5131 = vmatpush2.msra.mxu0 %v5130
        %v5132 = vand.u32 %v367, 4294901760
        %5133 = vmatprep.subr.mxu0 %v5132
        %v5134 = vand.u32 %v366, 4294901760
        %5135 = vmatpush2.msra.mxu0 %v5134
        %v5136 = vand.u32 %v359, 4294901760
        %5137 = vmatprep.subr.mxu0 %v5136
        %v5138 = vand.u32 %v358, 4294901760
        %5139 = vmatpush2.msra.mxu0 %v5138
        %v5140 = vand.u32 %v351, 4294901760
        %5141 = vmatprep.subr.mxu0 %v5140
        %v5142 = vand.u32 %v350, 4294901760
        %5143 = vmatpush2.msra.mxu0 %v5142
        %v5144 = vand.u32 %v343, 4294901760
        %5145 = vmatprep.subr.mxu0 %v5144
        %v5146 = vand.u32 %v342, 4294901760
        %5147 = vmatpush2.msra.mxu0 %v5146
        %v5148 = vand.u32 %v335, 4294901760
        %5149 = vmatprep.subr.mxu0 %v5148
        %v5150 = vand.u32 %v334, 4294901760
        %5151 = vmatpush2.msra.mxu0 %v5150
        %v5152 = vand.u32 %v327, 4294901760
        %5153 = vmatprep.subr.mxu0 %v5152
        %v5154 = vand.u32 %v326, 4294901760
        %5155 = vmatpush2.msra.mxu0 %v5154
        %v5156 = vand.u32 %v319, 4294901760
        %5157 = vmatprep.subr.mxu0 %v5156
        %v5158 = vand.u32 %v318, 4294901760
        %5159 = vmatpush2.msra.mxu0 %v5158
        %v5160 = vand.u32 %v311, 4294901760
        %5161 = vmatprep.subr.mxu0 %v5160
        %v5162 = vand.u32 %v310, 4294901760
        %5163 = vmatpush2.msra.mxu0 %v5162
        %v5164 = vand.u32 %v440, 4294901760
        %v5165 = vsub.f32 %v440, %v5164
        %v5166 = vand.u32 %v5165, 4294901760
        %5167 = vmatprep.mubr.f32.mxu0 %v5166
        %v5168 = vand.u32 %v439, 4294901760
        %v5169 = vsub.f32 %v439, %v5168
        %v5170 = vand.u32 %v5169, 4294901760
        %5171 = vmatmul.mubr.f32.gmra.mxu0 %v5170
        %v5172 = vpop.f32.mrf.mxu0
        %v5173 = vadd.f32 %v5032, %v5172
        %v5174 = vpop.f32.mrf.mxu0
        %v5175 = vadd.f32 %v5034, %v5174
        %5176 = vdwg.mxu0
        %v5177 = vand.u32 %v303, 4294901760
        %v5178 = vsub.f32 %v303, %v5177
        %v5179 = vand.u32 %v5178, 4294901760
        %5180 = vmatprep.subr.mxu0 %v5179
        %v5181 = vand.u32 %v302, 4294901760
        %v5182 = vsub.f32 %v302, %v5181
        %v5183 = vand.u32 %v5182, 4294901760
        %5184 = vmatpush1.msra.mxu0 %v5183
        %v5185 = vand.u32 %v295, 4294901760
        %v5186 = vsub.f32 %v295, %v5185
        %v5187 = vand.u32 %v5186, 4294901760
        %5188 = vmatprep.subr.mxu0 %v5187
        %v5189 = vand.u32 %v294, 4294901760
        %v5190 = vsub.f32 %v294, %v5189
        %v5191 = vand.u32 %v5190, 4294901760
        %5192 = vmatpush1.msra.mxu0 %v5191
        %v5193 = vand.u32 %v287, 4294901760
        %v5194 = vsub.f32 %v287, %v5193
        %v5195 = vand.u32 %v5194, 4294901760
        %5196 = vmatprep.subr.mxu0 %v5195
        %v5197 = vand.u32 %v286, 4294901760
        %v5198 = vsub.f32 %v286, %v5197
        %v5199 = vand.u32 %v5198, 4294901760
        %5200 = vmatpush1.msra.mxu0 %v5199
        %v5201 = vand.u32 %v279, 4294901760
        %v5202 = vsub.f32 %v279, %v5201
        %v5203 = vand.u32 %v5202, 4294901760
        %5204 = vmatprep.subr.mxu0 %v5203
        %v5205 = vand.u32 %v278, 4294901760
        %v5206 = vsub.f32 %v278, %v5205
        %v5207 = vand.u32 %v5206, 4294901760
        %5208 = vmatpush1.msra.mxu0 %v5207
        %v5209 = vand.u32 %v271, 4294901760
        %v5210 = vsub.f32 %v271, %v5209
        %v5211 = vand.u32 %v5210, 4294901760
        %5212 = vmatprep.subr.mxu0 %v5211
        %v5213 = vand.u32 %v270, 4294901760
        %v5214 = vsub.f32 %v270, %v5213
        %v5215 = vand.u32 %v5214, 4294901760
        %5216 = vmatpush1.msra.mxu0 %v5215
        %v5217 = vand.u32 %v263, 4294901760
        %v5218 = vsub.f32 %v263, %v5217
        %v5219 = vand.u32 %v5218, 4294901760
        %5220 = vmatprep.subr.mxu0 %v5219
        %v5221 = vand.u32 %v262, 4294901760
        %v5222 = vsub.f32 %v262, %v5221
        %v5223 = vand.u32 %v5222, 4294901760
        %5224 = vmatpush1.msra.mxu0 %v5223
        %v5225 = vand.u32 %v255, 4294901760
        %v5226 = vsub.f32 %v255, %v5225
        %v5227 = vand.u32 %v5226, 4294901760
        %5228 = vmatprep.subr.mxu0 %v5227
        %v5229 = vand.u32 %v254, 4294901760
        %v5230 = vsub.f32 %v254, %v5229
        %v5231 = vand.u32 %v5230, 4294901760
        %5232 = vmatpush1.msra.mxu0 %v5231
        %v5233 = vand.u32 %v247, 4294901760
        %v5234 = vsub.f32 %v247, %v5233
        %v5235 = vand.u32 %v5234, 4294901760
        %5236 = vmatprep.subr.mxu0 %v5235
        %v5237 = vand.u32 %v246, 4294901760
        %v5238 = vsub.f32 %v246, %v5237
        %v5239 = vand.u32 %v5238, 4294901760
        %5240 = vmatpush1.msra.mxu0 %v5239
        %v5241 = vand.u32 %v239, 4294901760
        %v5242 = vsub.f32 %v239, %v5241
        %v5243 = vand.u32 %v5242, 4294901760
        %5244 = vmatprep.subr.mxu0 %v5243
        %v5245 = vand.u32 %v238, 4294901760
        %v5246 = vsub.f32 %v238, %v5245
        %v5247 = vand.u32 %v5246, 4294901760
        %5248 = vmatpush1.msra.mxu0 %v5247
        %v5249 = vand.u32 %v231, 4294901760
        %v5250 = vsub.f32 %v231, %v5249
        %v5251 = vand.u32 %v5250, 4294901760
        %5252 = vmatprep.subr.mxu0 %v5251
        %v5253 = vand.u32 %v230, 4294901760
        %v5254 = vsub.f32 %v230, %v5253
        %v5255 = vand.u32 %v5254, 4294901760
        %5256 = vmatpush1.msra.mxu0 %v5255
        %v5257 = vand.u32 %v223, 4294901760
        %v5258 = vsub.f32 %v223, %v5257
        %v5259 = vand.u32 %v5258, 4294901760
        %5260 = vmatprep.subr.mxu0 %v5259
        %v5261 = vand.u32 %v222, 4294901760
        %v5262 = vsub.f32 %v222, %v5261
        %v5263 = vand.u32 %v5262, 4294901760
        %5264 = vmatpush1.msra.mxu0 %v5263
        %v5265 = vand.u32 %v215, 4294901760
        %v5266 = vsub.f32 %v215, %v5265
        %v5267 = vand.u32 %v5266, 4294901760
        %5268 = vmatprep.subr.mxu0 %v5267
        %v5269 = vand.u32 %v214, 4294901760
        %v5270 = vsub.f32 %v214, %v5269
        %v5271 = vand.u32 %v5270, 4294901760
        %5272 = vmatpush1.msra.mxu0 %v5271
        %v5273 = vand.u32 %v207, 4294901760
        %v5274 = vsub.f32 %v207, %v5273
        %v5275 = vand.u32 %v5274, 4294901760
        %5276 = vmatprep.subr.mxu0 %v5275
        %v5277 = vand.u32 %v206, 4294901760
        %v5278 = vsub.f32 %v206, %v5277
        %v5279 = vand.u32 %v5278, 4294901760
        %5280 = vmatpush1.msra.mxu0 %v5279
        %v5281 = vand.u32 %v199, 4294901760
        %v5282 = vsub.f32 %v199, %v5281
        %v5283 = vand.u32 %v5282, 4294901760
        %5284 = vmatprep.subr.mxu0 %v5283
        %v5285 = vand.u32 %v198, 4294901760
        %v5286 = vsub.f32 %v198, %v5285
        %v5287 = vand.u32 %v5286, 4294901760
        %5288 = vmatpush1.msra.mxu0 %v5287
        %v5289 = vand.u32 %v191, 4294901760
        %v5290 = vsub.f32 %v191, %v5289
        %v5291 = vand.u32 %v5290, 4294901760
        %5292 = vmatprep.subr.mxu0 %v5291
        %v5293 = vand.u32 %v190, 4294901760
        %v5294 = vsub.f32 %v190, %v5293
        %v5295 = vand.u32 %v5294, 4294901760
        %5296 = vmatpush1.msra.mxu0 %v5295
        %v5297 = vand.u32 %v183, 4294901760
        %v5298 = vsub.f32 %v183, %v5297
        %v5299 = vand.u32 %v5298, 4294901760
        %5300 = vmatprep.subr.mxu0 %v5299
        %v5301 = vand.u32 %v182, 4294901760
        %v5302 = vsub.f32 %v182, %v5301
        %v5303 = vand.u32 %v5302, 4294901760
        %5304 = vmatpush1.msra.mxu0 %v5303
        %v5305 = vand.u32 %v431, 4294901760
        %v5306 = vsub.f32 %v431, %v5305
        %v5307 = vand.u32 %v5306, 4294901760
        %5308 = vmatprep.subr.mxu0 %v5307
        %v5309 = vand.u32 %v430, 4294901760
        %v5310 = vsub.f32 %v430, %v5309
        %v5311 = vand.u32 %v5310, 4294901760
        %5312 = vmatpush2.msra.mxu0 %v5311
        %v5313 = vand.u32 %v423, 4294901760
        %v5314 = vsub.f32 %v423, %v5313
        %v5315 = vand.u32 %v5314, 4294901760
        %5316 = vmatprep.subr.mxu0 %v5315
        %v5317 = vand.u32 %v422, 4294901760
        %v5318 = vsub.f32 %v422, %v5317
        %v5319 = vand.u32 %v5318, 4294901760
        %5320 = vmatpush2.msra.mxu0 %v5319
        %v5321 = vand.u32 %v415, 4294901760
        %v5322 = vsub.f32 %v415, %v5321
        %v5323 = vand.u32 %v5322, 4294901760
        %5324 = vmatprep.subr.mxu0 %v5323
        %v5325 = vand.u32 %v414, 4294901760
        %v5326 = vsub.f32 %v414, %v5325
        %v5327 = vand.u32 %v5326, 4294901760
        %5328 = vmatpush2.msra.mxu0 %v5327
        %v5329 = vand.u32 %v407, 4294901760
        %v5330 = vsub.f32 %v407, %v5329
        %v5331 = vand.u32 %v5330, 4294901760
        %5332 = vmatprep.subr.mxu0 %v5331
        %v5333 = vand.u32 %v406, 4294901760
        %v5334 = vsub.f32 %v406, %v5333
        %v5335 = vand.u32 %v5334, 4294901760
        %5336 = vmatpush2.msra.mxu0 %v5335
        %v5337 = vand.u32 %v399, 4294901760
        %v5338 = vsub.f32 %v399, %v5337
        %v5339 = vand.u32 %v5338, 4294901760
        %5340 = vmatprep.subr.mxu0 %v5339
        %v5341 = vand.u32 %v398, 4294901760
        %v5342 = vsub.f32 %v398, %v5341
        %v5343 = vand.u32 %v5342, 4294901760
        %5344 = vmatpush2.msra.mxu0 %v5343
        %v5345 = vand.u32 %v391, 4294901760
        %v5346 = vsub.f32 %v391, %v5345
        %v5347 = vand.u32 %v5346, 4294901760
        %5348 = vmatprep.subr.mxu0 %v5347
        %v5349 = vand.u32 %v390, 4294901760
        %v5350 = vsub.f32 %v390, %v5349
        %v5351 = vand.u32 %v5350, 4294901760
        %5352 = vmatpush2.msra.mxu0 %v5351
        %v5353 = vand.u32 %v383, 4294901760
        %v5354 = vsub.f32 %v383, %v5353
        %v5355 = vand.u32 %v5354, 4294901760
        %5356 = vmatprep.subr.mxu0 %v5355
        %v5357 = vand.u32 %v382, 4294901760
        %v5358 = vsub.f32 %v382, %v5357
        %v5359 = vand.u32 %v5358, 4294901760
        %5360 = vmatpush2.msra.mxu0 %v5359
        %v5361 = vand.u32 %v375, 4294901760
        %v5362 = vsub.f32 %v375, %v5361
        %v5363 = vand.u32 %v5362, 4294901760
        %5364 = vmatprep.subr.mxu0 %v5363
        %v5365 = vand.u32 %v374, 4294901760
        %v5366 = vsub.f32 %v374, %v5365
        %v5367 = vand.u32 %v5366, 4294901760
        %5368 = vmatpush2.msra.mxu0 %v5367
        %v5369 = vand.u32 %v367, 4294901760
        %v5370 = vsub.f32 %v367, %v5369
        %v5371 = vand.u32 %v5370, 4294901760
        %5372 = vmatprep.subr.mxu0 %v5371
        %v5373 = vand.u32 %v366, 4294901760
        %v5374 = vsub.f32 %v366, %v5373
        %v5375 = vand.u32 %v5374, 4294901760
        %5376 = vmatpush2.msra.mxu0 %v5375
        %v5377 = vand.u32 %v359, 4294901760
        %v5378 = vsub.f32 %v359, %v5377
        %v5379 = vand.u32 %v5378, 4294901760
        %5380 = vmatprep.subr.mxu0 %v5379
        %v5381 = vand.u32 %v358, 4294901760
        %v5382 = vsub.f32 %v358, %v5381
        %v5383 = vand.u32 %v5382, 4294901760
        %5384 = vmatpush2.msra.mxu0 %v5383
        %v5385 = vand.u32 %v351, 4294901760
        %v5386 = vsub.f32 %v351, %v5385
        %v5387 = vand.u32 %v5386, 4294901760
        %5388 = vmatprep.subr.mxu0 %v5387
        %v5389 = vand.u32 %v350, 4294901760
        %v5390 = vsub.f32 %v350, %v5389
        %v5391 = vand.u32 %v5390, 4294901760
        %5392 = vmatpush2.msra.mxu0 %v5391
        %v5393 = vand.u32 %v343, 4294901760
        %v5394 = vsub.f32 %v343, %v5393
        %v5395 = vand.u32 %v5394, 4294901760
        %5396 = vmatprep.subr.mxu0 %v5395
        %v5397 = vand.u32 %v342, 4294901760
        %v5398 = vsub.f32 %v342, %v5397
        %v5399 = vand.u32 %v5398, 4294901760
        %5400 = vmatpush2.msra.mxu0 %v5399
        %v5401 = vand.u32 %v335, 4294901760
        %v5402 = vsub.f32 %v335, %v5401
        %v5403 = vand.u32 %v5402, 4294901760
        %5404 = vmatprep.subr.mxu0 %v5403
        %v5405 = vand.u32 %v334, 4294901760
        %v5406 = vsub.f32 %v334, %v5405
        %v5407 = vand.u32 %v5406, 4294901760
        %5408 = vmatpush2.msra.mxu0 %v5407
        %v5409 = vand.u32 %v327, 4294901760
        %v5410 = vsub.f32 %v327, %v5409
        %v5411 = vand.u32 %v5410, 4294901760
        %5412 = vmatprep.subr.mxu0 %v5411
        %v5413 = vand.u32 %v326, 4294901760
        %v5414 = vsub.f32 %v326, %v5413
        %v5415 = vand.u32 %v5414, 4294901760
        %5416 = vmatpush2.msra.mxu0 %v5415
        %v5417 = vand.u32 %v319, 4294901760
        %v5418 = vsub.f32 %v319, %v5417
        %v5419 = vand.u32 %v5418, 4294901760
        %5420 = vmatprep.subr.mxu0 %v5419
        %v5421 = vand.u32 %v318, 4294901760
        %v5422 = vsub.f32 %v318, %v5421
        %v5423 = vand.u32 %v5422, 4294901760
        %5424 = vmatpush2.msra.mxu0 %v5423
        %v5425 = vand.u32 %v311, 4294901760
        %v5426 = vsub.f32 %v311, %v5425
        %v5427 = vand.u32 %v5426, 4294901760
        %5428 = vmatprep.subr.mxu0 %v5427
        %v5429 = vand.u32 %v310, 4294901760
        %v5430 = vsub.f32 %v310, %v5429
        %v5431 = vand.u32 %v5430, 4294901760
        %5432 = vmatpush2.msra.mxu0 %v5431
        %v5433 = vand.u32 %v440, 4294901760
        %5434 = vmatprep.mubr.f32.mxu0 %v5433
        %v5435 = vand.u32 %v439, 4294901760
        %5436 = vmatmul.mubr.f32.gmra.mxu0 %v5435
        %v5437 = vpop.f32.mrf.mxu0
        %v5438 = vadd.f32 %v5173, %v5437
        %v5439 = vpop.f32.mrf.mxu0
        %v5440 = vadd.f32 %v5175, %v5439
        %5441 = vdwg.mxu0
        %v5442 = vand.u32 %v303, 4294901760
        %5443 = vmatprep.subr.mxu0 %v5442
        %v5444 = vand.u32 %v302, 4294901760
        %5445 = vmatpush1.msra.mxu0 %v5444
        %v5446 = vand.u32 %v295, 4294901760
        %5447 = vmatprep.subr.mxu0 %v5446
        %v5448 = vand.u32 %v294, 4294901760
        %5449 = vmatpush1.msra.mxu0 %v5448
        %v5450 = vand.u32 %v287, 4294901760
        %5451 = vmatprep.subr.mxu0 %v5450
        %v5452 = vand.u32 %v286, 4294901760
        %5453 = vmatpush1.msra.mxu0 %v5452
        %v5454 = vand.u32 %v279, 4294901760
        %5455 = vmatprep.subr.mxu0 %v5454
        %v5456 = vand.u32 %v278, 4294901760
        %5457 = vmatpush1.msra.mxu0 %v5456
        %v5458 = vand.u32 %v271, 4294901760
        %5459 = vmatprep.subr.mxu0 %v5458
        %v5460 = vand.u32 %v270, 4294901760
        %5461 = vmatpush1.msra.mxu0 %v5460
        %v5462 = vand.u32 %v263, 4294901760
        %5463 = vmatprep.subr.mxu0 %v5462
        %v5464 = vand.u32 %v262, 4294901760
        %5465 = vmatpush1.msra.mxu0 %v5464
        %v5466 = vand.u32 %v255, 4294901760
        %5467 = vmatprep.subr.mxu0 %v5466
        %v5468 = vand.u32 %v254, 4294901760
        %5469 = vmatpush1.msra.mxu0 %v5468
        %v5470 = vand.u32 %v247, 4294901760
        %5471 = vmatprep.subr.mxu0 %v5470
        %v5472 = vand.u32 %v246, 4294901760
        %5473 = vmatpush1.msra.mxu0 %v5472
        %v5474 = vand.u32 %v239, 4294901760
        %5475 = vmatprep.subr.mxu0 %v5474
        %v5476 = vand.u32 %v238, 4294901760
        %5477 = vmatpush1.msra.mxu0 %v5476
        %v5478 = vand.u32 %v231, 4294901760
        %5479 = vmatprep.subr.mxu0 %v5478
        %v5480 = vand.u32 %v230, 4294901760
        %5481 = vmatpush1.msra.mxu0 %v5480
        %v5482 = vand.u32 %v223, 4294901760
        %5483 = vmatprep.subr.mxu0 %v5482
        %v5484 = vand.u32 %v222, 4294901760
        %5485 = vmatpush1.msra.mxu0 %v5484
        %v5486 = vand.u32 %v215, 4294901760
        %5487 = vmatprep.subr.mxu0 %v5486
        %v5488 = vand.u32 %v214, 4294901760
        %5489 = vmatpush1.msra.mxu0 %v5488
        %v5490 = vand.u32 %v207, 4294901760
        %5491 = vmatprep.subr.mxu0 %v5490
        %v5492 = vand.u32 %v206, 4294901760
        %5493 = vmatpush1.msra.mxu0 %v5492
        %v5494 = vand.u32 %v199, 4294901760
        %5495 = vmatprep.subr.mxu0 %v5494
        %v5496 = vand.u32 %v198, 4294901760
        %5497 = vmatpush1.msra.mxu0 %v5496
        %v5498 = vand.u32 %v191, 4294901760
        %5499 = vmatprep.subr.mxu0 %v5498
        %v5500 = vand.u32 %v190, 4294901760
        %5501 = vmatpush1.msra.mxu0 %v5500
        %v5502 = vand.u32 %v183, 4294901760
        %5503 = vmatprep.subr.mxu0 %v5502
        %v5504 = vand.u32 %v182, 4294901760
        %5505 = vmatpush1.msra.mxu0 %v5504
        %v5506 = vand.u32 %v431, 4294901760
        %5507 = vmatprep.subr.mxu0 %v5506
        %v5508 = vand.u32 %v430, 4294901760
        %5509 = vmatpush2.msra.mxu0 %v5508
        %v5510 = vand.u32 %v423, 4294901760
        %5511 = vmatprep.subr.mxu0 %v5510
        %v5512 = vand.u32 %v422, 4294901760
        %5513 = vmatpush2.msra.mxu0 %v5512
        %v5514 = vand.u32 %v415, 4294901760
        %5515 = vmatprep.subr.mxu0 %v5514
        %v5516 = vand.u32 %v414, 4294901760
        %5517 = vmatpush2.msra.mxu0 %v5516
        %v5518 = vand.u32 %v407, 4294901760
        %5519 = vmatprep.subr.mxu0 %v5518
        %v5520 = vand.u32 %v406, 4294901760
        %5521 = vmatpush2.msra.mxu0 %v5520
        %v5522 = vand.u32 %v399, 4294901760
        %5523 = vmatprep.subr.mxu0 %v5522
        %v5524 = vand.u32 %v398, 4294901760
        %5525 = vmatpush2.msra.mxu0 %v5524
        %v5526 = vand.u32 %v391, 4294901760
        %5527 = vmatprep.subr.mxu0 %v5526
        %v5528 = vand.u32 %v390, 4294901760
        %5529 = vmatpush2.msra.mxu0 %v5528
        %v5530 = vand.u32 %v383, 4294901760
        %5531 = vmatprep.subr.mxu0 %v5530
        %v5532 = vand.u32 %v382, 4294901760
        %5533 = vmatpush2.msra.mxu0 %v5532
        %v5534 = vand.u32 %v375, 4294901760
        %5535 = vmatprep.subr.mxu0 %v5534
        %v5536 = vand.u32 %v374, 4294901760
        %5537 = vmatpush2.msra.mxu0 %v5536
        %v5538 = vand.u32 %v367, 4294901760
        %5539 = vmatprep.subr.mxu0 %v5538
        %v5540 = vand.u32 %v366, 4294901760
        %5541 = vmatpush2.msra.mxu0 %v5540
        %v5542 = vand.u32 %v359, 4294901760
        %5543 = vmatprep.subr.mxu0 %v5542
        %v5544 = vand.u32 %v358, 4294901760
        %5545 = vmatpush2.msra.mxu0 %v5544
        %v5546 = vand.u32 %v351, 4294901760
        %5547 = vmatprep.subr.mxu0 %v5546
        %v5548 = vand.u32 %v350, 4294901760
        %5549 = vmatpush2.msra.mxu0 %v5548
        %v5550 = vand.u32 %v343, 4294901760
        %5551 = vmatprep.subr.mxu0 %v5550
        %v5552 = vand.u32 %v342, 4294901760
        %5553 = vmatpush2.msra.mxu0 %v5552
        %v5554 = vand.u32 %v335, 4294901760
        %5555 = vmatprep.subr.mxu0 %v5554
        %v5556 = vand.u32 %v334, 4294901760
        %5557 = vmatpush2.msra.mxu0 %v5556
        %v5558 = vand.u32 %v327, 4294901760
        %5559 = vmatprep.subr.mxu0 %v5558
        %v5560 = vand.u32 %v326, 4294901760
        %5561 = vmatpush2.msra.mxu0 %v5560
        %v5562 = vand.u32 %v319, 4294901760
        %5563 = vmatprep.subr.mxu0 %v5562
        %v5564 = vand.u32 %v318, 4294901760
        %5565 = vmatpush2.msra.mxu0 %v5564
        %v5566 = vand.u32 %v311, 4294901760
        %5567 = vmatprep.subr.mxu0 %v5566
        %v5568 = vand.u32 %v310, 4294901760
        %5569 = vmatpush2.msra.mxu0 %v5568
        %v5570 = vand.u32 %v440, 4294901760
        %5571 = vmatprep.mubr.f32.mxu0 %v5570
        %v5572 = vand.u32 %v439, 4294901760
        %5573 = vmatmul.mubr.f32.gmra.mxu0 %v5572
        %v5574 = vpop.f32.mrf.mxu0
        %v5575 = vadd.f32 %v5438, %v5574
        %v5576 = vpop.f32.mrf.mxu0
        %v5577 = vadd.f32 %v5440, %v5576
        %5578 = vdwg.mxu0
        %v5587 = vcombine.low %v1723, %v1725
        %v5588 = vcombine.low %v3007, %v3009
        %v5590 = vunpack.c.l.s4 1983009808
        %v5591 = vunpack.c.0.s8 %v5590
        %v5592 = vlaneseq
        %v5593 = vshrl.u32 %v5592, 7
        %v5594 = vsub.s32 %v5591, %v5593
        %v5595 = vrot.slane %v5587, %v5594
        %v5597 = vunpack.c.l.s4 1983009808
        %v5598 = vunpack.c.0.s8 %v5597
        %v5599 = vlaneseq
        %v5600 = vshrl.u32 %v5599, 7
        %v5601 = vsub.s32 %v5598, %v5600
        %v5602 = vrot.slane %v5588, %v5601
        %v5603 = vcombine.low %v5595, %v5602
        %v5604 = vcombine.low %v4291, %v4293
        %v5605 = vcombine.low %v5575, %v5577
        %v5607 = vunpack.c.l.s4 1983009808
        %v5608 = vunpack.c.0.s8 %v5607
        %v5609 = vlaneseq
        %v5610 = vshrl.u32 %v5609, 7
        %v5611 = vsub.s32 %v5608, %v5610
        %v5612 = vrot.slane %v5604, %v5611
        %v5614 = vunpack.c.l.s4 1983009808
        %v5615 = vunpack.c.0.s8 %v5614
        %v5616 = vlaneseq
        %v5617 = vshrl.u32 %v5616, 7
        %v5618 = vsub.s32 %v5615, %v5617
        %v5619 = vrot.slane %v5605, %v5618
        %v5620 = vcombine.low %v5612, %v5619
        %5623 = vst [vmem:[%s174] sm:$0xff] %v5603
        %5624 = vst [vmem:[%s174 + $0x8] sm:$0xff] %v5620
        %s5625 = sand.u32 %s75, 1
        %s5626 = scalar_lea.sflag [#allocation4], %s5625
        %s5627 = sand.u32 %s75, 1
        %s5628 = smul.addr %s5627, 16
        %s5629 = scalar_lea.vmem [#allocation7], %s5628
        // Predicated region
        $region37: #{tpu_custom_call.1} parent=27 // pred_check
          %p5630 = pneg %p85
        $region38: #{tpu_custom_call.1} parent=27 // pred_check_branch
          %5632 = sbr.rel (%p5630) target = $region40
        $region39: #{tpu_custom_call.1} parent=27 // pred_region
          %s5634 = ssub.s32 256, 256
          %5635 = vsyncadd %s5626, %s5634
          %s5636 = smul.addr %s20, 8
          %s5637 = smul.addr %s5636, 32
          %s5638 = scalar_lea.hbm %s2, %s5637
          %s5640 = sshll.u32 %s5629, 4
          %s5641 = int_to_ptr.vmem [resolvable:$true] %s5640
          %5643 = dma.vmem_to_hbm [thread:$0]  %s5641, 256, %s5638, %s5626
        $region40: #{tpu_custom_call.1} parent=27 // pred_fallthru
          _
      $region28: #{tpu_custom_call.1} parent=5 // pred_fallthru
        _
      %p5644 = scmp.le.s32.totalorder 2, %s15
      // Predicated region
      $region41: #{tpu_custom_call.1} parent=5 // pred_check
        %p5645 = pneg %p5644
      $region42: #{tpu_custom_call.1} parent=5 // pred_check_branch
        %5647 = sbr.rel (%p5645) target = $region44
      $region43: #{tpu_custom_call.1} parent=5 // pred_region
        %s5648 = ssub.s32 %s15, 2
        // Predicated region
        $region45: #{tpu_custom_call.1} parent=43 // pred_check
          %p5649 = pneg %p91
        $region46: #{tpu_custom_call.1} parent=43 // pred_check_branch
          %5651 = sbr.rel (%p5649) target = $region48
        $region47: #{tpu_custom_call.1} parent=43 // pred_region
          %s5652 = sand.u32 %s76, 1
          %s5653 = scalar_lea.sflag [#allocation4], %s5652
          %s5654 = sand.u32 %s76, 1
          %s5655 = smul.addr %s5654, 16
          %s5656 = scalar_lea.vmem [#allocation7], %s5655
          %5657 = dma.done %s5653, 256
        $region48: #{tpu_custom_call.1} parent=43 // pred_fallthru
          _
      $region44: #{tpu_custom_call.1} parent=5 // pred_fallthru
        _
    $region6: #{tpu_custom_call.1} parent=1 // loop_footer
      %s19 = sadd.s32 1, %s15
    $region7: #{tpu_custom_call.1} parent=1 // loop_footer_branch
      %14 = sbr.rel target = $region3
    $region8: #{tpu_custom_call.1} parent=1 // loop_exit
      _
    %5658 = vsyncpa [#allocation3], 1
    %s5659 = scalar_lea.sflag [#allocation3], 1
    %5660 = vsyncpa %s5659, 1
    %5661 = vsyncpa [#allocation6], 1
    %5662 = vsyncpa [#allocation4], 1
    %s5663 = scalar_lea.sflag [#allocation4], 1
    %5664 = vsyncpa %s5663, 1

</llo_original>
